<compile_context>
chip_gen: v5e
topology: v5e:2x2
jax: 0.10.0
libtpu: 0.0.40
codegen_flags: <defaults>
</compile_context>

<pallas_src>
import jax
import jax.numpy as jnp
from jax.experimental import pallas as pl
from jax.experimental.pallas import tpu as pltpu

TRUNCATION = 100           # logical max_truncation_level (module default)
TPAD = 128                 # lane-aligned padded truncation (head slices at k*128)
IN_DIM = 784
HID = 500
HID_PAD = 512              # lane-aligned hidden width
MAX_TM = 512               # max batch-tile rows per grid step
N_AUX = 7                  # z_bnp, z_real, mu, logvar, pi_logit, a, b


def _round_up(n, m):
    return (n + m - 1) // m * m


def _cdiv(n, m):
    return (n + m - 1) // m


def _softplus(x):
    # numerically-stable softplus, lowers cleanly in-kernel
    return jnp.maximum(x, 0.0) + jnp.log1p(jnp.exp(-jnp.abs(x)))


def _sigmoid(x):
    # exact sigmoid via tanh: bounded in [0,1], no exp overflow, EUP slot
    return 0.5 * (jnp.tanh(0.5 * x) + 1.0)


def mfbbvi_fused_kernel(x_ref, eps_ref, u_ref,
                        w1_ref, b1_ref, w2_ref, b2_ref,
                        w3_ref, b3_ref, w4_ref, b4_ref,
                        recon_ref, aux_ref):
    """Fused encoder -> Bernoulli/Gaussian sampler -> decoder for one batch tile."""
    # ---- inference net: h1 = relu(x @ W1 + b1); q = h1 @ W2 + b2 ----
    xb = x_ref[...].astype(jnp.bfloat16)
    h1 = jnp.dot(xb, w1_ref[...], preferred_element_type=jnp.float32)
    h1 = jnp.maximum(h1 + b1_ref[...], 0.0)                       # ReLU
    q = jnp.dot(h1.astype(jnp.bfloat16), w2_ref[...],
                preferred_element_type=jnp.float32)
    q = q + b2_ref[...]                                           # [TM, 5*TPAD]

    T = TPAD                                                      # 128 (lane-aligned)
    mu = q[:, 0 * T:1 * T]
    logvar = q[:, 1 * T:2 * T]
    pi_logit = q[:, 2 * T:3 * T]
    a = _softplus(q[:, 3 * T:4 * T]) + 0.01
    bb = _softplus(q[:, 4 * T:5 * T]) + 0.01

    # ---- sampler: Bernoulli(z_probs) and Gaussian reparameterization ----
    z_probs = _sigmoid(pi_logit)
    z_bnp = (u_ref[...] < z_probs).astype(jnp.float32)            # Bernoulli sample
    z_real = eps_ref[...] * jnp.exp(0.5 * logvar) + mu
    z = z_bnp * z_real

    # ---- generative net: sigmoid(relu(z @ W3 + b3) @ W4 + b4) ----
    # (padded z columns >= 100 hit zero rows of W3, so they contribute nothing)
    h3 = jnp.dot(z.astype(jnp.bfloat16), w3_ref[...],
                 preferred_element_type=jnp.float32)
    h3 = jnp.maximum(h3 + b3_ref[...], 0.0)                       # ReLU
    logits = jnp.dot(h3.astype(jnp.bfloat16), w4_ref[...],
                     preferred_element_type=jnp.float32)
    recon_ref[...] = _sigmoid(logits + b4_ref[...])

    # ---- one wide lane-dense aux store: 7 heads x 128 lanes each ----
    aux_ref[...] = jnp.concatenate(
        [z_bnp, z_real, mu, logvar, pi_logit, a, bb], axis=-1)    # [TM, 7*TPAD]


def init_params(key):
    """nn.Linear-style init (shapes from MFBBVI.__init__), zero-padded to
    lane-aligned shapes, weights stored in bfloat16 for native MXU passes."""
    ks = jax.random.split(key, 8)

    def lin(kw, kb, fan_in, fan_out):
        bound = 1.0 / (fan_in ** 0.5)
        w = jax.random.uniform(kw, (fan_in, fan_out), jnp.float32, -bound, bound)
        b = jax.random.uniform(kb, (1, fan_out), jnp.float32, -bound, bound)
        return w, b

    w1, b1 = lin(ks[0], ks[1], IN_DIM, HID)                  # h_inf : 784 -> 500
    w2, b2 = lin(ks[2], ks[3], HID, 5 * TRUNCATION)          # q_inf : 500 -> 5*T
    w3, b3 = lin(ks[4], ks[5], TRUNCATION, HID)              # h_gen : T   -> 500
    w4, b4 = lin(ks[6], ks[7], HID, IN_DIM)                  # x_gen : 500 -> 784

    # zero-pad: HID 500->512, truncation 100->128 with heads at offsets k*128.
    # NOTE: padded rows of w3 (rows 100..127) MUST stay zero -- the kernel relies
    # on that so noisy padded z lanes do not affect the reconstruction.
    w1p = jnp.zeros((IN_DIM, HID_PAD), jnp.float32).at[:, :HID].set(w1)
    b1p = jnp.zeros((1, HID_PAD), jnp.float32).at[:, :HID].set(b1)

    w2p = jnp.zeros((HID_PAD, 5 * TPAD), jnp.float32)
    b2p = jnp.zeros((1, 5 * TPAD), jnp.float32)
    for k in range(5):
        w2p = w2p.at[:HID, k * TPAD:k * TPAD + TRUNCATION].set(
            w2[:, k * TRUNCATION:(k + 1) * TRUNCATION])
        b2p = b2p.at[:, k * TPAD:k * TPAD + TRUNCATION].set(
            b2[:, k * TRUNCATION:(k + 1) * TRUNCATION])

    w3p = jnp.zeros((TPAD, HID_PAD), jnp.float32).at[:TRUNCATION, :HID].set(w3)
    b3p = jnp.zeros((1, HID_PAD), jnp.float32).at[:, :HID].set(b3)

    w4p = jnp.zeros((HID_PAD, IN_DIM), jnp.float32).at[:HID, :].set(w4)
    b4p = b4                                                  # (1, 784)

    return dict(w1=w1p.astype(jnp.bfloat16), b1=b1p,
                w2=w2p.astype(jnp.bfloat16), b2=b2p,
                w3=w3p.astype(jnp.bfloat16), b3=b3p,
                w4=w4p.astype(jnp.bfloat16), b4=b4p)


@jax.jit
def mfbbvi_forward(x, params, key):
    """Returns (recon, z_bnp, z_real, v, mu, logvar, pi_logit, a, b), plus stats."""
    x_flat = x.reshape(-1, IN_DIM).astype(jnp.float32)        # x.view(-1, 784)
    B = x_flat.shape[0]

    # ---- tile heuristic: minimal padding + >= 2 grid steps for v7x megacore ----
    n_tiles = max(1, _cdiv(B, MAX_TM))
    if B > 128 and n_tiles == 1:
        n_tiles = 2                                           # let both TCs work
    TM = _round_up(_cdiv(B, n_tiles), 8)                      # sublane-aligned tile
    B_pad = TM * n_tiles
    if B_pad != B:
        x_flat = jnp.pad(x_flat, ((0, B_pad - B), (0, 0)))

    k_eps, k_u, k_beta = jax.random.split(key, 3)
    # Gaussian reparameterization noise (PyTorch uses float64; we stay f32).
    eps = jax.random.normal(k_eps, (B_pad, TPAD), jnp.float32)
    # uniforms for the Bernoulli(z_probs) draw
    u = jax.random.uniform(k_u, (B_pad, TPAD), jnp.float32)

    tiled = lambda i: (i, 0)           # batch-tiled arrays
    resident = lambda i: (0, 0)        # weights/biases stay resident across tiles

    in_specs = [
        pl.BlockSpec((TM, IN_DIM), tiled),             # x
        pl.BlockSpec((TM, TPAD), tiled),               # eps
        pl.BlockSpec((TM, TPAD), tiled),               # u
        pl.BlockSpec((IN_DIM, HID_PAD), resident),     # w1
        pl.BlockSpec((1, HID_PAD), resident),          # b1
        pl.BlockSpec((HID_PAD, 5 * TPAD), resident),   # w2
        pl.BlockSpec((1, 5 * TPAD), resident),         # b2
        pl.BlockSpec((TPAD, HID_PAD), resident),       # w3
        pl.BlockSpec((1, HID_PAD), resident),          # b3
        pl.BlockSpec((HID_PAD, IN_DIM), resident),     # w4
        pl.BlockSpec((1, IN_DIM), resident),           # b4
    ]
    out_specs = [
        pl.BlockSpec((TM, IN_DIM), tiled),             # recon
        pl.BlockSpec((TM, N_AUX * TPAD), tiled),       # aux slab (7 x 128 lanes)
    ]
    out_shape = [
        jax.ShapeDtypeStruct((B_pad, IN_DIM), jnp.float32),
        jax.ShapeDtypeStruct((B_pad, N_AUX * TPAD), jnp.float32),
    ]

    recon, aux = pl.pallas_call(
        mfbbvi_fused_kernel,
        out_shape=out_shape,
        grid=(n_tiles,),
        in_specs=in_specs,
        out_specs=out_specs,
        compiler_params=pltpu.CompilerParams(
            dimension_semantics=("parallel",),
            vmem_limit_bytes=48 * 1024 * 1024),
    )(x_flat, eps, u,
      params["w1"], params["b1"], params["w2"], params["b2"],
      params["w3"], params["b3"], params["w4"], params["b4"])

    # slice away batch padding and the 28 padded truncation lanes of each head
    # (padded a/b lanes are softplus(0)+0.01 and must not leak into stats/Beta)
    recon = recon[:B]

    def head(k):
        return aux[:B, k * TPAD:k * TPAD + TRUNCATION]

    z_bnp = head(0)
    z_real = head(1)
    mu = head(2)
    logvar = head(3)
    pi_logit = head(4)
    a = head(5)
    b = head(6)

    # running min/max stats (self.stats side effect in the torch module);
    # here: per-call min/max folded against the module's initial [10,10,0,0]
    stats = jnp.stack([jnp.minimum(a.min(), 10.0), jnp.minimum(b.min(), 10.0),
                       jnp.maximum(a.max(), 0.0), jnp.maximum(b.max(), 0.0)])

    # TODO(synk): Beta(a, b) sampling needs Gamma draws (no Pallas primitive) -> plain JAX.
    v = jax.random.beta(k_beta, a, b).astype(jnp.float32)

    return (recon, z_bnp, z_real, v, mu, logvar, pi_logit, a, b), stats


if __name__ == "__main__":
    key = jax.random.PRNGKey(0)
    k_param, k_data, k_sample = jax.random.split(key, 3)

    params = init_params(k_param)
    # NCHW MNIST-like input, small batch
    x = jax.random.uniform(k_data, (8, 1, 28, 28), jnp.float32)

    (recon, z_bnp, z_real, v, mu, logvar, pi_logit, a, b), stats = mfbbvi_forward(
        x, params, k_sample)
    jax.block_until_ready(recon)

    B = x.shape[0]
    assert recon.shape == (B, IN_DIM)
    assert z_bnp.shape == (B, TRUNCATION) and z_real.shape == (B, TRUNCATION)
    assert v.shape == (B, TRUNCATION)
    assert mu.shape == logvar.shape == pi_logit.shape == a.shape == b.shape == (B, TRUNCATION)
    assert bool(jnp.all(jnp.isfinite(recon)))
    assert bool(jnp.all((recon >= 0.0) & (recon <= 1.0)))
    assert bool(jnp.all((z_bnp == 0.0) | (z_bnp == 1.0)))
    assert bool(jnp.all(a > 0.0)) and bool(jnp.all(b > 0.0))
    assert stats.shape == (4,)

    print("KERNEL_OK")
</pallas_src>

<mosaic_0001>
module attributes {stable_mosaic.version = 11 : i64} {
  func.func @mfbbvi_fused_kernel(%arg0: i32, %arg1: memref<8x784xf32, #tpu.memory_space<vmem>>, %arg2: memref<8x128xf32, #tpu.memory_space<vmem>>, %arg3: memref<8x128xf32, #tpu.memory_space<vmem>>, %arg4: memref<784x512xbf16, #tpu.memory_space<vmem>>, %arg5: memref<1x512xf32, #tpu.memory_space<vmem>>, %arg6: memref<512x640xbf16, #tpu.memory_space<vmem>>, %arg7: memref<1x640xf32, #tpu.memory_space<vmem>>, %arg8: memref<128x512xbf16, #tpu.memory_space<vmem>>, %arg9: memref<1x512xf32, #tpu.memory_space<vmem>>, %arg10: memref<512x784xbf16, #tpu.memory_space<vmem>>, %arg11: memref<1x784xf32, #tpu.memory_space<vmem>>, %arg12: memref<8x784xf32, #tpu.memory_space<vmem>>, %arg13: memref<8x896xf32, #tpu.memory_space<vmem>>) attributes {dimension_semantics = [#tpu.dimension_semantics<parallel>], iteration_bounds = array<i64: 1>, scalar_prefetch = 0 : i64, scratch_operands = 0 : i64, tpu.core_type = #tpu.core_type<tc>, window_params = [{transform_indices = @transform_0, window_bounds = array<i64: 8, 784>}, {transform_indices = @transform_1, window_bounds = array<i64: 8, 128>}, {transform_indices = @transform_2, window_bounds = array<i64: 8, 128>}, {pipeline_mode = #tpu.pipeline_mode<synchronous>, transform_indices = @transform_3, window_bounds = array<i64: 784, 512>}, {pipeline_mode = #tpu.pipeline_mode<synchronous>, transform_indices = @transform_4, window_bounds = array<i64: 1, 512>}, {pipeline_mode = #tpu.pipeline_mode<synchronous>, transform_indices = @transform_5, window_bounds = array<i64: 512, 640>}, {pipeline_mode = #tpu.pipeline_mode<synchronous>, transform_indices = @transform_6, window_bounds = array<i64: 1, 640>}, {pipeline_mode = #tpu.pipeline_mode<synchronous>, transform_indices = @transform_7, window_bounds = array<i64: 128, 512>}, {pipeline_mode = #tpu.pipeline_mode<synchronous>, transform_indices = @transform_8, window_bounds = array<i64: 1, 512>}, {pipeline_mode = #tpu.pipeline_mode<synchronous>, transform_indices = @transform_9, window_bounds = array<i64: 512, 784>}, {pipeline_mode = #tpu.pipeline_mode<synchronous>, transform_indices = @transform_10, window_bounds = array<i64: 1, 784>}, {transform_indices = @transform_11, window_bounds = array<i64: 8, 784>}, {transform_indices = @transform_12, window_bounds = array<i64: 8, 896>}]} {
    %c0 = arith.constant 0 : index
    %c0_0 = arith.constant 0 : index
    %0 = vector.load %arg1[%c0, %c0_0] : memref<8x784xf32, #tpu.memory_space<vmem>>, vector<8x784xf32>
    %1 = arith.truncf %0 : vector<8x784xf32> to vector<8x784xbf16>
    %c0_1 = arith.constant 0 : index
    %c0_2 = arith.constant 0 : index
    %2 = vector.load %arg4[%c0_1, %c0_2] : memref<784x512xbf16, #tpu.memory_space<vmem>>, vector<784x512xbf16>
    %cst = arith.constant dense<0.000000e+00> : vector<8x512xf32>
    %3 = tpu.matmul %1, %2, %cst {dimension_numbers = #tpu.dot_dimension_numbers<[1], [0], [0], [1], [0, 0, 1, 1], [], []>} : vector<8x784xbf16>, vector<784x512xbf16>, vector<8x512xf32> -> vector<8x512xf32>
    %c0_3 = arith.constant 0 : index
    %c0_4 = arith.constant 0 : index
    %4 = vector.load %arg5[%c0_3, %c0_4] : memref<1x512xf32, #tpu.memory_space<vmem>>, vector<1x512xf32>
    %5 = vector.broadcast %4 : vector<1x512xf32> to vector<8x512xf32>
    %6 = arith.addf %3, %5 : vector<8x512xf32>
    %cst_5 = arith.constant 0.000000e+00 : f32
    %7 = vector.broadcast %cst_5 : f32 to vector<8x512xf32>
    %8 = arith.maximumf %6, %7 : vector<8x512xf32>
    %9 = arith.truncf %8 : vector<8x512xf32> to vector<8x512xbf16>
    %c0_6 = arith.constant 0 : index
    %c0_7 = arith.constant 0 : index
    %10 = vector.load %arg6[%c0_6, %c0_7] : memref<512x640xbf16, #tpu.memory_space<vmem>>, vector<512x640xbf16>
    %cst_8 = arith.constant dense<0.000000e+00> : vector<8x640xf32>
    %11 = tpu.matmul %9, %10, %cst_8 {dimension_numbers = #tpu.dot_dimension_numbers<[1], [0], [0], [1], [0, 0, 1, 1], [], []>} : vector<8x512xbf16>, vector<512x640xbf16>, vector<8x640xf32> -> vector<8x640xf32>
    %c0_9 = arith.constant 0 : index
    %c0_10 = arith.constant 0 : index
    %12 = vector.load %arg7[%c0_9, %c0_10] : memref<1x640xf32, #tpu.memory_space<vmem>>, vector<1x640xf32>
    %13 = vector.broadcast %12 : vector<1x640xf32> to vector<8x640xf32>
    %14 = arith.addf %11, %13 : vector<8x640xf32>
    %15 = vector.extract_strided_slice %14 {offsets = [0, 0], sizes = [8, 128], strides = [1, 1]} : vector<8x640xf32> to vector<8x128xf32>
    %16 = vector.extract_strided_slice %14 {offsets = [0, 128], sizes = [8, 128], strides = [1, 1]} : vector<8x640xf32> to vector<8x128xf32>
    %17 = vector.extract_strided_slice %14 {offsets = [0, 256], sizes = [8, 128], strides = [1, 1]} : vector<8x640xf32> to vector<8x128xf32>
    %18 = vector.extract_strided_slice %14 {offsets = [0, 384], sizes = [8, 128], strides = [1, 1]} : vector<8x640xf32> to vector<8x128xf32>
    %cst_11 = arith.constant 0.000000e+00 : f32
    %19 = vector.broadcast %cst_11 : f32 to vector<8x128xf32>
    %20 = arith.maximumf %18, %19 : vector<8x128xf32>
    %21 = math.absf %18 : vector<8x128xf32>
    %cst_12 = arith.constant 0.000000e+00 : f32
    %22 = vector.broadcast %cst_12 : f32 to vector<8x128xf32>
    %23 = arith.subf %22, %21 : vector<8x128xf32>
    %24 = math.exp %23 : vector<8x128xf32>
    %25 = math.log1p %24 : vector<8x128xf32>
    %26 = arith.addf %20, %25 : vector<8x128xf32>
    %cst_13 = arith.constant 0.00999999977 : f32
    %27 = vector.broadcast %cst_13 : f32 to vector<8x128xf32>
    %28 = arith.addf %26, %27 : vector<8x128xf32>
    %29 = vector.extract_strided_slice %14 {offsets = [0, 512], sizes = [8, 128], strides = [1, 1]} : vector<8x640xf32> to vector<8x128xf32>
    %cst_14 = arith.constant 0.000000e+00 : f32
    %30 = vector.broadcast %cst_14 : f32 to vector<8x128xf32>
    %31 = arith.maximumf %29, %30 : vector<8x128xf32>
    %32 = math.absf %29 : vector<8x128xf32>
    %cst_15 = arith.constant 0.000000e+00 : f32
    %33 = vector.broadcast %cst_15 : f32 to vector<8x128xf32>
    %34 = arith.subf %33, %32 : vector<8x128xf32>
    %35 = math.exp %34 : vector<8x128xf32>
    %36 = math.log1p %35 : vector<8x128xf32>
    %37 = arith.addf %31, %36 : vector<8x128xf32>
    %cst_16 = arith.constant 0.00999999977 : f32
    %38 = vector.broadcast %cst_16 : f32 to vector<8x128xf32>
    %39 = arith.addf %37, %38 : vector<8x128xf32>
    %cst_17 = arith.constant 5.000000e-01 : f32
    %40 = vector.broadcast %cst_17 : f32 to vector<8x128xf32>
    %41 = arith.mulf %40, %17 : vector<8x128xf32>
    %42 = math.tanh %41 : vector<8x128xf32>
    %cst_18 = arith.constant 1.000000e+00 : f32
    %43 = vector.broadcast %cst_18 : f32 to vector<8x128xf32>
    %44 = arith.addf %42, %43 : vector<8x128xf32>
    %cst_19 = arith.constant 5.000000e-01 : f32
    %45 = vector.broadcast %cst_19 : f32 to vector<8x128xf32>
    %46 = arith.mulf %45, %44 : vector<8x128xf32>
    %c0_20 = arith.constant 0 : index
    %c0_21 = arith.constant 0 : index
    %47 = vector.load %arg3[%c0_20, %c0_21] : memref<8x128xf32, #tpu.memory_space<vmem>>, vector<8x128xf32>
    %48 = arith.cmpf olt, %47, %46 : vector<8x128xf32>
    %49 = arith.extui %48 : vector<8x128xi1> to vector<8x128xi32>
    %50 = arith.sitofp %49 : vector<8x128xi32> to vector<8x128xf32>
    %c0_22 = arith.constant 0 : index
    %c0_23 = arith.constant 0 : index
    %51 = vector.load %arg2[%c0_22, %c0_23] : memref<8x128xf32, #tpu.memory_space<vmem>>, vector<8x128xf32>
    %cst_24 = arith.constant 5.000000e-01 : f32
    %52 = vector.broadcast %cst_24 : f32 to vector<8x128xf32>
    %53 = arith.mulf %52, %16 : vector<8x128xf32>
    %54 = math.exp %53 : vector<8x128xf32>
    %55 = arith.mulf %51, %54 : vector<8x128xf32>
    %56 = arith.addf %55, %15 : vector<8x128xf32>
    %57 = arith.mulf %50, %56 : vector<8x128xf32>
    %58 = arith.truncf %57 : vector<8x128xf32> to vector<8x128xbf16>
    %c0_25 = arith.constant 0 : index
    %c0_26 = arith.constant 0 : index
    %59 = vector.load %arg8[%c0_25, %c0_26] : memref<128x512xbf16, #tpu.memory_space<vmem>>, vector<128x512xbf16>
    %cst_27 = arith.constant dense<0.000000e+00> : vector<8x512xf32>
    %60 = tpu.matmul %58, %59, %cst_27 {dimension_numbers = #tpu.dot_dimension_numbers<[1], [0], [0], [1], [0, 0, 1, 1], [], []>} : vector<8x128xbf16>, vector<128x512xbf16>, vector<8x512xf32> -> vector<8x512xf32>
    %c0_28 = arith.constant 0 : index
    %c0_29 = arith.constant 0 : index
    %61 = vector.load %arg9[%c0_28, %c0_29] : memref<1x512xf32, #tpu.memory_space<vmem>>, vector<1x512xf32>
    %62 = vector.broadcast %61 : vector<1x512xf32> to vector<8x512xf32>
    %63 = arith.addf %60, %62 : vector<8x512xf32>
    %cst_30 = arith.constant 0.000000e+00 : f32
    %64 = vector.broadcast %cst_30 : f32 to vector<8x512xf32>
    %65 = arith.maximumf %63, %64 : vector<8x512xf32>
    %66 = arith.truncf %65 : vector<8x512xf32> to vector<8x512xbf16>
    %c0_31 = arith.constant 0 : index
    %c0_32 = arith.constant 0 : index
    %67 = vector.load %arg10[%c0_31, %c0_32] : memref<512x784xbf16, #tpu.memory_space<vmem>>, vector<512x784xbf16>
    %cst_33 = arith.constant dense<0.000000e+00> : vector<8x784xf32>
    %68 = tpu.matmul %66, %67, %cst_33 {dimension_numbers = #tpu.dot_dimension_numbers<[1], [0], [0], [1], [0, 0, 1, 1], [], []>} : vector<8x512xbf16>, vector<512x784xbf16>, vector<8x784xf32> -> vector<8x784xf32>
    %c0_34 = arith.constant 0 : index
    %c0_35 = arith.constant 0 : index
    %69 = vector.load %arg11[%c0_34, %c0_35] : memref<1x784xf32, #tpu.memory_space<vmem>>, vector<1x784xf32>
    %70 = vector.broadcast %69 : vector<1x784xf32> to vector<8x784xf32>
    %71 = arith.addf %68, %70 : vector<8x784xf32>
    %cst_36 = arith.constant 5.000000e-01 : f32
    %72 = vector.broadcast %cst_36 : f32 to vector<8x784xf32>
    %73 = arith.mulf %72, %71 : vector<8x784xf32>
    %74 = math.tanh %73 : vector<8x784xf32>
    %cst_37 = arith.constant 1.000000e+00 : f32
    %75 = vector.broadcast %cst_37 : f32 to vector<8x784xf32>
    %76 = arith.addf %74, %75 : vector<8x784xf32>
    %cst_38 = arith.constant 5.000000e-01 : f32
    %77 = vector.broadcast %cst_38 : f32 to vector<8x784xf32>
    %78 = arith.mulf %77, %76 : vector<8x784xf32>
    %c0_39 = arith.constant 0 : index
    %c0_40 = arith.constant 0 : index
    %79 = vector.load %arg12[%c0_39, %c0_40] : memref<8x784xf32, #tpu.memory_space<vmem>>, vector<8x784xf32>
    tpu.vector_store %arg12[%c0_39, %c0_40], %78 {strides = array<i32>} : memref<8x784xf32, #tpu.memory_space<vmem>>, vector<8x784xf32>,
    %80 = tpu.concatenate %50, %56, %15, %16, %17, %28, %39 in 1 : vector<8x128xf32>, vector<8x128xf32>, vector<8x128xf32>, vector<8x128xf32>, vector<8x128xf32>, vector<8x128xf32>, vector<8x128xf32> -> vector<8x896xf32>
    %c0_41 = arith.constant 0 : index
    %c0_42 = arith.constant 0 : index
    %81 = vector.load %arg13[%c0_41, %c0_42] : memref<8x896xf32, #tpu.memory_space<vmem>>, vector<8x896xf32>
    tpu.vector_store %arg13[%c0_41, %c0_42], %80 {strides = array<i32>} : memref<8x896xf32, #tpu.memory_space<vmem>>, vector<8x896xf32>,
    return
  }
  func.func @transform_0(%arg0: i32) -> (i32, i32) {
    %c0_i32 = arith.constant 0 : i32
    %c0_i32_0 = arith.constant 0 : i32
    return %arg0, %c0_i32 : i32, i32
  }
  func.func @transform_1(%arg0: i32) -> (i32, i32) {
    %c0_i32 = arith.constant 0 : i32
    %c0_i32_0 = arith.constant 0 : i32
    return %arg0, %c0_i32 : i32, i32
  }
  func.func @transform_2(%arg0: i32) -> (i32, i32) {
    %c0_i32 = arith.constant 0 : i32
    %c0_i32_0 = arith.constant 0 : i32
    return %arg0, %c0_i32 : i32, i32
  }
  func.func @transform_3(%arg0: i32) -> (i32, i32) {
    %c0_i32 = arith.constant 0 : i32
    %c0_i32_0 = arith.constant 0 : i32
    %c0_i32_1 = arith.constant 0 : i32
    return %c0_i32, %c0_i32_0 : i32, i32
  }
  func.func @transform_4(%arg0: i32) -> (i32, i32) {
    %c0_i32 = arith.constant 0 : i32
    %c0_i32_0 = arith.constant 0 : i32
    %c0_i32_1 = arith.constant 0 : i32
    return %c0_i32, %c0_i32_0 : i32, i32
  }
  func.func @transform_5(%arg0: i32) -> (i32, i32) {
    %c0_i32 = arith.constant 0 : i32
    %c0_i32_0 = arith.constant 0 : i32
    %c0_i32_1 = arith.constant 0 : i32
    return %c0_i32, %c0_i32_0 : i32, i32
  }
  func.func @transform_6(%arg0: i32) -> (i32, i32) {
    %c0_i32 = arith.constant 0 : i32
    %c0_i32_0 = arith.constant 0 : i32
    %c0_i32_1 = arith.constant 0 : i32
    return %c0_i32, %c0_i32_0 : i32, i32
  }
  func.func @transform_7(%arg0: i32) -> (i32, i32) {
    %c0_i32 = arith.constant 0 : i32
    %c0_i32_0 = arith.constant 0 : i32
    %c0_i32_1 = arith.constant 0 : i32
    return %c0_i32, %c0_i32_0 : i32, i32
  }
  func.func @transform_8(%arg0: i32) -> (i32, i32) {
    %c0_i32 = arith.constant 0 : i32
    %c0_i32_0 = arith.constant 0 : i32
    %c0_i32_1 = arith.constant 0 : i32
    return %c0_i32, %c0_i32_0 : i32, i32
  }
  func.func @transform_9(%arg0: i32) -> (i32, i32) {
    %c0_i32 = arith.constant 0 : i32
    %c0_i32_0 = arith.constant 0 : i32
    %c0_i32_1 = arith.constant 0 : i32
    return %c0_i32, %c0_i32_0 : i32, i32
  }
  func.func @transform_10(%arg0: i32) -> (i32, i32) {
    %c0_i32 = arith.constant 0 : i32
    %c0_i32_0 = arith.constant 0 : i32
    %c0_i32_1 = arith.constant 0 : i32
    return %c0_i32, %c0_i32_0 : i32, i32
  }
  func.func @transform_11(%arg0: i32) -> (i32, i32) {
    %c0_i32 = arith.constant 0 : i32
    %c0_i32_0 = arith.constant 0 : i32
    return %arg0, %c0_i32 : i32, i32
  }
  func.func @transform_12(%arg0: i32) -> (i32, i32) {
    %c0_i32 = arith.constant 0 : i32
    %c0_i32_0 = arith.constant 0 : i32
    return %arg0, %c0_i32 : i32, i32
  }
}

</mosaic_0001>

<llo_original>
// kernel: mfbbvi_forward.5
$region0: #{mfbbvi_forward.5}
  #allocation0 [shape = 'u32[]', space=smem, size = 0x4, offset = 0x4, fixed_abs, tag = 'smem constant byte address 0x4 - core index']
  #allocation1 [shape = 'u32[72,128]{1,0:T(1,128)}', space=vmem, size = 0x9000, scoped, tag = 'internal scratch']
  %s0 = inlined_call_operand.vmem [shape: f32[8,784], index: 0, kind: input, shape index: {}]
  %s1 = inlined_call_operand.vmem [shape: f32[8,128], index: 1, kind: input, shape index: {}]
  %s2 = inlined_call_operand.vmem [shape: f32[8,128], index: 2, kind: input, shape index: {}]
  %s3 = inlined_call_operand.vmem [shape: bf16[784,512], index: 3, kind: input, shape index: {}]
  %s4 = inlined_call_operand.vmem [shape: f32[1,512], index: 4, kind: input, shape index: {}]
  %s5 = inlined_call_operand.vmem [shape: bf16[512,640], index: 5, kind: input, shape index: {}]
  %s6 = inlined_call_operand.vmem [shape: f32[1,640], index: 6, kind: input, shape index: {}]
  %s7 = inlined_call_operand.vmem [shape: bf16[128,512], index: 7, kind: input, shape index: {}]
  %s8 = inlined_call_operand.vmem [shape: f32[1,512], index: 8, kind: input, shape index: {}]
  %s9 = inlined_call_operand.vmem [shape: bf16[512,784], index: 9, kind: input, shape index: {}]
  %s10 = inlined_call_operand.vmem [shape: f32[1,784], index: 10, kind: input, shape index: {}]
  %s11 = inlined_call_operand.hbm [shape: f32[8,784], index: 11, kind: output, shape index: {0}]
  %s12 = inlined_call_operand.vmem [shape: f32[8,896], index: 12, kind: output, shape index: {1}]
  %13 = xla_tuple %s11, %s12
  %s14 = sld [smem:[#allocation0]]
  $region62: #{mfbbvi_forward.5} parent=0
    _
  %s16 = ssub.s32 1, %s14
  %s17 = scalar_select 0, %s16, %s14
  $region1: #{mfbbvi_forward.5} parent=0
    #allocation2 [shape = 'u8[28672]{0}', space=vmem, size = 0x7000, scoped, tag = 'output window, operand 0, single buffered']
    #allocation3 [shape = 's32[1]{0}', space=sflag, size = 0x4, scoped, tag = 'scoped memory for mfbbvi_forward.5']
    %18 = vsyncpa [#allocation3], 0
    // Predicated region
    $region2: #{mfbbvi_forward.5} parent=1 // pred_check
      _
    $region3: #{mfbbvi_forward.5} parent=1 // pred_check_branch
      %20 = sbr.rel (0) target = $region5
    $region4: #{mfbbvi_forward.5} parent=1 // pred_region
      _
    $region5: #{mfbbvi_forward.5} parent=1 // pred_fallthru
      _
    // Predicated region
    $region6: #{mfbbvi_forward.5} parent=1 // pred_check
      _
    $region7: #{mfbbvi_forward.5} parent=1 // pred_check_branch
      %22 = sbr.rel (0) target = $region9
    $region8: #{mfbbvi_forward.5} parent=1 // pred_region
      _
    $region9: #{mfbbvi_forward.5} parent=1 // pred_fallthru
      _
    // Predicated region
    $region10: #{mfbbvi_forward.5} parent=1 // pred_check
      _
    $region11: #{mfbbvi_forward.5} parent=1 // pred_check_branch
      %24 = sbr.rel (0) target = $region13
    $region12: #{mfbbvi_forward.5} parent=1 // pred_region
      _
    $region13: #{mfbbvi_forward.5} parent=1 // pred_fallthru
      _
    // Predicated region
    $region14: #{mfbbvi_forward.5} parent=1 // pred_check
      _
    $region15: #{mfbbvi_forward.5} parent=1 // pred_check_branch
      %26 = sbr.rel (0) target = $region17
    $region16: #{mfbbvi_forward.5} parent=1 // pred_region
      _
    $region17: #{mfbbvi_forward.5} parent=1 // pred_fallthru
      _
    // Predicated region
    $region18: #{mfbbvi_forward.5} parent=1 // pred_check
      _
    $region19: #{mfbbvi_forward.5} parent=1 // pred_check_branch
      %28 = sbr.rel (0) target = $region21
    $region20: #{mfbbvi_forward.5} parent=1 // pred_region
      _
    $region21: #{mfbbvi_forward.5} parent=1 // pred_fallthru
      _
    // Predicated region
    $region22: #{mfbbvi_forward.5} parent=1 // pred_check
      _
    $region23: #{mfbbvi_forward.5} parent=1 // pred_check_branch
      %30 = sbr.rel (0) target = $region25
    $region24: #{mfbbvi_forward.5} parent=1 // pred_region
      _
    $region25: #{mfbbvi_forward.5} parent=1 // pred_fallthru
      _
    // Predicated region
    $region26: #{mfbbvi_forward.5} parent=1 // pred_check
      _
    $region27: #{mfbbvi_forward.5} parent=1 // pred_check_branch
      %32 = sbr.rel (0) target = $region29
    $region28: #{mfbbvi_forward.5} parent=1 // pred_region
      _
    $region29: #{mfbbvi_forward.5} parent=1 // pred_fallthru
      _
    // Predicated region
    $region30: #{mfbbvi_forward.5} parent=1 // pred_check
      _
    $region31: #{mfbbvi_forward.5} parent=1 // pred_check_branch
      %34 = sbr.rel (0) target = $region33
    $region32: #{mfbbvi_forward.5} parent=1 // pred_region
      _
    $region33: #{mfbbvi_forward.5} parent=1 // pred_fallthru
      _
    // Predicated region
    $region34: #{mfbbvi_forward.5} parent=1 // pred_check
      _
    $region35: #{mfbbvi_forward.5} parent=1 // pred_check_branch
      %36 = sbr.rel (0) target = $region37
    $region36: #{mfbbvi_forward.5} parent=1 // pred_region
      _
    $region37: #{mfbbvi_forward.5} parent=1 // pred_fallthru
      _
    // Predicated region
    $region38: #{mfbbvi_forward.5} parent=1 // pred_check
      _
    $region39: #{mfbbvi_forward.5} parent=1 // pred_check_branch
      %38 = sbr.rel (0) target = $region41
    $region40: #{mfbbvi_forward.5} parent=1 // pred_region
      _
    $region41: #{mfbbvi_forward.5} parent=1 // pred_fallthru
      _
    // Predicated region
    $region42: #{mfbbvi_forward.5} parent=1 // pred_check
      _
    $region43: #{mfbbvi_forward.5} parent=1 // pred_check_branch
      %40 = sbr.rel (0) target = $region45
    $region44: #{mfbbvi_forward.5} parent=1 // pred_region
      _
    $region45: #{mfbbvi_forward.5} parent=1 // pred_fallthru
      _
    %v42 = vld [vmem:[%s0] sm:$0xff]
    %v43 = vld [vmem:[%s0 + $0x8] sm:$0xff]
    %v44 = vld [vmem:[%s0 + $0x10] sm:$0xff]
    %v45 = vld [vmem:[%s0 + $0x18] sm:$0xff]
    %v46 = vld [vmem:[%s0 + $0x20] sm:$0xff]
    %v47 = vld [vmem:[%s0 + $0x28] sm:$0xff]
    %v48 = vld [vmem:[%s0 + $0x30] sm:$0xff]
    %v49 = vpack.c.bf16 %v42, %v42
    %v50 = vpack.c.bf16 %v43, %v43
    %v51 = vpack.c.bf16 %v44, %v44
    %v52 = vpack.c.bf16 %v45, %v45
    %v53 = vpack.c.bf16 %v46, %v46
    %v54 = vpack.c.bf16 %v47, %v47
    %v55 = vpack.c.bf16 %v48, %v48
    %v56 = vld [vmem:[%s3] sm:$0xff]
    %v57 = vld [vmem:[%s3 + $0x8] sm:$0xff]
    %v58 = vld [vmem:[%s3 + $0x10] sm:$0xff]
    %v59 = vld [vmem:[%s3 + $0x18] sm:$0xff]
    %v60 = vld [vmem:[%s3 + $0x20] sm:$0xff]
    %v61 = vld [vmem:[%s3 + $0x28] sm:$0xff]
    %v62 = vld [vmem:[%s3 + $0x30] sm:$0xff]
    %v63 = vld [vmem:[%s3 + $0x38] sm:$0xff]
    %v64 = vld [vmem:[%s3 + $0x40] sm:$0xff]
    %v65 = vld [vmem:[%s3 + $0x48] sm:$0xff]
    %v66 = vld [vmem:[%s3 + $0x50] sm:$0xff]
    %v67 = vld [vmem:[%s3 + $0x58] sm:$0xff]
    %v68 = vld [vmem:[%s3 + $0x60] sm:$0xff]
    %v69 = vld [vmem:[%s3 + $0x68] sm:$0xff]
    %v70 = vld [vmem:[%s3 + $0x70] sm:$0xff]
    %v71 = vld [vmem:[%s3 + $0x78] sm:$0xff]
    %v72 = vld [vmem:[%s3 + $0x80] sm:$0xff]
    %v73 = vld [vmem:[%s3 + $0x88] sm:$0xff]
    %v74 = vld [vmem:[%s3 + $0x90] sm:$0xff]
    %v75 = vld [vmem:[%s3 + $0x98] sm:$0xff]
    %v76 = vld [vmem:[%s3 + $0xa0] sm:$0xff]
    %v77 = vld [vmem:[%s3 + $0xa8] sm:$0xff]
    %v78 = vld [vmem:[%s3 + $0xb0] sm:$0xff]
    %v79 = vld [vmem:[%s3 + $0xb8] sm:$0xff]
    %v80 = vld [vmem:[%s3 + $0xc0] sm:$0xff]
    %v81 = vld [vmem:[%s3 + $0xc8] sm:$0xff]
    %v82 = vld [vmem:[%s3 + $0xd0] sm:$0xff]
    %v83 = vld [vmem:[%s3 + $0xd8] sm:$0xff]
    %v84 = vld [vmem:[%s3 + $0xe0] sm:$0xff]
    %v85 = vld [vmem:[%s3 + $0xe8] sm:$0xff]
    %v86 = vld [vmem:[%s3 + $0xf0] sm:$0xff]
    %v87 = vld [vmem:[%s3 + $0xf8] sm:$0xff]
    %v88 = vld [vmem:[%s3 + $0x100] sm:$0xff]
    %v89 = vld [vmem:[%s3 + $0x108] sm:$0xff]
    %v90 = vld [vmem:[%s3 + $0x110] sm:$0xff]
    %v91 = vld [vmem:[%s3 + $0x118] sm:$0xff]
    %v92 = vld [vmem:[%s3 + $0x120] sm:$0xff]
    %v93 = vld [vmem:[%s3 + $0x128] sm:$0xff]
    %v94 = vld [vmem:[%s3 + $0x130] sm:$0xff]
    %v95 = vld [vmem:[%s3 + $0x138] sm:$0xff]
    %v96 = vld [vmem:[%s3 + $0x140] sm:$0xff]
    %v97 = vld [vmem:[%s3 + $0x148] sm:$0xff]
    %v98 = vld [vmem:[%s3 + $0x150] sm:$0xff]
    %v99 = vld [vmem:[%s3 + $0x158] sm:$0xff]
    %v100 = vld [vmem:[%s3 + $0x160] sm:$0xff]
    %v101 = vld [vmem:[%s3 + $0x168] sm:$0xff]
    %v102 = vld [vmem:[%s3 + $0x170] sm:$0xff]
    %v103 = vld [vmem:[%s3 + $0x178] sm:$0xff]
    %v104 = vld [vmem:[%s3 + $0x180] sm:$0xff]
    %v105 = vld [vmem:[%s3 + $0x188] sm:$0xff]
    %v106 = vld [vmem:[%s3 + $0x190] sm:$0xff]
    %v107 = vld [vmem:[%s3 + $0x198] sm:$0xff]
    %v108 = vld [vmem:[%s3 + $0x1a0] sm:$0xff]
    %v109 = vld [vmem:[%s3 + $0x1a8] sm:$0xff]
    %v110 = vld [vmem:[%s3 + $0x1b0] sm:$0xff]
    %v111 = vld [vmem:[%s3 + $0x1b8] sm:$0xff]
    %v112 = vld [vmem:[%s3 + $0x1c0] sm:$0xff]
    %v113 = vld [vmem:[%s3 + $0x1c8] sm:$0xff]
    %v114 = vld [vmem:[%s3 + $0x1d0] sm:$0xff]
    %v115 = vld [vmem:[%s3 + $0x1d8] sm:$0xff]
    %v116 = vld [vmem:[%s3 + $0x1e0] sm:$0xff]
    %v117 = vld [vmem:[%s3 + $0x1e8] sm:$0xff]
    %v118 = vld [vmem:[%s3 + $0x1f0] sm:$0xff]
    %v119 = vld [vmem:[%s3 + $0x1f8] sm:$0xff]
    %v120 = vld [vmem:[%s3 + $0x200] sm:$0xff]
    %v121 = vld [vmem:[%s3 + $0x208] sm:$0xff]
    %v122 = vld [vmem:[%s3 + $0x210] sm:$0xff]
    %v123 = vld [vmem:[%s3 + $0x218] sm:$0xff]
    %v124 = vld [vmem:[%s3 + $0x220] sm:$0xff]
    %v125 = vld [vmem:[%s3 + $0x228] sm:$0xff]
    %v126 = vld [vmem:[%s3 + $0x230] sm:$0xff]
    %v127 = vld [vmem:[%s3 + $0x238] sm:$0xff]
    %v128 = vld [vmem:[%s3 + $0x240] sm:$0xff]
    %v129 = vld [vmem:[%s3 + $0x248] sm:$0xff]
    %v130 = vld [vmem:[%s3 + $0x250] sm:$0xff]
    %v131 = vld [vmem:[%s3 + $0x258] sm:$0xff]
    %v132 = vld [vmem:[%s3 + $0x260] sm:$0xff]
    %v133 = vld [vmem:[%s3 + $0x268] sm:$0xff]
    %v134 = vld [vmem:[%s3 + $0x270] sm:$0xff]
    %v135 = vld [vmem:[%s3 + $0x278] sm:$0xff]
    %v136 = vld [vmem:[%s3 + $0x280] sm:$0xff]
    %v137 = vld [vmem:[%s3 + $0x288] sm:$0xff]
    %v138 = vld [vmem:[%s3 + $0x290] sm:$0xff]
    %v139 = vld [vmem:[%s3 + $0x298] sm:$0xff]
    %v140 = vld [vmem:[%s3 + $0x2a0] sm:$0xff]
    %v141 = vld [vmem:[%s3 + $0x2a8] sm:$0xff]
    %v142 = vld [vmem:[%s3 + $0x2b0] sm:$0xff]
    %v143 = vld [vmem:[%s3 + $0x2b8] sm:$0xff]
    %v144 = vld [vmem:[%s3 + $0x2c0] sm:$0xff]
    %v145 = vld [vmem:[%s3 + $0x2c8] sm:$0xff]
    %v146 = vld [vmem:[%s3 + $0x2d0] sm:$0xff]
    %v147 = vld [vmem:[%s3 + $0x2d8] sm:$0xff]
    %v148 = vld [vmem:[%s3 + $0x2e0] sm:$0xff]
    %v149 = vld [vmem:[%s3 + $0x2e8] sm:$0xff]
    %v150 = vld [vmem:[%s3 + $0x2f0] sm:$0xff]
    %v151 = vld [vmem:[%s3 + $0x2f8] sm:$0xff]
    %v152 = vld [vmem:[%s3 + $0x300] sm:$0xff]
    %v153 = vld [vmem:[%s3 + $0x308] sm:$0xff]
    %v154 = vld [vmem:[%s3 + $0x310] sm:$0xff]
    %v155 = vld [vmem:[%s3 + $0x318] sm:$0xff]
    %v156 = vld [vmem:[%s3 + $0x320] sm:$0xff]
    %v157 = vld [vmem:[%s3 + $0x328] sm:$0xff]
    %v158 = vld [vmem:[%s3 + $0x330] sm:$0xff]
    %v159 = vld [vmem:[%s3 + $0x338] sm:$0xff]
    %v160 = vld [vmem:[%s3 + $0x340] sm:$0xff]
    %v161 = vld [vmem:[%s3 + $0x348] sm:$0xff]
    %v162 = vld [vmem:[%s3 + $0x350] sm:$0xff]
    %v163 = vld [vmem:[%s3 + $0x358] sm:$0xff]
    %v164 = vld [vmem:[%s3 + $0x360] sm:$0xff]
    %v165 = vld [vmem:[%s3 + $0x368] sm:$0xff]
    %v166 = vld [vmem:[%s3 + $0x370] sm:$0xff]
    %v167 = vld [vmem:[%s3 + $0x378] sm:$0xff]
    %v168 = vld [vmem:[%s3 + $0x380] sm:$0xff]
    %v169 = vld [vmem:[%s3 + $0x388] sm:$0xff]
    %v170 = vld [vmem:[%s3 + $0x390] sm:$0xff]
    %v171 = vld [vmem:[%s3 + $0x398] sm:$0xff]
    %v172 = vld [vmem:[%s3 + $0x3a0] sm:$0xff]
    %v173 = vld [vmem:[%s3 + $0x3a8] sm:$0xff]
    %v174 = vld [vmem:[%s3 + $0x3b0] sm:$0xff]
    %v175 = vld [vmem:[%s3 + $0x3b8] sm:$0xff]
    %v176 = vld [vmem:[%s3 + $0x3c0] sm:$0xff]
    %v177 = vld [vmem:[%s3 + $0x3c8] sm:$0xff]
    %v178 = vld [vmem:[%s3 + $0x3d0] sm:$0xff]
    %v179 = vld [vmem:[%s3 + $0x3d8] sm:$0xff]
    %v180 = vld [vmem:[%s3 + $0x3e0] sm:$0xff]
    %v181 = vld [vmem:[%s3 + $0x3e8] sm:$0xff]
    %v182 = vld [vmem:[%s3 + $0x3f0] sm:$0xff]
    %v183 = vld [vmem:[%s3 + $0x3f8] sm:$0xff]
    %v184 = vld [vmem:[%s3 + $0x400] sm:$0xff]
    %v185 = vld [vmem:[%s3 + $0x408] sm:$0xff]
    %v186 = vld [vmem:[%s3 + $0x410] sm:$0xff]
    %v187 = vld [vmem:[%s3 + $0x418] sm:$0xff]
    %v188 = vld [vmem:[%s3 + $0x420] sm:$0xff]
    %v189 = vld [vmem:[%s3 + $0x428] sm:$0xff]
    %v190 = vld [vmem:[%s3 + $0x430] sm:$0xff]
    %v191 = vld [vmem:[%s3 + $0x438] sm:$0xff]
    %v192 = vld [vmem:[%s3 + $0x440] sm:$0xff]
    %v193 = vld [vmem:[%s3 + $0x448] sm:$0xff]
    %v194 = vld [vmem:[%s3 + $0x450] sm:$0xff]
    %v195 = vld [vmem:[%s3 + $0x458] sm:$0xff]
    %v196 = vld [vmem:[%s3 + $0x460] sm:$0xff]
    %v197 = vld [vmem:[%s3 + $0x468] sm:$0xff]
    %v198 = vld [vmem:[%s3 + $0x470] sm:$0xff]
    %v199 = vld [vmem:[%s3 + $0x478] sm:$0xff]
    %v200 = vld [vmem:[%s3 + $0x480] sm:$0xff]
    %v201 = vld [vmem:[%s3 + $0x488] sm:$0xff]
    %v202 = vld [vmem:[%s3 + $0x490] sm:$0xff]
    %v203 = vld [vmem:[%s3 + $0x498] sm:$0xff]
    %v204 = vld [vmem:[%s3 + $0x4a0] sm:$0xff]
    %v205 = vld [vmem:[%s3 + $0x4a8] sm:$0xff]
    %v206 = vld [vmem:[%s3 + $0x4b0] sm:$0xff]
    %v207 = vld [vmem:[%s3 + $0x4b8] sm:$0xff]
    %v208 = vld [vmem:[%s3 + $0x4c0] sm:$0xff]
    %v209 = vld [vmem:[%s3 + $0x4c8] sm:$0xff]
    %v210 = vld [vmem:[%s3 + $0x4d0] sm:$0xff]
    %v211 = vld [vmem:[%s3 + $0x4d8] sm:$0xff]
    %v212 = vld [vmem:[%s3 + $0x4e0] sm:$0xff]
    %v213 = vld [vmem:[%s3 + $0x4e8] sm:$0xff]
    %v214 = vld [vmem:[%s3 + $0x4f0] sm:$0xff]
    %v215 = vld [vmem:[%s3 + $0x4f8] sm:$0xff]
    %v216 = vld [vmem:[%s3 + $0x500] sm:$0xff]
    %v217 = vld [vmem:[%s3 + $0x508] sm:$0xff]
    %v218 = vld [vmem:[%s3 + $0x510] sm:$0xff]
    %v219 = vld [vmem:[%s3 + $0x518] sm:$0xff]
    %v220 = vld [vmem:[%s3 + $0x520] sm:$0xff]
    %v221 = vld [vmem:[%s3 + $0x528] sm:$0xff]
    %v222 = vld [vmem:[%s3 + $0x530] sm:$0xff]
    %v223 = vld [vmem:[%s3 + $0x538] sm:$0xff]
    %v224 = vld [vmem:[%s3 + $0x540] sm:$0xff]
    %v225 = vld [vmem:[%s3 + $0x548] sm:$0xff]
    %v226 = vld [vmem:[%s3 + $0x550] sm:$0xff]
    %v227 = vld [vmem:[%s3 + $0x558] sm:$0xff]
    %v228 = vld [vmem:[%s3 + $0x560] sm:$0xff]
    %v229 = vld [vmem:[%s3 + $0x568] sm:$0xff]
    %v230 = vld [vmem:[%s3 + $0x570] sm:$0xff]
    %v231 = vld [vmem:[%s3 + $0x578] sm:$0xff]
    %v232 = vld [vmem:[%s3 + $0x580] sm:$0xff]
    %v233 = vld [vmem:[%s3 + $0x588] sm:$0xff]
    %v234 = vld [vmem:[%s3 + $0x590] sm:$0xff]
    %v235 = vld [vmem:[%s3 + $0x598] sm:$0xff]
    %v236 = vld [vmem:[%s3 + $0x5a0] sm:$0xff]
    %v237 = vld [vmem:[%s3 + $0x5a8] sm:$0xff]
    %v238 = vld [vmem:[%s3 + $0x5b0] sm:$0xff]
    %v239 = vld [vmem:[%s3 + $0x5b8] sm:$0xff]
    %v240 = vld [vmem:[%s3 + $0x5c0] sm:$0xff]
    %v241 = vld [vmem:[%s3 + $0x5c8] sm:$0xff]
    %v242 = vld [vmem:[%s3 + $0x5d0] sm:$0xff]
    %v243 = vld [vmem:[%s3 + $0x5d8] sm:$0xff]
    %v244 = vld [vmem:[%s3 + $0x5e0] sm:$0xff]
    %v245 = vld [vmem:[%s3 + $0x5e8] sm:$0xff]
    %v246 = vld [vmem:[%s3 + $0x5f0] sm:$0xff]
    %v247 = vld [vmem:[%s3 + $0x5f8] sm:$0xff]
    %v248 = vld [vmem:[%s3 + $0x600] sm:$0xff]
    %v249 = vld [vmem:[%s3 + $0x608] sm:$0xff]
    %v250 = vld [vmem:[%s3 + $0x610] sm:$0xff]
    %v251 = vld [vmem:[%s3 + $0x618] sm:$0xff]
    %v252 = vld [vmem:[%s4] sm:$0xf]
    %v254 = vperm.slane %v252, 0
    %v255 = vperm.slane %v252, 1
    %v256 = vperm.slane %v252, 2
    %v257 = vperm.slane %v252, 3
    %v458 = vunpack.c.l.b16 %v56
    %v459 = vunpack.c.h.b16 %v56
    %v460 = vunpack.c.l.b16 %v57
    %v461 = vunpack.c.h.b16 %v57
    %v462 = vunpack.c.l.b16 %v58
    %v463 = vunpack.c.h.b16 %v58
    %v464 = vunpack.c.l.b16 %v59
    %v465 = vunpack.c.h.b16 %v59
    %v466 = vunpack.c.l.b16 %v60
    %v467 = vunpack.c.h.b16 %v60
    %v468 = vunpack.c.l.b16 %v61
    %v469 = vunpack.c.h.b16 %v61
    %v470 = vunpack.c.l.b16 %v62
    %v471 = vunpack.c.h.b16 %v62
    %v472 = vunpack.c.l.b16 %v63
    %v473 = vunpack.c.h.b16 %v63
    %v474 = vunpack.c.l.b16 %v64
    %v475 = vunpack.c.h.b16 %v64
    %v476 = vunpack.c.l.b16 %v65
    %v477 = vunpack.c.h.b16 %v65
    %v478 = vunpack.c.l.b16 %v66
    %v479 = vunpack.c.h.b16 %v66
    %v480 = vunpack.c.l.b16 %v67
    %v481 = vunpack.c.h.b16 %v67
    %v482 = vunpack.c.l.b16 %v68
    %v483 = vunpack.c.h.b16 %v68
    %v484 = vunpack.c.l.b16 %v69
    %v485 = vunpack.c.h.b16 %v69
    %v486 = vunpack.c.l.b16 %v70
    %v487 = vunpack.c.h.b16 %v70
    %v488 = vunpack.c.l.b16 %v71
    %v489 = vunpack.c.h.b16 %v71
    %v490 = vunpack.c.l.b16 %v72
    %v491 = vunpack.c.h.b16 %v72
    %v492 = vunpack.c.l.b16 %v73
    %v493 = vunpack.c.h.b16 %v73
    %v494 = vunpack.c.l.b16 %v74
    %v495 = vunpack.c.h.b16 %v74
    %v496 = vunpack.c.l.b16 %v75
    %v497 = vunpack.c.h.b16 %v75
    %v498 = vunpack.c.l.b16 %v76
    %v499 = vunpack.c.h.b16 %v76
    %v500 = vunpack.c.l.b16 %v77
    %v501 = vunpack.c.h.b16 %v77
    %v502 = vunpack.c.l.b16 %v78
    %v503 = vunpack.c.h.b16 %v78
    %v504 = vunpack.c.l.b16 %v79
    %v505 = vunpack.c.h.b16 %v79
    %v506 = vunpack.c.l.b16 %v80
    %v507 = vunpack.c.h.b16 %v80
    %v508 = vunpack.c.l.b16 %v81
    %v509 = vunpack.c.h.b16 %v81
    %v510 = vunpack.c.l.b16 %v82
    %v511 = vunpack.c.h.b16 %v82
    %v512 = vunpack.c.l.b16 %v83
    %v513 = vunpack.c.h.b16 %v83
    %v514 = vunpack.c.l.b16 %v84
    %v515 = vunpack.c.h.b16 %v84
    %v516 = vunpack.c.l.b16 %v85
    %v517 = vunpack.c.h.b16 %v85
    %v518 = vunpack.c.l.b16 %v86
    %v519 = vunpack.c.h.b16 %v86
    %v520 = vunpack.c.l.b16 %v87
    %v521 = vunpack.c.h.b16 %v87
    %v522 = vunpack.c.l.b16 %v88
    %v523 = vunpack.c.h.b16 %v88
    %v524 = vunpack.c.l.b16 %v89
    %v525 = vunpack.c.h.b16 %v89
    %v526 = vunpack.c.l.b16 %v90
    %v527 = vunpack.c.h.b16 %v90
    %v528 = vunpack.c.l.b16 %v91
    %v529 = vunpack.c.h.b16 %v91
    %v530 = vunpack.c.l.b16 %v92
    %v531 = vunpack.c.h.b16 %v92
    %v532 = vunpack.c.l.b16 %v93
    %v533 = vunpack.c.h.b16 %v93
    %v534 = vunpack.c.l.b16 %v94
    %v535 = vunpack.c.h.b16 %v94
    %v536 = vunpack.c.l.b16 %v95
    %v537 = vunpack.c.h.b16 %v95
    %v538 = vunpack.c.l.b16 %v96
    %v539 = vunpack.c.h.b16 %v96
    %v540 = vunpack.c.l.b16 %v97
    %v541 = vunpack.c.h.b16 %v97
    %v542 = vunpack.c.l.b16 %v98
    %v543 = vunpack.c.h.b16 %v98
    %v544 = vunpack.c.l.b16 %v99
    %v545 = vunpack.c.h.b16 %v99
    %v546 = vunpack.c.l.b16 %v100
    %v547 = vunpack.c.h.b16 %v100
    %v548 = vunpack.c.l.b16 %v101
    %v549 = vunpack.c.h.b16 %v101
    %v550 = vunpack.c.l.b16 %v102
    %v551 = vunpack.c.h.b16 %v102
    %v552 = vunpack.c.l.b16 %v103
    %v553 = vunpack.c.h.b16 %v103
    %v554 = vunpack.c.l.b16 %v104
    %v555 = vunpack.c.h.b16 %v104
    %v556 = vunpack.c.l.b16 %v105
    %v557 = vunpack.c.h.b16 %v105
    %v558 = vunpack.c.l.b16 %v106
    %v559 = vunpack.c.h.b16 %v106
    %v560 = vunpack.c.l.b16 %v107
    %v561 = vunpack.c.h.b16 %v107
    %v562 = vunpack.c.l.b16 %v108
    %v563 = vunpack.c.h.b16 %v108
    %v564 = vunpack.c.l.b16 %v109
    %v565 = vunpack.c.h.b16 %v109
    %v566 = vunpack.c.l.b16 %v110
    %v567 = vunpack.c.h.b16 %v110
    %v568 = vunpack.c.l.b16 %v111
    %v569 = vunpack.c.h.b16 %v111
    %v570 = vunpack.c.l.b16 %v112
    %v571 = vunpack.c.h.b16 %v112
    %v572 = vunpack.c.l.b16 %v113
    %v573 = vunpack.c.h.b16 %v113
    %v574 = vunpack.c.l.b16 %v114
    %v575 = vunpack.c.h.b16 %v114
    %v576 = vunpack.c.l.b16 %v115
    %v577 = vunpack.c.h.b16 %v115
    %v578 = vunpack.c.l.b16 %v116
    %v579 = vunpack.c.h.b16 %v116
    %v580 = vunpack.c.l.b16 %v117
    %v581 = vunpack.c.h.b16 %v117
    %v582 = vunpack.c.l.b16 %v118
    %v583 = vunpack.c.h.b16 %v118
    %v584 = vunpack.c.l.b16 %v119
    %v585 = vunpack.c.h.b16 %v119
    %v586 = vunpack.c.l.b16 %v120
    %v587 = vunpack.c.h.b16 %v120
    %v588 = vunpack.c.l.b16 %v121
    %v589 = vunpack.c.h.b16 %v121
    %v590 = vunpack.c.l.b16 %v122
    %v591 = vunpack.c.h.b16 %v122
    %v592 = vunpack.c.l.b16 %v123
    %v593 = vunpack.c.h.b16 %v123
    %v594 = vunpack.c.l.b16 %v124
    %v595 = vunpack.c.h.b16 %v124
    %v596 = vunpack.c.l.b16 %v125
    %v597 = vunpack.c.h.b16 %v125
    %v598 = vunpack.c.l.b16 %v126
    %v599 = vunpack.c.h.b16 %v126
    %v600 = vunpack.c.l.b16 %v127
    %v601 = vunpack.c.h.b16 %v127
    %v602 = vunpack.c.l.b16 %v128
    %v603 = vunpack.c.h.b16 %v128
    %v604 = vunpack.c.l.b16 %v129
    %v605 = vunpack.c.h.b16 %v129
    %v606 = vunpack.c.l.b16 %v130
    %v607 = vunpack.c.h.b16 %v130
    %v608 = vunpack.c.l.b16 %v131
    %v609 = vunpack.c.h.b16 %v131
    %v610 = vunpack.c.l.b16 %v132
    %v611 = vunpack.c.h.b16 %v132
    %v612 = vunpack.c.l.b16 %v133
    %v613 = vunpack.c.h.b16 %v133
    %v614 = vunpack.c.l.b16 %v134
    %v615 = vunpack.c.h.b16 %v134
    %v616 = vunpack.c.l.b16 %v135
    %v617 = vunpack.c.h.b16 %v135
    %v618 = vunpack.c.l.b16 %v136
    %v619 = vunpack.c.h.b16 %v136
    %v620 = vunpack.c.l.b16 %v137
    %v621 = vunpack.c.h.b16 %v137
    %v622 = vunpack.c.l.b16 %v138
    %v623 = vunpack.c.h.b16 %v138
    %v624 = vunpack.c.l.b16 %v139
    %v625 = vunpack.c.h.b16 %v139
    %v626 = vunpack.c.l.b16 %v140
    %v627 = vunpack.c.h.b16 %v140
    %v628 = vunpack.c.l.b16 %v141
    %v629 = vunpack.c.h.b16 %v141
    %v630 = vunpack.c.l.b16 %v142
    %v631 = vunpack.c.h.b16 %v142
    %v632 = vunpack.c.l.b16 %v143
    %v633 = vunpack.c.h.b16 %v143
    %v634 = vunpack.c.l.b16 %v144
    %v635 = vunpack.c.h.b16 %v144
    %v636 = vunpack.c.l.b16 %v145
    %v637 = vunpack.c.h.b16 %v145
    %v638 = vunpack.c.l.b16 %v146
    %v639 = vunpack.c.h.b16 %v146
    %v640 = vunpack.c.l.b16 %v147
    %v641 = vunpack.c.h.b16 %v147
    %v642 = vunpack.c.l.b16 %v148
    %v643 = vunpack.c.h.b16 %v148
    %v644 = vunpack.c.l.b16 %v149
    %v645 = vunpack.c.h.b16 %v149
    %v646 = vunpack.c.l.b16 %v150
    %v647 = vunpack.c.h.b16 %v150
    %v648 = vunpack.c.l.b16 %v151
    %v649 = vunpack.c.h.b16 %v151
    %v650 = vunpack.c.l.b16 %v152
    %v651 = vunpack.c.h.b16 %v152
    %v652 = vunpack.c.l.b16 %v153
    %v653 = vunpack.c.h.b16 %v153
    %v654 = vunpack.c.l.b16 %v154
    %v655 = vunpack.c.h.b16 %v154
    %v656 = vunpack.c.l.b16 %v155
    %v657 = vunpack.c.h.b16 %v155
    %v658 = vunpack.c.l.b16 %v156
    %v659 = vunpack.c.h.b16 %v156
    %v660 = vunpack.c.l.b16 %v157
    %v661 = vunpack.c.h.b16 %v157
    %v662 = vunpack.c.l.b16 %v158
    %v663 = vunpack.c.h.b16 %v158
    %v664 = vunpack.c.l.b16 %v159
    %v665 = vunpack.c.h.b16 %v159
    %v666 = vunpack.c.l.b16 %v160
    %v667 = vunpack.c.h.b16 %v160
    %v668 = vunpack.c.l.b16 %v161
    %v669 = vunpack.c.h.b16 %v161
    %v670 = vunpack.c.l.b16 %v162
    %v671 = vunpack.c.h.b16 %v162
    %v672 = vunpack.c.l.b16 %v163
    %v673 = vunpack.c.h.b16 %v163
    %v674 = vunpack.c.l.b16 %v164
    %v675 = vunpack.c.h.b16 %v164
    %v676 = vunpack.c.l.b16 %v165
    %v677 = vunpack.c.h.b16 %v165
    %v678 = vunpack.c.l.b16 %v166
    %v679 = vunpack.c.h.b16 %v166
    %v680 = vunpack.c.l.b16 %v167
    %v681 = vunpack.c.h.b16 %v167
    %v682 = vunpack.c.l.b16 %v168
    %v683 = vunpack.c.h.b16 %v168
    %v684 = vunpack.c.l.b16 %v169
    %v685 = vunpack.c.h.b16 %v169
    %v686 = vunpack.c.l.b16 %v170
    %v687 = vunpack.c.h.b16 %v170
    %v688 = vunpack.c.l.b16 %v171
    %v689 = vunpack.c.h.b16 %v171
    %v690 = vunpack.c.l.b16 %v172
    %v691 = vunpack.c.h.b16 %v172
    %v692 = vunpack.c.l.b16 %v173
    %v693 = vunpack.c.h.b16 %v173
    %v694 = vunpack.c.l.b16 %v174
    %v695 = vunpack.c.h.b16 %v174
    %v696 = vunpack.c.l.b16 %v175
    %v697 = vunpack.c.h.b16 %v175
    %v698 = vunpack.c.l.b16 %v176
    %v699 = vunpack.c.h.b16 %v176
    %v700 = vunpack.c.l.b16 %v177
    %v701 = vunpack.c.h.b16 %v177
    %v702 = vunpack.c.l.b16 %v178
    %v703 = vunpack.c.h.b16 %v178
    %v704 = vunpack.c.l.b16 %v179
    %v705 = vunpack.c.h.b16 %v179
    %v706 = vunpack.c.l.b16 %v180
    %v707 = vunpack.c.h.b16 %v180
    %v708 = vunpack.c.l.b16 %v181
    %v709 = vunpack.c.h.b16 %v181
    %v710 = vunpack.c.l.b16 %v182
    %v711 = vunpack.c.h.b16 %v182
    %v712 = vunpack.c.l.b16 %v183
    %v713 = vunpack.c.h.b16 %v183
    %v714 = vunpack.c.l.b16 %v184
    %v715 = vunpack.c.h.b16 %v184
    %v716 = vunpack.c.l.b16 %v185
    %v717 = vunpack.c.h.b16 %v185
    %v718 = vunpack.c.l.b16 %v186
    %v719 = vunpack.c.h.b16 %v186
    %v720 = vunpack.c.l.b16 %v187
    %v721 = vunpack.c.h.b16 %v187
    %v722 = vunpack.c.l.b16 %v188
    %v723 = vunpack.c.h.b16 %v188
    %v724 = vunpack.c.l.b16 %v189
    %v725 = vunpack.c.h.b16 %v189
    %v726 = vunpack.c.l.b16 %v190
    %v727 = vunpack.c.h.b16 %v190
    %v728 = vunpack.c.l.b16 %v191
    %v729 = vunpack.c.h.b16 %v191
    %v730 = vunpack.c.l.b16 %v192
    %v731 = vunpack.c.h.b16 %v192
    %v732 = vunpack.c.l.b16 %v193
    %v733 = vunpack.c.h.b16 %v193
    %v734 = vunpack.c.l.b16 %v194
    %v735 = vunpack.c.h.b16 %v194
    %v736 = vunpack.c.l.b16 %v195
    %v737 = vunpack.c.h.b16 %v195
    %v738 = vunpack.c.l.b16 %v196
    %v739 = vunpack.c.h.b16 %v196
    %v740 = vunpack.c.l.b16 %v197
    %v741 = vunpack.c.h.b16 %v197
    %v742 = vunpack.c.l.b16 %v198
    %v743 = vunpack.c.h.b16 %v198
    %v744 = vunpack.c.l.b16 %v199
    %v745 = vunpack.c.h.b16 %v199
    %v746 = vunpack.c.l.b16 %v200
    %v747 = vunpack.c.h.b16 %v200
    %v748 = vunpack.c.l.b16 %v201
    %v749 = vunpack.c.h.b16 %v201
    %v750 = vunpack.c.l.b16 %v202
    %v751 = vunpack.c.h.b16 %v202
    %v752 = vunpack.c.l.b16 %v203
    %v753 = vunpack.c.h.b16 %v203
    %v754 = vunpack.c.l.b16 %v204
    %v755 = vunpack.c.h.b16 %v204
    %v756 = vunpack.c.l.b16 %v205
    %v757 = vunpack.c.h.b16 %v205
    %v758 = vunpack.c.l.b16 %v206
    %v759 = vunpack.c.h.b16 %v206
    %v760 = vunpack.c.l.b16 %v207
    %v761 = vunpack.c.h.b16 %v207
    %v762 = vunpack.c.l.b16 %v208
    %v763 = vunpack.c.h.b16 %v208
    %v764 = vunpack.c.l.b16 %v209
    %v765 = vunpack.c.h.b16 %v209
    %v766 = vunpack.c.l.b16 %v210
    %v767 = vunpack.c.h.b16 %v210
    %v768 = vunpack.c.l.b16 %v211
    %v769 = vunpack.c.h.b16 %v211
    %v770 = vunpack.c.l.b16 %v212
    %v771 = vunpack.c.h.b16 %v212
    %v772 = vunpack.c.l.b16 %v213
    %v773 = vunpack.c.h.b16 %v213
    %v774 = vunpack.c.l.b16 %v214
    %v775 = vunpack.c.h.b16 %v214
    %v776 = vunpack.c.l.b16 %v215
    %v777 = vunpack.c.h.b16 %v215
    %v778 = vunpack.c.l.b16 %v216
    %v779 = vunpack.c.h.b16 %v216
    %v780 = vunpack.c.l.b16 %v217
    %v781 = vunpack.c.h.b16 %v217
    %v782 = vunpack.c.l.b16 %v218
    %v783 = vunpack.c.h.b16 %v218
    %v784 = vunpack.c.l.b16 %v219
    %v785 = vunpack.c.h.b16 %v219
    %v786 = vunpack.c.l.b16 %v220
    %v787 = vunpack.c.h.b16 %v220
    %v788 = vunpack.c.l.b16 %v221
    %v789 = vunpack.c.h.b16 %v221
    %v790 = vunpack.c.l.b16 %v222
    %v791 = vunpack.c.h.b16 %v222
    %v792 = vunpack.c.l.b16 %v223
    %v793 = vunpack.c.h.b16 %v223
    %v794 = vunpack.c.l.b16 %v224
    %v795 = vunpack.c.h.b16 %v224
    %v796 = vunpack.c.l.b16 %v225
    %v797 = vunpack.c.h.b16 %v225
    %v798 = vunpack.c.l.b16 %v226
    %v799 = vunpack.c.h.b16 %v226
    %v800 = vunpack.c.l.b16 %v227
    %v801 = vunpack.c.h.b16 %v227
    %v802 = vunpack.c.l.b16 %v228
    %v803 = vunpack.c.h.b16 %v228
    %v804 = vunpack.c.l.b16 %v229
    %v805 = vunpack.c.h.b16 %v229
    %v806 = vunpack.c.l.b16 %v230
    %v807 = vunpack.c.h.b16 %v230
    %v808 = vunpack.c.l.b16 %v231
    %v809 = vunpack.c.h.b16 %v231
    %v810 = vunpack.c.l.b16 %v232
    %v811 = vunpack.c.h.b16 %v232
    %v812 = vunpack.c.l.b16 %v233
    %v813 = vunpack.c.h.b16 %v233
    %v814 = vunpack.c.l.b16 %v234
    %v815 = vunpack.c.h.b16 %v234
    %v816 = vunpack.c.l.b16 %v235
    %v817 = vunpack.c.h.b16 %v235
    %v818 = vunpack.c.l.b16 %v236
    %v819 = vunpack.c.h.b16 %v236
    %v820 = vunpack.c.l.b16 %v237
    %v821 = vunpack.c.h.b16 %v237
    %v822 = vunpack.c.l.b16 %v238
    %v823 = vunpack.c.h.b16 %v238
    %v824 = vunpack.c.l.b16 %v239
    %v825 = vunpack.c.h.b16 %v239
    %v826 = vunpack.c.l.b16 %v240
    %v827 = vunpack.c.h.b16 %v240
    %v828 = vunpack.c.l.b16 %v241
    %v829 = vunpack.c.h.b16 %v241
    %v830 = vunpack.c.l.b16 %v242
    %v831 = vunpack.c.h.b16 %v242
    %v832 = vunpack.c.l.b16 %v243
    %v833 = vunpack.c.h.b16 %v243
    %v834 = vunpack.c.l.b16 %v244
    %v835 = vunpack.c.h.b16 %v244
    %v836 = vunpack.c.l.b16 %v245
    %v837 = vunpack.c.h.b16 %v245
    %v838 = vunpack.c.l.b16 %v246
    %v839 = vunpack.c.h.b16 %v246
    %v840 = vunpack.c.l.b16 %v247
    %v841 = vunpack.c.h.b16 %v247
    %v842 = vunpack.c.l.b16 %v248
    %v843 = vunpack.c.h.b16 %v248
    %v844 = vunpack.c.l.b16 %v249
    %v845 = vunpack.c.h.b16 %v249
    %v846 = vunpack.c.l.b16 %v250
    %v847 = vunpack.c.h.b16 %v250
    %v848 = vunpack.c.l.b16 %v251
    %v849 = vunpack.c.h.b16 %v251
    %v850 = vpack.c.b16 %v462, %v458
    %v851 = vpack.c.b16 %v463, %v459
    %v852 = vpack.c.b16 %v464, %v460
    %v853 = vpack.c.b16 %v465, %v461
    %v854 = vpack.c.b16 %v470, %v466
    %v855 = vpack.c.b16 %v471, %v467
    %v856 = vpack.c.b16 %v472, %v468
    %v857 = vpack.c.b16 %v473, %v469
    %v858 = vpack.c.b16 %v478, %v474
    %v859 = vpack.c.b16 %v479, %v475
    %v860 = vpack.c.b16 %v480, %v476
    %v861 = vpack.c.b16 %v481, %v477
    %v862 = vpack.c.b16 %v486, %v482
    %v863 = vpack.c.b16 %v487, %v483
    %v864 = vpack.c.b16 %v488, %v484
    %v865 = vpack.c.b16 %v489, %v485
    %v866 = vpack.c.b16 %v494, %v490
    %v867 = vpack.c.b16 %v495, %v491
    %v868 = vpack.c.b16 %v496, %v492
    %v869 = vpack.c.b16 %v497, %v493
    %v870 = vpack.c.b16 %v502, %v498
    %v871 = vpack.c.b16 %v503, %v499
    %v872 = vpack.c.b16 %v504, %v500
    %v873 = vpack.c.b16 %v505, %v501
    %v874 = vpack.c.b16 %v510, %v506
    %v875 = vpack.c.b16 %v511, %v507
    %v876 = vpack.c.b16 %v512, %v508
    %v877 = vpack.c.b16 %v513, %v509
    %v878 = vpack.c.b16 %v518, %v514
    %v879 = vpack.c.b16 %v519, %v515
    %v880 = vpack.c.b16 %v520, %v516
    %v881 = vpack.c.b16 %v521, %v517
    %v882 = vpack.c.b16 %v526, %v522
    %v883 = vpack.c.b16 %v527, %v523
    %v884 = vpack.c.b16 %v528, %v524
    %v885 = vpack.c.b16 %v529, %v525
    %v886 = vpack.c.b16 %v534, %v530
    %v887 = vpack.c.b16 %v535, %v531
    %v888 = vpack.c.b16 %v536, %v532
    %v889 = vpack.c.b16 %v537, %v533
    %v890 = vpack.c.b16 %v542, %v538
    %v891 = vpack.c.b16 %v543, %v539
    %v892 = vpack.c.b16 %v544, %v540
    %v893 = vpack.c.b16 %v545, %v541
    %v894 = vpack.c.b16 %v550, %v546
    %v895 = vpack.c.b16 %v551, %v547
    %v896 = vpack.c.b16 %v552, %v548
    %v897 = vpack.c.b16 %v553, %v549
    %v898 = vpack.c.b16 %v558, %v554
    %v899 = vpack.c.b16 %v559, %v555
    %v900 = vpack.c.b16 %v560, %v556
    %v901 = vpack.c.b16 %v561, %v557
    %v902 = vpack.c.b16 %v566, %v562
    %v903 = vpack.c.b16 %v567, %v563
    %v904 = vpack.c.b16 %v568, %v564
    %v905 = vpack.c.b16 %v569, %v565
    %v906 = vpack.c.b16 %v574, %v570
    %v907 = vpack.c.b16 %v575, %v571
    %v908 = vpack.c.b16 %v576, %v572
    %v909 = vpack.c.b16 %v577, %v573
    %v910 = vpack.c.b16 %v582, %v578
    %v911 = vpack.c.b16 %v583, %v579
    %v912 = vpack.c.b16 %v584, %v580
    %v913 = vpack.c.b16 %v585, %v581
    %v914 = vpack.c.b16 %v590, %v586
    %v915 = vpack.c.b16 %v591, %v587
    %v916 = vpack.c.b16 %v592, %v588
    %v917 = vpack.c.b16 %v593, %v589
    %v918 = vpack.c.b16 %v598, %v594
    %v919 = vpack.c.b16 %v599, %v595
    %v920 = vpack.c.b16 %v600, %v596
    %v921 = vpack.c.b16 %v601, %v597
    %v922 = vpack.c.b16 %v606, %v602
    %v923 = vpack.c.b16 %v607, %v603
    %v924 = vpack.c.b16 %v608, %v604
    %v925 = vpack.c.b16 %v609, %v605
    %v926 = vpack.c.b16 %v614, %v610
    %v927 = vpack.c.b16 %v615, %v611
    %v928 = vpack.c.b16 %v616, %v612
    %v929 = vpack.c.b16 %v617, %v613
    %v930 = vpack.c.b16 %v622, %v618
    %v931 = vpack.c.b16 %v623, %v619
    %v932 = vpack.c.b16 %v624, %v620
    %v933 = vpack.c.b16 %v625, %v621
    %v934 = vpack.c.b16 %v630, %v626
    %v935 = vpack.c.b16 %v631, %v627
    %v936 = vpack.c.b16 %v632, %v628
    %v937 = vpack.c.b16 %v633, %v629
    %v938 = vpack.c.b16 %v638, %v634
    %v939 = vpack.c.b16 %v639, %v635
    %v940 = vpack.c.b16 %v640, %v636
    %v941 = vpack.c.b16 %v641, %v637
    %v942 = vpack.c.b16 %v646, %v642
    %v943 = vpack.c.b16 %v647, %v643
    %v944 = vpack.c.b16 %v648, %v644
    %v945 = vpack.c.b16 %v649, %v645
    %v946 = vpack.c.b16 %v654, %v650
    %v947 = vpack.c.b16 %v655, %v651
    %v948 = vpack.c.b16 %v656, %v652
    %v949 = vpack.c.b16 %v657, %v653
    %v950 = vpack.c.b16 %v662, %v658
    %v951 = vpack.c.b16 %v663, %v659
    %v952 = vpack.c.b16 %v664, %v660
    %v953 = vpack.c.b16 %v665, %v661
    %v954 = vpack.c.b16 %v670, %v666
    %v955 = vpack.c.b16 %v671, %v667
    %v956 = vpack.c.b16 %v672, %v668
    %v957 = vpack.c.b16 %v673, %v669
    %v958 = vpack.c.b16 %v678, %v674
    %v959 = vpack.c.b16 %v679, %v675
    %v960 = vpack.c.b16 %v680, %v676
    %v961 = vpack.c.b16 %v681, %v677
    %v962 = vpack.c.b16 %v686, %v682
    %v963 = vpack.c.b16 %v687, %v683
    %v964 = vpack.c.b16 %v688, %v684
    %v965 = vpack.c.b16 %v689, %v685
    %v966 = vpack.c.b16 %v694, %v690
    %v967 = vpack.c.b16 %v695, %v691
    %v968 = vpack.c.b16 %v696, %v692
    %v969 = vpack.c.b16 %v697, %v693
    %v970 = vpack.c.b16 %v702, %v698
    %v971 = vpack.c.b16 %v703, %v699
    %v972 = vpack.c.b16 %v704, %v700
    %v973 = vpack.c.b16 %v705, %v701
    %v974 = vpack.c.b16 %v710, %v706
    %v975 = vpack.c.b16 %v711, %v707
    %v976 = vpack.c.b16 %v712, %v708
    %v977 = vpack.c.b16 %v713, %v709
    %v978 = vpack.c.b16 %v718, %v714
    %v979 = vpack.c.b16 %v719, %v715
    %v980 = vpack.c.b16 %v720, %v716
    %v981 = vpack.c.b16 %v721, %v717
    %v982 = vpack.c.b16 %v726, %v722
    %v983 = vpack.c.b16 %v727, %v723
    %v984 = vpack.c.b16 %v728, %v724
    %v985 = vpack.c.b16 %v729, %v725
    %v986 = vpack.c.b16 %v734, %v730
    %v987 = vpack.c.b16 %v735, %v731
    %v988 = vpack.c.b16 %v736, %v732
    %v989 = vpack.c.b16 %v737, %v733
    %v990 = vpack.c.b16 %v742, %v738
    %v991 = vpack.c.b16 %v743, %v739
    %v992 = vpack.c.b16 %v744, %v740
    %v993 = vpack.c.b16 %v745, %v741
    %v994 = vpack.c.b16 %v750, %v746
    %v995 = vpack.c.b16 %v751, %v747
    %v996 = vpack.c.b16 %v752, %v748
    %v997 = vpack.c.b16 %v753, %v749
    %v998 = vpack.c.b16 %v758, %v754
    %v999 = vpack.c.b16 %v759, %v755
    %v1000 = vpack.c.b16 %v760, %v756
    %v1001 = vpack.c.b16 %v761, %v757
    %v1002 = vpack.c.b16 %v766, %v762
    %v1003 = vpack.c.b16 %v767, %v763
    %v1004 = vpack.c.b16 %v768, %v764
    %v1005 = vpack.c.b16 %v769, %v765
    %v1006 = vpack.c.b16 %v774, %v770
    %v1007 = vpack.c.b16 %v775, %v771
    %v1008 = vpack.c.b16 %v776, %v772
    %v1009 = vpack.c.b16 %v777, %v773
    %v1010 = vpack.c.b16 %v782, %v778
    %v1011 = vpack.c.b16 %v783, %v779
    %v1012 = vpack.c.b16 %v784, %v780
    %v1013 = vpack.c.b16 %v785, %v781
    %v1014 = vpack.c.b16 %v790, %v786
    %v1015 = vpack.c.b16 %v791, %v787
    %v1016 = vpack.c.b16 %v792, %v788
    %v1017 = vpack.c.b16 %v793, %v789
    %v1018 = vpack.c.b16 %v798, %v794
    %v1019 = vpack.c.b16 %v799, %v795
    %v1020 = vpack.c.b16 %v800, %v796
    %v1021 = vpack.c.b16 %v801, %v797
    %v1022 = vpack.c.b16 %v806, %v802
    %v1023 = vpack.c.b16 %v807, %v803
    %v1024 = vpack.c.b16 %v808, %v804
    %v1025 = vpack.c.b16 %v809, %v805
    %v1026 = vpack.c.b16 %v814, %v810
    %v1027 = vpack.c.b16 %v815, %v811
    %v1028 = vpack.c.b16 %v816, %v812
    %v1029 = vpack.c.b16 %v817, %v813
    %v1030 = vpack.c.b16 %v822, %v818
    %v1031 = vpack.c.b16 %v823, %v819
    %v1032 = vpack.c.b16 %v824, %v820
    %v1033 = vpack.c.b16 %v825, %v821
    %v1034 = vpack.c.b16 %v830, %v826
    %v1035 = vpack.c.b16 %v831, %v827
    %v1036 = vpack.c.b16 %v832, %v828
    %v1037 = vpack.c.b16 %v833, %v829
    %v1038 = vpack.c.b16 %v838, %v834
    %v1039 = vpack.c.b16 %v839, %v835
    %v1040 = vpack.c.b16 %v840, %v836
    %v1041 = vpack.c.b16 %v841, %v837
    %v1042 = vpack.c.b16 %v846, %v842
    %v1043 = vpack.c.b16 %v847, %v843
    %v1044 = vpack.c.b16 %v848, %v844
    %v1045 = vpack.c.b16 %v849, %v845
    %vm1242 = vcmask 130048
    %v1244 = vsel %vm1242, %v55, 0
    %1246 = vmatpush.bf16.msra.mxu0 %v878
    %1247 = vmatpush.bf16.msra.mxu0 %v874
    %1248 = vmatpush.bf16.msra.mxu0 %v870
    %1249 = vmatpush.bf16.msra.mxu0 %v866
    %1250 = vmatpush.bf16.msra.mxu0 %v862
    %1251 = vmatpush.bf16.msra.mxu0 %v858
    %1252 = vmatpush.bf16.msra.mxu0 %v854
    %1253 = vmatpush.bf16.msra.mxu0 %v850
    %1254 = vmatmul.bf16.gmra.mxu0 %v49
    %v1255 = vpop.f32.mrf.mxu0
    %v1256 = vadd.f32 %v254, %v1255
    %v1257 = vpop.f32.mrf.mxu0
    %1258 = vdwg.mxu0
    %1259 = vmatpush.bf16.msra.mxu0 %v910
    %1260 = vmatpush.bf16.msra.mxu0 %v906
    %1261 = vmatpush.bf16.msra.mxu0 %v902
    %1262 = vmatpush.bf16.msra.mxu0 %v898
    %1263 = vmatpush.bf16.msra.mxu0 %v894
    %1264 = vmatpush.bf16.msra.mxu0 %v890
    %1265 = vmatpush.bf16.msra.mxu0 %v886
    %1266 = vmatpush.bf16.msra.mxu0 %v882
    %1267 = vmatmul.bf16.gmra.mxu0 %v50
    %v1268 = vpop.f32.mrf.mxu0
    %v1269 = vadd.f32 %v1256, %v1268
    %v1270 = vpop.f32.mrf.mxu0
    %1271 = vdwg.mxu0
    %1272 = vmatpush.bf16.msra.mxu0 %v942
    %1273 = vmatpush.bf16.msra.mxu0 %v938
    %1274 = vmatpush.bf16.msra.mxu0 %v934
    %1275 = vmatpush.bf16.msra.mxu0 %v930
    %1276 = vmatpush.bf16.msra.mxu0 %v926
    %1277 = vmatpush.bf16.msra.mxu0 %v922
    %1278 = vmatpush.bf16.msra.mxu0 %v918
    %1279 = vmatpush.bf16.msra.mxu0 %v914
    %1280 = vmatmul.bf16.gmra.mxu0 %v51
    %v1281 = vpop.f32.mrf.mxu0
    %v1282 = vadd.f32 %v1269, %v1281
    %v1283 = vpop.f32.mrf.mxu0
    %1284 = vdwg.mxu0
    %1285 = vmatpush.bf16.msra.mxu0 %v974
    %1286 = vmatpush.bf16.msra.mxu0 %v970
    %1287 = vmatpush.bf16.msra.mxu0 %v966
    %1288 = vmatpush.bf16.msra.mxu0 %v962
    %1289 = vmatpush.bf16.msra.mxu0 %v958
    %1290 = vmatpush.bf16.msra.mxu0 %v954
    %1291 = vmatpush.bf16.msra.mxu0 %v950
    %1292 = vmatpush.bf16.msra.mxu0 %v946
    %1293 = vmatmul.bf16.gmra.mxu0 %v52
    %v1294 = vpop.f32.mrf.mxu0
    %v1295 = vadd.f32 %v1282, %v1294
    %v1296 = vpop.f32.mrf.mxu0
    %1297 = vdwg.mxu0
    %1298 = vmatpush.bf16.msra.mxu0 %v1006
    %1299 = vmatpush.bf16.msra.mxu0 %v1002
    %1300 = vmatpush.bf16.msra.mxu0 %v998
    %1301 = vmatpush.bf16.msra.mxu0 %v994
    %1302 = vmatpush.bf16.msra.mxu0 %v990
    %1303 = vmatpush.bf16.msra.mxu0 %v986
    %1304 = vmatpush.bf16.msra.mxu0 %v982
    %1305 = vmatpush.bf16.msra.mxu0 %v978
    %1306 = vmatmul.bf16.gmra.mxu0 %v53
    %v1307 = vpop.f32.mrf.mxu0
    %v1308 = vadd.f32 %v1295, %v1307
    %v1309 = vpop.f32.mrf.mxu0
    %1310 = vdwg.mxu0
    %1311 = vmatpush.bf16.msra.mxu0 %v1038
    %1312 = vmatpush.bf16.msra.mxu0 %v1034
    %1313 = vmatpush.bf16.msra.mxu0 %v1030
    %1314 = vmatpush.bf16.msra.mxu0 %v1026
    %1315 = vmatpush.bf16.msra.mxu0 %v1022
    %1316 = vmatpush.bf16.msra.mxu0 %v1018
    %1317 = vmatpush.bf16.msra.mxu0 %v1014
    %1318 = vmatpush.bf16.msra.mxu0 %v1010
    %1319 = vmatmul.bf16.gmra.mxu0 %v54
    %v1320 = vpop.f32.mrf.mxu0
    %v1321 = vadd.f32 %v1308, %v1320
    %v1322 = vpop.f32.mrf.mxu0
    %1323 = vdwg.mxu0
    %1324 = vmatpush.bf16.msra.mxu0 0
    %1325 = vmatpush.bf16.msra.mxu0 0
    %1326 = vmatpush.bf16.msra.mxu0 0
    %1327 = vmatpush.bf16.msra.mxu0 0
    %1328 = vmatpush.bf16.msra.mxu0 0
    %1329 = vmatpush.bf16.msra.mxu0 0
    %1330 = vmatpush.bf16.msra.mxu0 0
    %1331 = vmatpush.bf16.msra.mxu0 %v1042
    %1332 = vmatmul.bf16.gmra.mxu0 %v1244
    %v1333 = vpop.f32.mrf.mxu0
    %v1334 = vadd.f32 %v1321, %v1333
    %v1335 = vpop.f32.mrf.mxu0
    %1336 = vdwg.mxu0
    %1337 = vmatpush.bf16.msra.mxu0 %v879
    %1338 = vmatpush.bf16.msra.mxu0 %v875
    %1339 = vmatpush.bf16.msra.mxu0 %v871
    %1340 = vmatpush.bf16.msra.mxu0 %v867
    %1341 = vmatpush.bf16.msra.mxu0 %v863
    %1342 = vmatpush.bf16.msra.mxu0 %v859
    %1343 = vmatpush.bf16.msra.mxu0 %v855
    %1344 = vmatpush.bf16.msra.mxu0 %v851
    %1345 = vmatmul.bf16.gmra.mxu0 %v49
    %v1346 = vpop.f32.mrf.mxu0
    %v1347 = vadd.f32 %v255, %v1346
    %v1348 = vpop.f32.mrf.mxu0
    %1349 = vdwg.mxu0
    %1350 = vmatpush.bf16.msra.mxu0 %v911
    %1351 = vmatpush.bf16.msra.mxu0 %v907
    %1352 = vmatpush.bf16.msra.mxu0 %v903
    %1353 = vmatpush.bf16.msra.mxu0 %v899
    %1354 = vmatpush.bf16.msra.mxu0 %v895
    %1355 = vmatpush.bf16.msra.mxu0 %v891
    %1356 = vmatpush.bf16.msra.mxu0 %v887
    %1357 = vmatpush.bf16.msra.mxu0 %v883
    %1358 = vmatmul.bf16.gmra.mxu0 %v50
    %v1359 = vpop.f32.mrf.mxu0
    %v1360 = vadd.f32 %v1347, %v1359
    %v1361 = vpop.f32.mrf.mxu0
    %1362 = vdwg.mxu0
    %1363 = vmatpush.bf16.msra.mxu0 %v943
    %1364 = vmatpush.bf16.msra.mxu0 %v939
    %1365 = vmatpush.bf16.msra.mxu0 %v935
    %1366 = vmatpush.bf16.msra.mxu0 %v931
    %1367 = vmatpush.bf16.msra.mxu0 %v927
    %1368 = vmatpush.bf16.msra.mxu0 %v923
    %1369 = vmatpush.bf16.msra.mxu0 %v919
    %1370 = vmatpush.bf16.msra.mxu0 %v915
    %1371 = vmatmul.bf16.gmra.mxu0 %v51
    %v1372 = vpop.f32.mrf.mxu0
    %v1373 = vadd.f32 %v1360, %v1372
    %v1374 = vpop.f32.mrf.mxu0
    %1375 = vdwg.mxu0
    %1376 = vmatpush.bf16.msra.mxu0 %v975
    %1377 = vmatpush.bf16.msra.mxu0 %v971
    %1378 = vmatpush.bf16.msra.mxu0 %v967
    %1379 = vmatpush.bf16.msra.mxu0 %v963
    %1380 = vmatpush.bf16.msra.mxu0 %v959
    %1381 = vmatpush.bf16.msra.mxu0 %v955
    %1382 = vmatpush.bf16.msra.mxu0 %v951
    %1383 = vmatpush.bf16.msra.mxu0 %v947
    %1384 = vmatmul.bf16.gmra.mxu0 %v52
    %v1385 = vpop.f32.mrf.mxu0
    %v1386 = vadd.f32 %v1373, %v1385
    %v1387 = vpop.f32.mrf.mxu0
    %1388 = vdwg.mxu0
    %1389 = vmatpush.bf16.msra.mxu0 %v1007
    %1390 = vmatpush.bf16.msra.mxu0 %v1003
    %1391 = vmatpush.bf16.msra.mxu0 %v999
    %1392 = vmatpush.bf16.msra.mxu0 %v995
    %1393 = vmatpush.bf16.msra.mxu0 %v991
    %1394 = vmatpush.bf16.msra.mxu0 %v987
    %1395 = vmatpush.bf16.msra.mxu0 %v983
    %1396 = vmatpush.bf16.msra.mxu0 %v979
    %1397 = vmatmul.bf16.gmra.mxu0 %v53
    %v1398 = vpop.f32.mrf.mxu0
    %v1399 = vadd.f32 %v1386, %v1398
    %v1400 = vpop.f32.mrf.mxu0
    %1401 = vdwg.mxu0
    %1402 = vmatpush.bf16.msra.mxu0 %v1039
    %1403 = vmatpush.bf16.msra.mxu0 %v1035
    %1404 = vmatpush.bf16.msra.mxu0 %v1031
    %1405 = vmatpush.bf16.msra.mxu0 %v1027
    %1406 = vmatpush.bf16.msra.mxu0 %v1023
    %1407 = vmatpush.bf16.msra.mxu0 %v1019
    %1408 = vmatpush.bf16.msra.mxu0 %v1015
    %1409 = vmatpush.bf16.msra.mxu0 %v1011
    %1410 = vmatmul.bf16.gmra.mxu0 %v54
    %v1411 = vpop.f32.mrf.mxu0
    %v1412 = vadd.f32 %v1399, %v1411
    %v1413 = vpop.f32.mrf.mxu0
    %1414 = vdwg.mxu0
    %1415 = vmatpush.bf16.msra.mxu0 0
    %1416 = vmatpush.bf16.msra.mxu0 0
    %1417 = vmatpush.bf16.msra.mxu0 0
    %1418 = vmatpush.bf16.msra.mxu0 0
    %1419 = vmatpush.bf16.msra.mxu0 0
    %1420 = vmatpush.bf16.msra.mxu0 0
    %1421 = vmatpush.bf16.msra.mxu0 0
    %1422 = vmatpush.bf16.msra.mxu0 %v1043
    %1423 = vmatmul.bf16.gmra.mxu0 %v1244
    %v1424 = vpop.f32.mrf.mxu0
    %v1425 = vadd.f32 %v1412, %v1424
    %v1426 = vpop.f32.mrf.mxu0
    %1427 = vdwg.mxu0
    %1428 = vmatpush.bf16.msra.mxu0 %v880
    %1429 = vmatpush.bf16.msra.mxu0 %v876
    %1430 = vmatpush.bf16.msra.mxu0 %v872
    %1431 = vmatpush.bf16.msra.mxu0 %v868
    %1432 = vmatpush.bf16.msra.mxu0 %v864
    %1433 = vmatpush.bf16.msra.mxu0 %v860
    %1434 = vmatpush.bf16.msra.mxu0 %v856
    %1435 = vmatpush.bf16.msra.mxu0 %v852
    %1436 = vmatmul.bf16.gmra.mxu0 %v49
    %v1437 = vpop.f32.mrf.mxu0
    %v1438 = vadd.f32 %v256, %v1437
    %v1439 = vpop.f32.mrf.mxu0
    %1440 = vdwg.mxu0
    %1441 = vmatpush.bf16.msra.mxu0 %v912
    %1442 = vmatpush.bf16.msra.mxu0 %v908
    %1443 = vmatpush.bf16.msra.mxu0 %v904
    %1444 = vmatpush.bf16.msra.mxu0 %v900
    %1445 = vmatpush.bf16.msra.mxu0 %v896
    %1446 = vmatpush.bf16.msra.mxu0 %v892
    %1447 = vmatpush.bf16.msra.mxu0 %v888
    %1448 = vmatpush.bf16.msra.mxu0 %v884
    %1449 = vmatmul.bf16.gmra.mxu0 %v50
    %v1450 = vpop.f32.mrf.mxu0
    %v1451 = vadd.f32 %v1438, %v1450
    %v1452 = vpop.f32.mrf.mxu0
    %1453 = vdwg.mxu0
    %1454 = vmatpush.bf16.msra.mxu0 %v944
    %1455 = vmatpush.bf16.msra.mxu0 %v940
    %1456 = vmatpush.bf16.msra.mxu0 %v936
    %1457 = vmatpush.bf16.msra.mxu0 %v932
    %1458 = vmatpush.bf16.msra.mxu0 %v928
    %1459 = vmatpush.bf16.msra.mxu0 %v924
    %1460 = vmatpush.bf16.msra.mxu0 %v920
    %1461 = vmatpush.bf16.msra.mxu0 %v916
    %1462 = vmatmul.bf16.gmra.mxu0 %v51
    %v1463 = vpop.f32.mrf.mxu0
    %v1464 = vadd.f32 %v1451, %v1463
    %v1465 = vpop.f32.mrf.mxu0
    %1466 = vdwg.mxu0
    %1467 = vmatpush.bf16.msra.mxu0 %v976
    %1468 = vmatpush.bf16.msra.mxu0 %v972
    %1469 = vmatpush.bf16.msra.mxu0 %v968
    %1470 = vmatpush.bf16.msra.mxu0 %v964
    %1471 = vmatpush.bf16.msra.mxu0 %v960
    %1472 = vmatpush.bf16.msra.mxu0 %v956
    %1473 = vmatpush.bf16.msra.mxu0 %v952
    %1474 = vmatpush.bf16.msra.mxu0 %v948
    %1475 = vmatmul.bf16.gmra.mxu0 %v52
    %v1476 = vpop.f32.mrf.mxu0
    %v1477 = vadd.f32 %v1464, %v1476
    %v1478 = vpop.f32.mrf.mxu0
    %1479 = vdwg.mxu0
    %1480 = vmatpush.bf16.msra.mxu0 %v1008
    %1481 = vmatpush.bf16.msra.mxu0 %v1004
    %1482 = vmatpush.bf16.msra.mxu0 %v1000
    %1483 = vmatpush.bf16.msra.mxu0 %v996
    %1484 = vmatpush.bf16.msra.mxu0 %v992
    %1485 = vmatpush.bf16.msra.mxu0 %v988
    %1486 = vmatpush.bf16.msra.mxu0 %v984
    %1487 = vmatpush.bf16.msra.mxu0 %v980
    %1488 = vmatmul.bf16.gmra.mxu0 %v53
    %v1489 = vpop.f32.mrf.mxu0
    %v1490 = vadd.f32 %v1477, %v1489
    %v1491 = vpop.f32.mrf.mxu0
    %1492 = vdwg.mxu0
    %1493 = vmatpush.bf16.msra.mxu0 %v1040
    %1494 = vmatpush.bf16.msra.mxu0 %v1036
    %1495 = vmatpush.bf16.msra.mxu0 %v1032
    %1496 = vmatpush.bf16.msra.mxu0 %v1028
    %1497 = vmatpush.bf16.msra.mxu0 %v1024
    %1498 = vmatpush.bf16.msra.mxu0 %v1020
    %1499 = vmatpush.bf16.msra.mxu0 %v1016
    %1500 = vmatpush.bf16.msra.mxu0 %v1012
    %1501 = vmatmul.bf16.gmra.mxu0 %v54
    %v1502 = vpop.f32.mrf.mxu0
    %v1503 = vadd.f32 %v1490, %v1502
    %v1504 = vpop.f32.mrf.mxu0
    %1505 = vdwg.mxu0
    %1506 = vmatpush.bf16.msra.mxu0 0
    %1507 = vmatpush.bf16.msra.mxu0 0
    %1508 = vmatpush.bf16.msra.mxu0 0
    %1509 = vmatpush.bf16.msra.mxu0 0
    %1510 = vmatpush.bf16.msra.mxu0 0
    %1511 = vmatpush.bf16.msra.mxu0 0
    %1512 = vmatpush.bf16.msra.mxu0 0
    %1513 = vmatpush.bf16.msra.mxu0 %v1044
    %1514 = vmatmul.bf16.gmra.mxu0 %v1244
    %v1515 = vpop.f32.mrf.mxu0
    %v1516 = vadd.f32 %v1503, %v1515
    %v1517 = vpop.f32.mrf.mxu0
    %1518 = vdwg.mxu0
    %1519 = vmatpush.bf16.msra.mxu0 %v881
    %1520 = vmatpush.bf16.msra.mxu0 %v877
    %1521 = vmatpush.bf16.msra.mxu0 %v873
    %1522 = vmatpush.bf16.msra.mxu0 %v869
    %1523 = vmatpush.bf16.msra.mxu0 %v865
    %1524 = vmatpush.bf16.msra.mxu0 %v861
    %1525 = vmatpush.bf16.msra.mxu0 %v857
    %1526 = vmatpush.bf16.msra.mxu0 %v853
    %1527 = vmatmul.bf16.gmra.mxu0 %v49
    %v1528 = vpop.f32.mrf.mxu0
    %v1529 = vadd.f32 %v257, %v1528
    %v1530 = vpop.f32.mrf.mxu0
    %1531 = vdwg.mxu0
    %1532 = vmatpush.bf16.msra.mxu0 %v913
    %1533 = vmatpush.bf16.msra.mxu0 %v909
    %1534 = vmatpush.bf16.msra.mxu0 %v905
    %1535 = vmatpush.bf16.msra.mxu0 %v901
    %1536 = vmatpush.bf16.msra.mxu0 %v897
    %1537 = vmatpush.bf16.msra.mxu0 %v893
    %1538 = vmatpush.bf16.msra.mxu0 %v889
    %1539 = vmatpush.bf16.msra.mxu0 %v885
    %1540 = vmatmul.bf16.gmra.mxu0 %v50
    %v1541 = vpop.f32.mrf.mxu0
    %v1542 = vadd.f32 %v1529, %v1541
    %v1543 = vpop.f32.mrf.mxu0
    %1544 = vdwg.mxu0
    %1545 = vmatpush.bf16.msra.mxu0 %v945
    %1546 = vmatpush.bf16.msra.mxu0 %v941
    %1547 = vmatpush.bf16.msra.mxu0 %v937
    %1548 = vmatpush.bf16.msra.mxu0 %v933
    %1549 = vmatpush.bf16.msra.mxu0 %v929
    %1550 = vmatpush.bf16.msra.mxu0 %v925
    %1551 = vmatpush.bf16.msra.mxu0 %v921
    %1552 = vmatpush.bf16.msra.mxu0 %v917
    %1553 = vmatmul.bf16.gmra.mxu0 %v51
    %v1554 = vpop.f32.mrf.mxu0
    %v1555 = vadd.f32 %v1542, %v1554
    %v1556 = vpop.f32.mrf.mxu0
    %1557 = vdwg.mxu0
    %1558 = vmatpush.bf16.msra.mxu0 %v977
    %1559 = vmatpush.bf16.msra.mxu0 %v973
    %1560 = vmatpush.bf16.msra.mxu0 %v969
    %1561 = vmatpush.bf16.msra.mxu0 %v965
    %1562 = vmatpush.bf16.msra.mxu0 %v961
    %1563 = vmatpush.bf16.msra.mxu0 %v957
    %1564 = vmatpush.bf16.msra.mxu0 %v953
    %1565 = vmatpush.bf16.msra.mxu0 %v949
    %1566 = vmatmul.bf16.gmra.mxu0 %v52
    %v1567 = vpop.f32.mrf.mxu0
    %v1568 = vadd.f32 %v1555, %v1567
    %v1569 = vpop.f32.mrf.mxu0
    %1570 = vdwg.mxu0
    %1571 = vmatpush.bf16.msra.mxu0 %v1009
    %1572 = vmatpush.bf16.msra.mxu0 %v1005
    %1573 = vmatpush.bf16.msra.mxu0 %v1001
    %1574 = vmatpush.bf16.msra.mxu0 %v997
    %1575 = vmatpush.bf16.msra.mxu0 %v993
    %1576 = vmatpush.bf16.msra.mxu0 %v989
    %1577 = vmatpush.bf16.msra.mxu0 %v985
    %1578 = vmatpush.bf16.msra.mxu0 %v981
    %1579 = vmatmul.bf16.gmra.mxu0 %v53
    %v1580 = vpop.f32.mrf.mxu0
    %v1581 = vadd.f32 %v1568, %v1580
    %v1582 = vpop.f32.mrf.mxu0
    %1583 = vdwg.mxu0
    %1584 = vmatpush.bf16.msra.mxu0 %v1041
    %1585 = vmatpush.bf16.msra.mxu0 %v1037
    %1586 = vmatpush.bf16.msra.mxu0 %v1033
    %1587 = vmatpush.bf16.msra.mxu0 %v1029
    %1588 = vmatpush.bf16.msra.mxu0 %v1025
    %1589 = vmatpush.bf16.msra.mxu0 %v1021
    %1590 = vmatpush.bf16.msra.mxu0 %v1017
    %1591 = vmatpush.bf16.msra.mxu0 %v1013
    %1592 = vmatmul.bf16.gmra.mxu0 %v54
    %v1593 = vpop.f32.mrf.mxu0
    %v1594 = vadd.f32 %v1581, %v1593
    %v1595 = vpop.f32.mrf.mxu0
    %1596 = vdwg.mxu0
    %1597 = vmatpush.bf16.msra.mxu0 0
    %1598 = vmatpush.bf16.msra.mxu0 0
    %1599 = vmatpush.bf16.msra.mxu0 0
    %1600 = vmatpush.bf16.msra.mxu0 0
    %1601 = vmatpush.bf16.msra.mxu0 0
    %1602 = vmatpush.bf16.msra.mxu0 0
    %1603 = vmatpush.bf16.msra.mxu0 0
    %1604 = vmatpush.bf16.msra.mxu0 %v1045
    %1605 = vmatmul.bf16.gmra.mxu0 %v1244
    %v1606 = vpop.f32.mrf.mxu0
    %v1607 = vadd.f32 %v1594, %v1606
    %v1608 = vpop.f32.mrf.mxu0
    %1609 = vdwg.mxu0
    %v1610 = vmax.f32 %v1334, 0.0
    %v1611 = vmax.f32 %v1425, 0.0
    %v1612 = vmax.f32 %v1516, 0.0
    %v1613 = vmax.f32 %v1607, 0.0
    %v1614 = vpack.c.bf16 %v1610, %v1610
    %v1615 = vpack.c.bf16 %v1611, %v1611
    %v1616 = vpack.c.bf16 %v1612, %v1612
    %v1617 = vpack.c.bf16 %v1613, %v1613
    %v1618 = vld [vmem:[%s5] sm:$0xff]
    %v1619 = vld [vmem:[%s5 + $0x8] sm:$0xff]
    %v1620 = vld [vmem:[%s5 + $0x10] sm:$0xf]
    %v1621 = vld [vmem:[%s5 + $0x14] sm:$0xff]
    %v1622 = vld [vmem:[%s5 + $0x1c] sm:$0xff]
    %v1623 = vld [vmem:[%s5 + $0x24] sm:$0xf]
    %v1624 = vld [vmem:[%s5 + $0x28] sm:$0xff]
    %v1625 = vld [vmem:[%s5 + $0x30] sm:$0xff]
    %v1626 = vld [vmem:[%s5 + $0x38] sm:$0xf]
    %v1627 = vld [vmem:[%s5 + $0x3c] sm:$0xff]
    %v1628 = vld [vmem:[%s5 + $0x44] sm:$0xff]
    %v1629 = vld [vmem:[%s5 + $0x4c] sm:$0xf]
    %v1630 = vld [vmem:[%s5 + $0x50] sm:$0xff]
    %v1631 = vld [vmem:[%s5 + $0x58] sm:$0xff]
    %v1632 = vld [vmem:[%s5 + $0x60] sm:$0xf]
    %v1633 = vld [vmem:[%s5 + $0x64] sm:$0xff]
    %v1634 = vld [vmem:[%s5 + $0x6c] sm:$0xff]
    %v1635 = vld [vmem:[%s5 + $0x74] sm:$0xf]
    %v1636 = vld [vmem:[%s5 + $0x78] sm:$0xff]
    %v1637 = vld [vmem:[%s5 + $0x80] sm:$0xff]
    %v1638 = vld [vmem:[%s5 + $0x88] sm:$0xf]
    %v1639 = vld [vmem:[%s5 + $0x8c] sm:$0xff]
    %v1640 = vld [vmem:[%s5 + $0x94] sm:$0xff]
    %v1641 = vld [vmem:[%s5 + $0x9c] sm:$0xf]
    %v1642 = vld [vmem:[%s5 + $0xa0] sm:$0xff]
    %v1643 = vld [vmem:[%s5 + $0xa8] sm:$0xff]
    %v1644 = vld [vmem:[%s5 + $0xb0] sm:$0xf]
    %v1645 = vld [vmem:[%s5 + $0xb4] sm:$0xff]
    %v1646 = vld [vmem:[%s5 + $0xbc] sm:$0xff]
    %v1647 = vld [vmem:[%s5 + $0xc4] sm:$0xf]
    %v1648 = vld [vmem:[%s5 + $0xc8] sm:$0xff]
    %v1649 = vld [vmem:[%s5 + $0xd0] sm:$0xff]
    %v1650 = vld [vmem:[%s5 + $0xd8] sm:$0xf]
    %v1651 = vld [vmem:[%s5 + $0xdc] sm:$0xff]
    %v1652 = vld [vmem:[%s5 + $0xe4] sm:$0xff]
    %v1653 = vld [vmem:[%s5 + $0xec] sm:$0xf]
    %v1654 = vld [vmem:[%s5 + $0xf0] sm:$0xff]
    %v1655 = vld [vmem:[%s5 + $0xf8] sm:$0xff]
    %v1656 = vld [vmem:[%s5 + $0x100] sm:$0xf]
    %v1657 = vld [vmem:[%s5 + $0x104] sm:$0xff]
    %v1658 = vld [vmem:[%s5 + $0x10c] sm:$0xff]
    %v1659 = vld [vmem:[%s5 + $0x114] sm:$0xf]
    %v1660 = vld [vmem:[%s5 + $0x118] sm:$0xff]
    %v1661 = vld [vmem:[%s5 + $0x120] sm:$0xff]
    %v1662 = vld [vmem:[%s5 + $0x128] sm:$0xf]
    %v1663 = vld [vmem:[%s5 + $0x12c] sm:$0xff]
    %v1664 = vld [vmem:[%s5 + $0x134] sm:$0xff]
    %v1665 = vld [vmem:[%s5 + $0x13c] sm:$0xf]
    %v1666 = vld [vmem:[%s5 + $0x140] sm:$0xff]
    %v1667 = vld [vmem:[%s5 + $0x148] sm:$0xff]
    %v1668 = vld [vmem:[%s5 + $0x150] sm:$0xf]
    %v1669 = vld [vmem:[%s5 + $0x154] sm:$0xff]
    %v1670 = vld [vmem:[%s5 + $0x15c] sm:$0xff]
    %v1671 = vld [vmem:[%s5 + $0x164] sm:$0xf]
    %v1672 = vld [vmem:[%s5 + $0x168] sm:$0xff]
    %v1673 = vld [vmem:[%s5 + $0x170] sm:$0xff]
    %v1674 = vld [vmem:[%s5 + $0x178] sm:$0xf]
    %v1675 = vld [vmem:[%s5 + $0x17c] sm:$0xff]
    %v1676 = vld [vmem:[%s5 + $0x184] sm:$0xff]
    %v1677 = vld [vmem:[%s5 + $0x18c] sm:$0xf]
    %v1678 = vld [vmem:[%s5 + $0x190] sm:$0xff]
    %v1679 = vld [vmem:[%s5 + $0x198] sm:$0xff]
    %v1680 = vld [vmem:[%s5 + $0x1a0] sm:$0xf]
    %v1681 = vld [vmem:[%s5 + $0x1a4] sm:$0xff]
    %v1682 = vld [vmem:[%s5 + $0x1ac] sm:$0xff]
    %v1683 = vld [vmem:[%s5 + $0x1b4] sm:$0xf]
    %v1684 = vld [vmem:[%s5 + $0x1b8] sm:$0xff]
    %v1685 = vld [vmem:[%s5 + $0x1c0] sm:$0xff]
    %v1686 = vld [vmem:[%s5 + $0x1c8] sm:$0xf]
    %v1687 = vld [vmem:[%s5 + $0x1cc] sm:$0xff]
    %v1688 = vld [vmem:[%s5 + $0x1d4] sm:$0xff]
    %v1689 = vld [vmem:[%s5 + $0x1dc] sm:$0xf]
    %v1690 = vld [vmem:[%s5 + $0x1e0] sm:$0xff]
    %v1691 = vld [vmem:[%s5 + $0x1e8] sm:$0xff]
    %v1692 = vld [vmem:[%s5 + $0x1f0] sm:$0xf]
    %v1693 = vld [vmem:[%s5 + $0x1f4] sm:$0xff]
    %v1694 = vld [vmem:[%s5 + $0x1fc] sm:$0xff]
    %v1695 = vld [vmem:[%s5 + $0x204] sm:$0xf]
    %v1696 = vld [vmem:[%s5 + $0x208] sm:$0xff]
    %v1697 = vld [vmem:[%s5 + $0x210] sm:$0xff]
    %v1698 = vld [vmem:[%s5 + $0x218] sm:$0xf]
    %v1699 = vld [vmem:[%s5 + $0x21c] sm:$0xff]
    %v1700 = vld [vmem:[%s5 + $0x224] sm:$0xff]
    %v1701 = vld [vmem:[%s5 + $0x22c] sm:$0xf]
    %v1702 = vld [vmem:[%s5 + $0x230] sm:$0xff]
    %v1703 = vld [vmem:[%s5 + $0x238] sm:$0xff]
    %v1704 = vld [vmem:[%s5 + $0x240] sm:$0xf]
    %v1705 = vld [vmem:[%s5 + $0x244] sm:$0xff]
    %v1706 = vld [vmem:[%s5 + $0x24c] sm:$0xff]
    %v1707 = vld [vmem:[%s5 + $0x254] sm:$0xf]
    %v1708 = vld [vmem:[%s5 + $0x258] sm:$0xff]
    %v1709 = vld [vmem:[%s5 + $0x260] sm:$0xff]
    %v1710 = vld [vmem:[%s5 + $0x268] sm:$0xf]
    %v1711 = vld [vmem:[%s5 + $0x26c] sm:$0xff]
    %v1712 = vld [vmem:[%s5 + $0x274] sm:$0xff]
    %v1713 = vld [vmem:[%s5 + $0x27c] sm:$0xf]
    %v1714 = vld [vmem:[%s5 + $0x280] sm:$0xff]
    %v1715 = vld [vmem:[%s5 + $0x288] sm:$0xff]
    %v1716 = vld [vmem:[%s5 + $0x290] sm:$0xf]
    %v1717 = vld [vmem:[%s5 + $0x294] sm:$0xff]
    %v1718 = vld [vmem:[%s5 + $0x29c] sm:$0xff]
    %v1719 = vld [vmem:[%s5 + $0x2a4] sm:$0xf]
    %v1720 = vld [vmem:[%s5 + $0x2a8] sm:$0xff]
    %v1721 = vld [vmem:[%s5 + $0x2b0] sm:$0xff]
    %v1722 = vld [vmem:[%s5 + $0x2b8] sm:$0xf]
    %v1723 = vld [vmem:[%s5 + $0x2bc] sm:$0xff]
    %v1724 = vld [vmem:[%s5 + $0x2c4] sm:$0xff]
    %v1725 = vld [vmem:[%s5 + $0x2cc] sm:$0xf]
    %v1726 = vld [vmem:[%s5 + $0x2d0] sm:$0xff]
    %v1727 = vld [vmem:[%s5 + $0x2d8] sm:$0xff]
    %v1728 = vld [vmem:[%s5 + $0x2e0] sm:$0xf]
    %v1729 = vld [vmem:[%s5 + $0x2e4] sm:$0xff]
    %v1730 = vld [vmem:[%s5 + $0x2ec] sm:$0xff]
    %v1731 = vld [vmem:[%s5 + $0x2f4] sm:$0xf]
    %v1732 = vld [vmem:[%s5 + $0x2f8] sm:$0xff]
    %v1733 = vld [vmem:[%s5 + $0x300] sm:$0xff]
    %v1734 = vld [vmem:[%s5 + $0x308] sm:$0xf]
    %v1735 = vld [vmem:[%s5 + $0x30c] sm:$0xff]
    %v1736 = vld [vmem:[%s5 + $0x314] sm:$0xff]
    %v1737 = vld [vmem:[%s5 + $0x31c] sm:$0xf]
    %v1738 = vld [vmem:[%s5 + $0x320] sm:$0xff]
    %v1739 = vld [vmem:[%s5 + $0x328] sm:$0xff]
    %v1740 = vld [vmem:[%s5 + $0x330] sm:$0xf]
    %v1741 = vld [vmem:[%s5 + $0x334] sm:$0xff]
    %v1742 = vld [vmem:[%s5 + $0x33c] sm:$0xff]
    %v1743 = vld [vmem:[%s5 + $0x344] sm:$0xf]
    %v1744 = vld [vmem:[%s5 + $0x348] sm:$0xff]
    %v1745 = vld [vmem:[%s5 + $0x350] sm:$0xff]
    %v1746 = vld [vmem:[%s5 + $0x358] sm:$0xf]
    %v1747 = vld [vmem:[%s5 + $0x35c] sm:$0xff]
    %v1748 = vld [vmem:[%s5 + $0x364] sm:$0xff]
    %v1749 = vld [vmem:[%s5 + $0x36c] sm:$0xf]
    %v1750 = vld [vmem:[%s5 + $0x370] sm:$0xff]
    %v1751 = vld [vmem:[%s5 + $0x378] sm:$0xff]
    %v1752 = vld [vmem:[%s5 + $0x380] sm:$0xf]
    %v1753 = vld [vmem:[%s5 + $0x384] sm:$0xff]
    %v1754 = vld [vmem:[%s5 + $0x38c] sm:$0xff]
    %v1755 = vld [vmem:[%s5 + $0x394] sm:$0xf]
    %v1756 = vld [vmem:[%s5 + $0x398] sm:$0xff]
    %v1757 = vld [vmem:[%s5 + $0x3a0] sm:$0xff]
    %v1758 = vld [vmem:[%s5 + $0x3a8] sm:$0xf]
    %v1759 = vld [vmem:[%s5 + $0x3ac] sm:$0xff]
    %v1760 = vld [vmem:[%s5 + $0x3b4] sm:$0xff]
    %v1761 = vld [vmem:[%s5 + $0x3bc] sm:$0xf]
    %v1762 = vld [vmem:[%s5 + $0x3c0] sm:$0xff]
    %v1763 = vld [vmem:[%s5 + $0x3c8] sm:$0xff]
    %v1764 = vld [vmem:[%s5 + $0x3d0] sm:$0xf]
    %v1765 = vld [vmem:[%s5 + $0x3d4] sm:$0xff]
    %v1766 = vld [vmem:[%s5 + $0x3dc] sm:$0xff]
    %v1767 = vld [vmem:[%s5 + $0x3e4] sm:$0xf]
    %v1768 = vld [vmem:[%s5 + $0x3e8] sm:$0xff]
    %v1769 = vld [vmem:[%s5 + $0x3f0] sm:$0xff]
    %v1770 = vld [vmem:[%s5 + $0x3f8] sm:$0xf]
    %v1771 = vld [vmem:[%s5 + $0x3fc] sm:$0xff]
    %v1772 = vld [vmem:[%s5 + $0x404] sm:$0xff]
    %v1773 = vld [vmem:[%s5 + $0x40c] sm:$0xf]
    %v1774 = vld [vmem:[%s5 + $0x410] sm:$0xff]
    %v1775 = vld [vmem:[%s5 + $0x418] sm:$0xff]
    %v1776 = vld [vmem:[%s5 + $0x420] sm:$0xf]
    %v1777 = vld [vmem:[%s5 + $0x424] sm:$0xff]
    %v1778 = vld [vmem:[%s5 + $0x42c] sm:$0xff]
    %v1779 = vld [vmem:[%s5 + $0x434] sm:$0xf]
    %v1780 = vld [vmem:[%s5 + $0x438] sm:$0xff]
    %v1781 = vld [vmem:[%s5 + $0x440] sm:$0xff]
    %v1782 = vld [vmem:[%s5 + $0x448] sm:$0xf]
    %v1783 = vld [vmem:[%s5 + $0x44c] sm:$0xff]
    %v1784 = vld [vmem:[%s5 + $0x454] sm:$0xff]
    %v1785 = vld [vmem:[%s5 + $0x45c] sm:$0xf]
    %v1786 = vld [vmem:[%s5 + $0x460] sm:$0xff]
    %v1787 = vld [vmem:[%s5 + $0x468] sm:$0xff]
    %v1788 = vld [vmem:[%s5 + $0x470] sm:$0xf]
    %v1789 = vld [vmem:[%s5 + $0x474] sm:$0xff]
    %v1790 = vld [vmem:[%s5 + $0x47c] sm:$0xff]
    %v1791 = vld [vmem:[%s5 + $0x484] sm:$0xf]
    %v1792 = vld [vmem:[%s5 + $0x488] sm:$0xff]
    %v1793 = vld [vmem:[%s5 + $0x490] sm:$0xff]
    %v1794 = vld [vmem:[%s5 + $0x498] sm:$0xf]
    %v1795 = vld [vmem:[%s5 + $0x49c] sm:$0xff]
    %v1796 = vld [vmem:[%s5 + $0x4a4] sm:$0xff]
    %v1797 = vld [vmem:[%s5 + $0x4ac] sm:$0xf]
    %v1798 = vld [vmem:[%s5 + $0x4b0] sm:$0xff]
    %v1799 = vld [vmem:[%s5 + $0x4b8] sm:$0xff]
    %v1800 = vld [vmem:[%s5 + $0x4c0] sm:$0xf]
    %v1801 = vld [vmem:[%s5 + $0x4c4] sm:$0xff]
    %v1802 = vld [vmem:[%s5 + $0x4cc] sm:$0xff]
    %v1803 = vld [vmem:[%s5 + $0x4d4] sm:$0xf]
    %v1804 = vld [vmem:[%s5 + $0x4d8] sm:$0xff]
    %v1805 = vld [vmem:[%s5 + $0x4e0] sm:$0xff]
    %v1806 = vld [vmem:[%s5 + $0x4e8] sm:$0xf]
    %v1807 = vld [vmem:[%s5 + $0x4ec] sm:$0xff]
    %v1808 = vld [vmem:[%s5 + $0x4f4] sm:$0xff]
    %v1809 = vld [vmem:[%s5 + $0x4fc] sm:$0xf]
    %v1810 = vld [vmem:[%s6] sm:$0x1f]
    %v1812 = vperm.slane %v1810, 0
    %v1813 = vperm.slane %v1810, 1
    %v1814 = vperm.slane %v1810, 2
    %v1815 = vperm.slane %v1810, 3
    %v1816 = vperm.slane %v1810, 4
    %v2014 = vunpack.c.l.b16 %v1618
    %v2015 = vunpack.c.h.b16 %v1618
    %v2016 = vunpack.c.l.b16 %v1619
    %v2017 = vunpack.c.h.b16 %v1619
    %v2018 = vunpack.c.l.b16 %v1620
    %v2019 = vunpack.c.l.b16 %v1621
    %v2020 = vunpack.c.h.b16 %v1621
    %v2021 = vunpack.c.l.b16 %v1622
    %v2022 = vunpack.c.h.b16 %v1622
    %v2023 = vunpack.c.l.b16 %v1623
    %v2024 = vunpack.c.l.b16 %v1624
    %v2025 = vunpack.c.h.b16 %v1624
    %v2026 = vunpack.c.l.b16 %v1625
    %v2027 = vunpack.c.h.b16 %v1625
    %v2028 = vunpack.c.l.b16 %v1626
    %v2029 = vunpack.c.l.b16 %v1627
    %v2030 = vunpack.c.h.b16 %v1627
    %v2031 = vunpack.c.l.b16 %v1628
    %v2032 = vunpack.c.h.b16 %v1628
    %v2033 = vunpack.c.l.b16 %v1629
    %v2034 = vunpack.c.l.b16 %v1630
    %v2035 = vunpack.c.h.b16 %v1630
    %v2036 = vunpack.c.l.b16 %v1631
    %v2037 = vunpack.c.h.b16 %v1631
    %v2038 = vunpack.c.l.b16 %v1632
    %v2039 = vunpack.c.l.b16 %v1633
    %v2040 = vunpack.c.h.b16 %v1633
    %v2041 = vunpack.c.l.b16 %v1634
    %v2042 = vunpack.c.h.b16 %v1634
    %v2043 = vunpack.c.l.b16 %v1635
    %v2044 = vunpack.c.l.b16 %v1636
    %v2045 = vunpack.c.h.b16 %v1636
    %v2046 = vunpack.c.l.b16 %v1637
    %v2047 = vunpack.c.h.b16 %v1637
    %v2048 = vunpack.c.l.b16 %v1638
    %v2049 = vunpack.c.l.b16 %v1639
    %v2050 = vunpack.c.h.b16 %v1639
    %v2051 = vunpack.c.l.b16 %v1640
    %v2052 = vunpack.c.h.b16 %v1640
    %v2053 = vunpack.c.l.b16 %v1641
    %v2054 = vunpack.c.l.b16 %v1642
    %v2055 = vunpack.c.h.b16 %v1642
    %v2056 = vunpack.c.l.b16 %v1643
    %v2057 = vunpack.c.h.b16 %v1643
    %v2058 = vunpack.c.l.b16 %v1644
    %v2059 = vunpack.c.l.b16 %v1645
    %v2060 = vunpack.c.h.b16 %v1645
    %v2061 = vunpack.c.l.b16 %v1646
    %v2062 = vunpack.c.h.b16 %v1646
    %v2063 = vunpack.c.l.b16 %v1647
    %v2064 = vunpack.c.l.b16 %v1648
    %v2065 = vunpack.c.h.b16 %v1648
    %v2066 = vunpack.c.l.b16 %v1649
    %v2067 = vunpack.c.h.b16 %v1649
    %v2068 = vunpack.c.l.b16 %v1650
    %v2069 = vunpack.c.l.b16 %v1651
    %v2070 = vunpack.c.h.b16 %v1651
    %v2071 = vunpack.c.l.b16 %v1652
    %v2072 = vunpack.c.h.b16 %v1652
    %v2073 = vunpack.c.l.b16 %v1653
    %v2074 = vunpack.c.l.b16 %v1654
    %v2075 = vunpack.c.h.b16 %v1654
    %v2076 = vunpack.c.l.b16 %v1655
    %v2077 = vunpack.c.h.b16 %v1655
    %v2078 = vunpack.c.l.b16 %v1656
    %v2079 = vunpack.c.l.b16 %v1657
    %v2080 = vunpack.c.h.b16 %v1657
    %v2081 = vunpack.c.l.b16 %v1658
    %v2082 = vunpack.c.h.b16 %v1658
    %v2083 = vunpack.c.l.b16 %v1659
    %v2084 = vunpack.c.l.b16 %v1660
    %v2085 = vunpack.c.h.b16 %v1660
    %v2086 = vunpack.c.l.b16 %v1661
    %v2087 = vunpack.c.h.b16 %v1661
    %v2088 = vunpack.c.l.b16 %v1662
    %v2089 = vunpack.c.l.b16 %v1663
    %v2090 = vunpack.c.h.b16 %v1663
    %v2091 = vunpack.c.l.b16 %v1664
    %v2092 = vunpack.c.h.b16 %v1664
    %v2093 = vunpack.c.l.b16 %v1665
    %v2094 = vunpack.c.l.b16 %v1666
    %v2095 = vunpack.c.h.b16 %v1666
    %v2096 = vunpack.c.l.b16 %v1667
    %v2097 = vunpack.c.h.b16 %v1667
    %v2098 = vunpack.c.l.b16 %v1668
    %v2099 = vunpack.c.l.b16 %v1669
    %v2100 = vunpack.c.h.b16 %v1669
    %v2101 = vunpack.c.l.b16 %v1670
    %v2102 = vunpack.c.h.b16 %v1670
    %v2103 = vunpack.c.l.b16 %v1671
    %v2104 = vunpack.c.l.b16 %v1672
    %v2105 = vunpack.c.h.b16 %v1672
    %v2106 = vunpack.c.l.b16 %v1673
    %v2107 = vunpack.c.h.b16 %v1673
    %v2108 = vunpack.c.l.b16 %v1674
    %v2109 = vunpack.c.l.b16 %v1675
    %v2110 = vunpack.c.h.b16 %v1675
    %v2111 = vunpack.c.l.b16 %v1676
    %v2112 = vunpack.c.h.b16 %v1676
    %v2113 = vunpack.c.l.b16 %v1677
    %v2114 = vunpack.c.l.b16 %v1678
    %v2115 = vunpack.c.h.b16 %v1678
    %v2116 = vunpack.c.l.b16 %v1679
    %v2117 = vunpack.c.h.b16 %v1679
    %v2118 = vunpack.c.l.b16 %v1680
    %v2119 = vunpack.c.l.b16 %v1681
    %v2120 = vunpack.c.h.b16 %v1681
    %v2121 = vunpack.c.l.b16 %v1682
    %v2122 = vunpack.c.h.b16 %v1682
    %v2123 = vunpack.c.l.b16 %v1683
    %v2124 = vunpack.c.l.b16 %v1684
    %v2125 = vunpack.c.h.b16 %v1684
    %v2126 = vunpack.c.l.b16 %v1685
    %v2127 = vunpack.c.h.b16 %v1685
    %v2128 = vunpack.c.l.b16 %v1686
    %v2129 = vunpack.c.l.b16 %v1687
    %v2130 = vunpack.c.h.b16 %v1687
    %v2131 = vunpack.c.l.b16 %v1688
    %v2132 = vunpack.c.h.b16 %v1688
    %v2133 = vunpack.c.l.b16 %v1689
    %v2134 = vunpack.c.l.b16 %v1690
    %v2135 = vunpack.c.h.b16 %v1690
    %v2136 = vunpack.c.l.b16 %v1691
    %v2137 = vunpack.c.h.b16 %v1691
    %v2138 = vunpack.c.l.b16 %v1692
    %v2139 = vunpack.c.l.b16 %v1693
    %v2140 = vunpack.c.h.b16 %v1693
    %v2141 = vunpack.c.l.b16 %v1694
    %v2142 = vunpack.c.h.b16 %v1694
    %v2143 = vunpack.c.l.b16 %v1695
    %v2144 = vunpack.c.l.b16 %v1696
    %v2145 = vunpack.c.h.b16 %v1696
    %v2146 = vunpack.c.l.b16 %v1697
    %v2147 = vunpack.c.h.b16 %v1697
    %v2148 = vunpack.c.l.b16 %v1698
    %v2149 = vunpack.c.l.b16 %v1699
    %v2150 = vunpack.c.h.b16 %v1699
    %v2151 = vunpack.c.l.b16 %v1700
    %v2152 = vunpack.c.h.b16 %v1700
    %v2153 = vunpack.c.l.b16 %v1701
    %v2154 = vunpack.c.l.b16 %v1702
    %v2155 = vunpack.c.h.b16 %v1702
    %v2156 = vunpack.c.l.b16 %v1703
    %v2157 = vunpack.c.h.b16 %v1703
    %v2158 = vunpack.c.l.b16 %v1704
    %v2159 = vunpack.c.l.b16 %v1705
    %v2160 = vunpack.c.h.b16 %v1705
    %v2161 = vunpack.c.l.b16 %v1706
    %v2162 = vunpack.c.h.b16 %v1706
    %v2163 = vunpack.c.l.b16 %v1707
    %v2164 = vunpack.c.l.b16 %v1708
    %v2165 = vunpack.c.h.b16 %v1708
    %v2166 = vunpack.c.l.b16 %v1709
    %v2167 = vunpack.c.h.b16 %v1709
    %v2168 = vunpack.c.l.b16 %v1710
    %v2169 = vunpack.c.l.b16 %v1711
    %v2170 = vunpack.c.h.b16 %v1711
    %v2171 = vunpack.c.l.b16 %v1712
    %v2172 = vunpack.c.h.b16 %v1712
    %v2173 = vunpack.c.l.b16 %v1713
    %v2174 = vunpack.c.l.b16 %v1714
    %v2175 = vunpack.c.h.b16 %v1714
    %v2176 = vunpack.c.l.b16 %v1715
    %v2177 = vunpack.c.h.b16 %v1715
    %v2178 = vunpack.c.l.b16 %v1716
    %v2179 = vunpack.c.l.b16 %v1717
    %v2180 = vunpack.c.h.b16 %v1717
    %v2181 = vunpack.c.l.b16 %v1718
    %v2182 = vunpack.c.h.b16 %v1718
    %v2183 = vunpack.c.l.b16 %v1719
    %v2184 = vunpack.c.l.b16 %v1720
    %v2185 = vunpack.c.h.b16 %v1720
    %v2186 = vunpack.c.l.b16 %v1721
    %v2187 = vunpack.c.h.b16 %v1721
    %v2188 = vunpack.c.l.b16 %v1722
    %v2189 = vunpack.c.l.b16 %v1723
    %v2190 = vunpack.c.h.b16 %v1723
    %v2191 = vunpack.c.l.b16 %v1724
    %v2192 = vunpack.c.h.b16 %v1724
    %v2193 = vunpack.c.l.b16 %v1725
    %v2194 = vunpack.c.l.b16 %v1726
    %v2195 = vunpack.c.h.b16 %v1726
    %v2196 = vunpack.c.l.b16 %v1727
    %v2197 = vunpack.c.h.b16 %v1727
    %v2198 = vunpack.c.l.b16 %v1728
    %v2199 = vunpack.c.l.b16 %v1729
    %v2200 = vunpack.c.h.b16 %v1729
    %v2201 = vunpack.c.l.b16 %v1730
    %v2202 = vunpack.c.h.b16 %v1730
    %v2203 = vunpack.c.l.b16 %v1731
    %v2204 = vunpack.c.l.b16 %v1732
    %v2205 = vunpack.c.h.b16 %v1732
    %v2206 = vunpack.c.l.b16 %v1733
    %v2207 = vunpack.c.h.b16 %v1733
    %v2208 = vunpack.c.l.b16 %v1734
    %v2209 = vunpack.c.l.b16 %v1735
    %v2210 = vunpack.c.h.b16 %v1735
    %v2211 = vunpack.c.l.b16 %v1736
    %v2212 = vunpack.c.h.b16 %v1736
    %v2213 = vunpack.c.l.b16 %v1737
    %v2214 = vunpack.c.l.b16 %v1738
    %v2215 = vunpack.c.h.b16 %v1738
    %v2216 = vunpack.c.l.b16 %v1739
    %v2217 = vunpack.c.h.b16 %v1739
    %v2218 = vunpack.c.l.b16 %v1740
    %v2219 = vunpack.c.l.b16 %v1741
    %v2220 = vunpack.c.h.b16 %v1741
    %v2221 = vunpack.c.l.b16 %v1742
    %v2222 = vunpack.c.h.b16 %v1742
    %v2223 = vunpack.c.l.b16 %v1743
    %v2224 = vunpack.c.l.b16 %v1744
    %v2225 = vunpack.c.h.b16 %v1744
    %v2226 = vunpack.c.l.b16 %v1745
    %v2227 = vunpack.c.h.b16 %v1745
    %v2228 = vunpack.c.l.b16 %v1746
    %v2229 = vunpack.c.l.b16 %v1747
    %v2230 = vunpack.c.h.b16 %v1747
    %v2231 = vunpack.c.l.b16 %v1748
    %v2232 = vunpack.c.h.b16 %v1748
    %v2233 = vunpack.c.l.b16 %v1749
    %v2234 = vunpack.c.l.b16 %v1750
    %v2235 = vunpack.c.h.b16 %v1750
    %v2236 = vunpack.c.l.b16 %v1751
    %v2237 = vunpack.c.h.b16 %v1751
    %v2238 = vunpack.c.l.b16 %v1752
    %v2239 = vunpack.c.l.b16 %v1753
    %v2240 = vunpack.c.h.b16 %v1753
    %v2241 = vunpack.c.l.b16 %v1754
    %v2242 = vunpack.c.h.b16 %v1754
    %v2243 = vunpack.c.l.b16 %v1755
    %v2244 = vunpack.c.l.b16 %v1756
    %v2245 = vunpack.c.h.b16 %v1756
    %v2246 = vunpack.c.l.b16 %v1757
    %v2247 = vunpack.c.h.b16 %v1757
    %v2248 = vunpack.c.l.b16 %v1758
    %v2249 = vunpack.c.l.b16 %v1759
    %v2250 = vunpack.c.h.b16 %v1759
    %v2251 = vunpack.c.l.b16 %v1760
    %v2252 = vunpack.c.h.b16 %v1760
    %v2253 = vunpack.c.l.b16 %v1761
    %v2254 = vunpack.c.l.b16 %v1762
    %v2255 = vunpack.c.h.b16 %v1762
    %v2256 = vunpack.c.l.b16 %v1763
    %v2257 = vunpack.c.h.b16 %v1763
    %v2258 = vunpack.c.l.b16 %v1764
    %v2259 = vunpack.c.l.b16 %v1765
    %v2260 = vunpack.c.h.b16 %v1765
    %v2261 = vunpack.c.l.b16 %v1766
    %v2262 = vunpack.c.h.b16 %v1766
    %v2263 = vunpack.c.l.b16 %v1767
    %v2264 = vunpack.c.l.b16 %v1768
    %v2265 = vunpack.c.h.b16 %v1768
    %v2266 = vunpack.c.l.b16 %v1769
    %v2267 = vunpack.c.h.b16 %v1769
    %v2268 = vunpack.c.l.b16 %v1770
    %v2269 = vunpack.c.l.b16 %v1771
    %v2270 = vunpack.c.h.b16 %v1771
    %v2271 = vunpack.c.l.b16 %v1772
    %v2272 = vunpack.c.h.b16 %v1772
    %v2273 = vunpack.c.l.b16 %v1773
    %v2274 = vunpack.c.l.b16 %v1774
    %v2275 = vunpack.c.h.b16 %v1774
    %v2276 = vunpack.c.l.b16 %v1775
    %v2277 = vunpack.c.h.b16 %v1775
    %v2278 = vunpack.c.l.b16 %v1776
    %v2279 = vunpack.c.l.b16 %v1777
    %v2280 = vunpack.c.h.b16 %v1777
    %v2281 = vunpack.c.l.b16 %v1778
    %v2282 = vunpack.c.h.b16 %v1778
    %v2283 = vunpack.c.l.b16 %v1779
    %v2284 = vunpack.c.l.b16 %v1780
    %v2285 = vunpack.c.h.b16 %v1780
    %v2286 = vunpack.c.l.b16 %v1781
    %v2287 = vunpack.c.h.b16 %v1781
    %v2288 = vunpack.c.l.b16 %v1782
    %v2289 = vunpack.c.l.b16 %v1783
    %v2290 = vunpack.c.h.b16 %v1783
    %v2291 = vunpack.c.l.b16 %v1784
    %v2292 = vunpack.c.h.b16 %v1784
    %v2293 = vunpack.c.l.b16 %v1785
    %v2294 = vunpack.c.l.b16 %v1786
    %v2295 = vunpack.c.h.b16 %v1786
    %v2296 = vunpack.c.l.b16 %v1787
    %v2297 = vunpack.c.h.b16 %v1787
    %v2298 = vunpack.c.l.b16 %v1788
    %v2299 = vunpack.c.l.b16 %v1789
    %v2300 = vunpack.c.h.b16 %v1789
    %v2301 = vunpack.c.l.b16 %v1790
    %v2302 = vunpack.c.h.b16 %v1790
    %v2303 = vunpack.c.l.b16 %v1791
    %v2304 = vunpack.c.l.b16 %v1792
    %v2305 = vunpack.c.h.b16 %v1792
    %v2306 = vunpack.c.l.b16 %v1793
    %v2307 = vunpack.c.h.b16 %v1793
    %v2308 = vunpack.c.l.b16 %v1794
    %v2309 = vunpack.c.l.b16 %v1795
    %v2310 = vunpack.c.h.b16 %v1795
    %v2311 = vunpack.c.l.b16 %v1796
    %v2312 = vunpack.c.h.b16 %v1796
    %v2313 = vunpack.c.l.b16 %v1797
    %v2314 = vunpack.c.l.b16 %v1798
    %v2315 = vunpack.c.h.b16 %v1798
    %v2316 = vunpack.c.l.b16 %v1799
    %v2317 = vunpack.c.h.b16 %v1799
    %v2318 = vunpack.c.l.b16 %v1800
    %v2319 = vunpack.c.l.b16 %v1801
    %v2320 = vunpack.c.h.b16 %v1801
    %v2321 = vunpack.c.l.b16 %v1802
    %v2322 = vunpack.c.h.b16 %v1802
    %v2323 = vunpack.c.l.b16 %v1803
    %v2324 = vunpack.c.l.b16 %v1804
    %v2325 = vunpack.c.h.b16 %v1804
    %v2326 = vunpack.c.l.b16 %v1805
    %v2327 = vunpack.c.h.b16 %v1805
    %v2328 = vunpack.c.l.b16 %v1806
    %v2329 = vunpack.c.l.b16 %v1807
    %v2330 = vunpack.c.h.b16 %v1807
    %v2331 = vunpack.c.l.b16 %v1808
    %v2332 = vunpack.c.h.b16 %v1808
    %v2333 = vunpack.c.l.b16 %v1809
    %v2334 = vpack.c.b16 %v2019, %v2014
    %v2335 = vpack.c.b16 %v2020, %v2015
    %v2336 = vpack.c.b16 %v2021, %v2016
    %v2337 = vpack.c.b16 %v2022, %v2017
    %v2338 = vpack.c.b16 %v2023, %v2018
    %v2339 = vpack.c.b16 %v2029, %v2024
    %v2340 = vpack.c.b16 %v2030, %v2025
    %v2341 = vpack.c.b16 %v2031, %v2026
    %v2342 = vpack.c.b16 %v2032, %v2027
    %v2343 = vpack.c.b16 %v2033, %v2028
    %v2344 = vpack.c.b16 %v2039, %v2034
    %v2345 = vpack.c.b16 %v2040, %v2035
    %v2346 = vpack.c.b16 %v2041, %v2036
    %v2347 = vpack.c.b16 %v2042, %v2037
    %v2348 = vpack.c.b16 %v2043, %v2038
    %v2349 = vpack.c.b16 %v2049, %v2044
    %v2350 = vpack.c.b16 %v2050, %v2045
    %v2351 = vpack.c.b16 %v2051, %v2046
    %v2352 = vpack.c.b16 %v2052, %v2047
    %v2353 = vpack.c.b16 %v2053, %v2048
    %v2354 = vpack.c.b16 %v2059, %v2054
    %v2355 = vpack.c.b16 %v2060, %v2055
    %v2356 = vpack.c.b16 %v2061, %v2056
    %v2357 = vpack.c.b16 %v2062, %v2057
    %v2358 = vpack.c.b16 %v2063, %v2058
    %v2359 = vpack.c.b16 %v2069, %v2064
    %v2360 = vpack.c.b16 %v2070, %v2065
    %v2361 = vpack.c.b16 %v2071, %v2066
    %v2362 = vpack.c.b16 %v2072, %v2067
    %v2363 = vpack.c.b16 %v2073, %v2068
    %v2364 = vpack.c.b16 %v2079, %v2074
    %v2365 = vpack.c.b16 %v2080, %v2075
    %v2366 = vpack.c.b16 %v2081, %v2076
    %v2367 = vpack.c.b16 %v2082, %v2077
    %v2368 = vpack.c.b16 %v2083, %v2078
    %v2369 = vpack.c.b16 %v2089, %v2084
    %v2370 = vpack.c.b16 %v2090, %v2085
    %v2371 = vpack.c.b16 %v2091, %v2086
    %v2372 = vpack.c.b16 %v2092, %v2087
    %v2373 = vpack.c.b16 %v2093, %v2088
    %v2374 = vpack.c.b16 %v2099, %v2094
    %v2375 = vpack.c.b16 %v2100, %v2095
    %v2376 = vpack.c.b16 %v2101, %v2096
    %v2377 = vpack.c.b16 %v2102, %v2097
    %v2378 = vpack.c.b16 %v2103, %v2098
    %v2379 = vpack.c.b16 %v2109, %v2104
    %v2380 = vpack.c.b16 %v2110, %v2105
    %v2381 = vpack.c.b16 %v2111, %v2106
    %v2382 = vpack.c.b16 %v2112, %v2107
    %v2383 = vpack.c.b16 %v2113, %v2108
    %v2384 = vpack.c.b16 %v2119, %v2114
    %v2385 = vpack.c.b16 %v2120, %v2115
    %v2386 = vpack.c.b16 %v2121, %v2116
    %v2387 = vpack.c.b16 %v2122, %v2117
    %v2388 = vpack.c.b16 %v2123, %v2118
    %v2389 = vpack.c.b16 %v2129, %v2124
    %v2390 = vpack.c.b16 %v2130, %v2125
    %v2391 = vpack.c.b16 %v2131, %v2126
    %v2392 = vpack.c.b16 %v2132, %v2127
    %v2393 = vpack.c.b16 %v2133, %v2128
    %v2394 = vpack.c.b16 %v2139, %v2134
    %v2395 = vpack.c.b16 %v2140, %v2135
    %v2396 = vpack.c.b16 %v2141, %v2136
    %v2397 = vpack.c.b16 %v2142, %v2137
    %v2398 = vpack.c.b16 %v2143, %v2138
    %v2399 = vpack.c.b16 %v2149, %v2144
    %v2400 = vpack.c.b16 %v2150, %v2145
    %v2401 = vpack.c.b16 %v2151, %v2146
    %v2402 = vpack.c.b16 %v2152, %v2147
    %v2403 = vpack.c.b16 %v2153, %v2148
    %v2404 = vpack.c.b16 %v2159, %v2154
    %v2405 = vpack.c.b16 %v2160, %v2155
    %v2406 = vpack.c.b16 %v2161, %v2156
    %v2407 = vpack.c.b16 %v2162, %v2157
    %v2408 = vpack.c.b16 %v2163, %v2158
    %v2409 = vpack.c.b16 %v2169, %v2164
    %v2410 = vpack.c.b16 %v2170, %v2165
    %v2411 = vpack.c.b16 %v2171, %v2166
    %v2412 = vpack.c.b16 %v2172, %v2167
    %v2413 = vpack.c.b16 %v2173, %v2168
    %v2414 = vpack.c.b16 %v2179, %v2174
    %v2415 = vpack.c.b16 %v2180, %v2175
    %v2416 = vpack.c.b16 %v2181, %v2176
    %v2417 = vpack.c.b16 %v2182, %v2177
    %v2418 = vpack.c.b16 %v2183, %v2178
    %v2419 = vpack.c.b16 %v2189, %v2184
    %v2420 = vpack.c.b16 %v2190, %v2185
    %v2421 = vpack.c.b16 %v2191, %v2186
    %v2422 = vpack.c.b16 %v2192, %v2187
    %v2423 = vpack.c.b16 %v2193, %v2188
    %v2424 = vpack.c.b16 %v2199, %v2194
    %v2425 = vpack.c.b16 %v2200, %v2195
    %v2426 = vpack.c.b16 %v2201, %v2196
    %v2427 = vpack.c.b16 %v2202, %v2197
    %v2428 = vpack.c.b16 %v2203, %v2198
    %v2429 = vpack.c.b16 %v2209, %v2204
    %v2430 = vpack.c.b16 %v2210, %v2205
    %v2431 = vpack.c.b16 %v2211, %v2206
    %v2432 = vpack.c.b16 %v2212, %v2207
    %v2433 = vpack.c.b16 %v2213, %v2208
    %v2434 = vpack.c.b16 %v2219, %v2214
    %v2435 = vpack.c.b16 %v2220, %v2215
    %v2436 = vpack.c.b16 %v2221, %v2216
    %v2437 = vpack.c.b16 %v2222, %v2217
    %v2438 = vpack.c.b16 %v2223, %v2218
    %v2439 = vpack.c.b16 %v2229, %v2224
    %v2440 = vpack.c.b16 %v2230, %v2225
    %v2441 = vpack.c.b16 %v2231, %v2226
    %v2442 = vpack.c.b16 %v2232, %v2227
    %v2443 = vpack.c.b16 %v2233, %v2228
    %v2444 = vpack.c.b16 %v2239, %v2234
    %v2445 = vpack.c.b16 %v2240, %v2235
    %v2446 = vpack.c.b16 %v2241, %v2236
    %v2447 = vpack.c.b16 %v2242, %v2237
    %v2448 = vpack.c.b16 %v2243, %v2238
    %v2449 = vpack.c.b16 %v2249, %v2244
    %v2450 = vpack.c.b16 %v2250, %v2245
    %v2451 = vpack.c.b16 %v2251, %v2246
    %v2452 = vpack.c.b16 %v2252, %v2247
    %v2453 = vpack.c.b16 %v2253, %v2248
    %v2454 = vpack.c.b16 %v2259, %v2254
    %v2455 = vpack.c.b16 %v2260, %v2255
    %v2456 = vpack.c.b16 %v2261, %v2256
    %v2457 = vpack.c.b16 %v2262, %v2257
    %v2458 = vpack.c.b16 %v2263, %v2258
    %v2459 = vpack.c.b16 %v2269, %v2264
    %v2460 = vpack.c.b16 %v2270, %v2265
    %v2461 = vpack.c.b16 %v2271, %v2266
    %v2462 = vpack.c.b16 %v2272, %v2267
    %v2463 = vpack.c.b16 %v2273, %v2268
    %v2464 = vpack.c.b16 %v2279, %v2274
    %v2465 = vpack.c.b16 %v2280, %v2275
    %v2466 = vpack.c.b16 %v2281, %v2276
    %v2467 = vpack.c.b16 %v2282, %v2277
    %v2468 = vpack.c.b16 %v2283, %v2278
    %v2469 = vpack.c.b16 %v2289, %v2284
    %v2470 = vpack.c.b16 %v2290, %v2285
    %v2471 = vpack.c.b16 %v2291, %v2286
    %v2472 = vpack.c.b16 %v2292, %v2287
    %v2473 = vpack.c.b16 %v2293, %v2288
    %v2474 = vpack.c.b16 %v2299, %v2294
    %v2475 = vpack.c.b16 %v2300, %v2295
    %v2476 = vpack.c.b16 %v2301, %v2296
    %v2477 = vpack.c.b16 %v2302, %v2297
    %v2478 = vpack.c.b16 %v2303, %v2298
    %v2479 = vpack.c.b16 %v2309, %v2304
    %v2480 = vpack.c.b16 %v2310, %v2305
    %v2481 = vpack.c.b16 %v2311, %v2306
    %v2482 = vpack.c.b16 %v2312, %v2307
    %v2483 = vpack.c.b16 %v2313, %v2308
    %v2484 = vpack.c.b16 %v2319, %v2314
    %v2485 = vpack.c.b16 %v2320, %v2315
    %v2486 = vpack.c.b16 %v2321, %v2316
    %v2487 = vpack.c.b16 %v2322, %v2317
    %v2488 = vpack.c.b16 %v2323, %v2318
    %v2489 = vpack.c.b16 %v2329, %v2324
    %v2490 = vpack.c.b16 %v2330, %v2325
    %v2491 = vpack.c.b16 %v2331, %v2326
    %v2492 = vpack.c.b16 %v2332, %v2327
    %v2493 = vpack.c.b16 %v2333, %v2328
    %2654 = vmatpush.bf16.msra.mxu0 %v2369
    %2655 = vmatpush.bf16.msra.mxu0 %v2364
    %2656 = vmatpush.bf16.msra.mxu0 %v2359
    %2657 = vmatpush.bf16.msra.mxu0 %v2354
    %2658 = vmatpush.bf16.msra.mxu0 %v2349
    %2659 = vmatpush.bf16.msra.mxu0 %v2344
    %2660 = vmatpush.bf16.msra.mxu0 %v2339
    %2661 = vmatpush.bf16.msra.mxu0 %v2334
    %2662 = vmatmul.bf16.gmra.mxu0 %v1614
    %v2663 = vpop.f32.mrf.mxu0
    %v2664 = vadd.f32 %v1812, %v2663
    %v2665 = vpop.f32.mrf.mxu0
    %2666 = vdwg.mxu0
    %2667 = vmatpush.bf16.msra.mxu0 %v2409
    %2668 = vmatpush.bf16.msra.mxu0 %v2404
    %2669 = vmatpush.bf16.msra.mxu0 %v2399
    %2670 = vmatpush.bf16.msra.mxu0 %v2394
    %2671 = vmatpush.bf16.msra.mxu0 %v2389
    %2672 = vmatpush.bf16.msra.mxu0 %v2384
    %2673 = vmatpush.bf16.msra.mxu0 %v2379
    %2674 = vmatpush.bf16.msra.mxu0 %v2374
    %2675 = vmatmul.bf16.gmra.mxu0 %v1615
    %v2676 = vpop.f32.mrf.mxu0
    %v2677 = vadd.f32 %v2664, %v2676
    %v2678 = vpop.f32.mrf.mxu0
    %2679 = vdwg.mxu0
    %2680 = vmatpush.bf16.msra.mxu0 %v2449
    %2681 = vmatpush.bf16.msra.mxu0 %v2444
    %2682 = vmatpush.bf16.msra.mxu0 %v2439
    %2683 = vmatpush.bf16.msra.mxu0 %v2434
    %2684 = vmatpush.bf16.msra.mxu0 %v2429
    %2685 = vmatpush.bf16.msra.mxu0 %v2424
    %2686 = vmatpush.bf16.msra.mxu0 %v2419
    %2687 = vmatpush.bf16.msra.mxu0 %v2414
    %2688 = vmatmul.bf16.gmra.mxu0 %v1616
    %v2689 = vpop.f32.mrf.mxu0
    %v2690 = vadd.f32 %v2677, %v2689
    %v2691 = vpop.f32.mrf.mxu0
    %2692 = vdwg.mxu0
    %2693 = vmatpush.bf16.msra.mxu0 %v2489
    %2694 = vmatpush.bf16.msra.mxu0 %v2484
    %2695 = vmatpush.bf16.msra.mxu0 %v2479
    %2696 = vmatpush.bf16.msra.mxu0 %v2474
    %2697 = vmatpush.bf16.msra.mxu0 %v2469
    %2698 = vmatpush.bf16.msra.mxu0 %v2464
    %2699 = vmatpush.bf16.msra.mxu0 %v2459
    %2700 = vmatpush.bf16.msra.mxu0 %v2454
    %2701 = vmatmul.bf16.gmra.mxu0 %v1617
    %v2702 = vpop.f32.mrf.mxu0
    %v2703 = vadd.f32 %v2690, %v2702
    %v2704 = vpop.f32.mrf.mxu0
    %2705 = vdwg.mxu0
    %2706 = vmatpush.bf16.msra.mxu0 %v2370
    %2707 = vmatpush.bf16.msra.mxu0 %v2365
    %2708 = vmatpush.bf16.msra.mxu0 %v2360
    %2709 = vmatpush.bf16.msra.mxu0 %v2355
    %2710 = vmatpush.bf16.msra.mxu0 %v2350
    %2711 = vmatpush.bf16.msra.mxu0 %v2345
    %2712 = vmatpush.bf16.msra.mxu0 %v2340
    %2713 = vmatpush.bf16.msra.mxu0 %v2335
    %2714 = vmatmul.bf16.gmra.mxu0 %v1614
    %v2715 = vpop.f32.mrf.mxu0
    %v2716 = vadd.f32 %v1813, %v2715
    %v2717 = vpop.f32.mrf.mxu0
    %2718 = vdwg.mxu0
    %2719 = vmatpush.bf16.msra.mxu0 %v2410
    %2720 = vmatpush.bf16.msra.mxu0 %v2405
    %2721 = vmatpush.bf16.msra.mxu0 %v2400
    %2722 = vmatpush.bf16.msra.mxu0 %v2395
    %2723 = vmatpush.bf16.msra.mxu0 %v2390
    %2724 = vmatpush.bf16.msra.mxu0 %v2385
    %2725 = vmatpush.bf16.msra.mxu0 %v2380
    %2726 = vmatpush.bf16.msra.mxu0 %v2375
    %2727 = vmatmul.bf16.gmra.mxu0 %v1615
    %v2728 = vpop.f32.mrf.mxu0
    %v2729 = vadd.f32 %v2716, %v2728
    %v2730 = vpop.f32.mrf.mxu0
    %2731 = vdwg.mxu0
    %2732 = vmatpush.bf16.msra.mxu0 %v2450
    %2733 = vmatpush.bf16.msra.mxu0 %v2445
    %2734 = vmatpush.bf16.msra.mxu0 %v2440
    %2735 = vmatpush.bf16.msra.mxu0 %v2435
    %2736 = vmatpush.bf16.msra.mxu0 %v2430
    %2737 = vmatpush.bf16.msra.mxu0 %v2425
    %2738 = vmatpush.bf16.msra.mxu0 %v2420
    %2739 = vmatpush.bf16.msra.mxu0 %v2415
    %2740 = vmatmul.bf16.gmra.mxu0 %v1616
    %v2741 = vpop.f32.mrf.mxu0
    %v2742 = vadd.f32 %v2729, %v2741
    %v2743 = vpop.f32.mrf.mxu0
    %2744 = vdwg.mxu0
    %2745 = vmatpush.bf16.msra.mxu0 %v2490
    %2746 = vmatpush.bf16.msra.mxu0 %v2485
    %2747 = vmatpush.bf16.msra.mxu0 %v2480
    %2748 = vmatpush.bf16.msra.mxu0 %v2475
    %2749 = vmatpush.bf16.msra.mxu0 %v2470
    %2750 = vmatpush.bf16.msra.mxu0 %v2465
    %2751 = vmatpush.bf16.msra.mxu0 %v2460
    %2752 = vmatpush.bf16.msra.mxu0 %v2455
    %2753 = vmatmul.bf16.gmra.mxu0 %v1617
    %v2754 = vpop.f32.mrf.mxu0
    %v2755 = vadd.f32 %v2742, %v2754
    %v2756 = vpop.f32.mrf.mxu0
    %2757 = vdwg.mxu0
    %2758 = vmatpush.bf16.msra.mxu0 %v2371
    %2759 = vmatpush.bf16.msra.mxu0 %v2366
    %2760 = vmatpush.bf16.msra.mxu0 %v2361
    %2761 = vmatpush.bf16.msra.mxu0 %v2356
    %2762 = vmatpush.bf16.msra.mxu0 %v2351
    %2763 = vmatpush.bf16.msra.mxu0 %v2346
    %2764 = vmatpush.bf16.msra.mxu0 %v2341
    %2765 = vmatpush.bf16.msra.mxu0 %v2336
    %2766 = vmatmul.bf16.gmra.mxu0 %v1614
    %v2767 = vpop.f32.mrf.mxu0
    %v2768 = vadd.f32 %v1814, %v2767
    %v2769 = vpop.f32.mrf.mxu0
    %2770 = vdwg.mxu0
    %2771 = vmatpush.bf16.msra.mxu0 %v2411
    %2772 = vmatpush.bf16.msra.mxu0 %v2406
    %2773 = vmatpush.bf16.msra.mxu0 %v2401
    %2774 = vmatpush.bf16.msra.mxu0 %v2396
    %2775 = vmatpush.bf16.msra.mxu0 %v2391
    %2776 = vmatpush.bf16.msra.mxu0 %v2386
    %2777 = vmatpush.bf16.msra.mxu0 %v2381
    %2778 = vmatpush.bf16.msra.mxu0 %v2376
    %2779 = vmatmul.bf16.gmra.mxu0 %v1615
    %v2780 = vpop.f32.mrf.mxu0
    %v2781 = vadd.f32 %v2768, %v2780
    %v2782 = vpop.f32.mrf.mxu0
    %2783 = vdwg.mxu0
    %2784 = vmatpush.bf16.msra.mxu0 %v2451
    %2785 = vmatpush.bf16.msra.mxu0 %v2446
    %2786 = vmatpush.bf16.msra.mxu0 %v2441
    %2787 = vmatpush.bf16.msra.mxu0 %v2436
    %2788 = vmatpush.bf16.msra.mxu0 %v2431
    %2789 = vmatpush.bf16.msra.mxu0 %v2426
    %2790 = vmatpush.bf16.msra.mxu0 %v2421
    %2791 = vmatpush.bf16.msra.mxu0 %v2416
    %2792 = vmatmul.bf16.gmra.mxu0 %v1616
    %v2793 = vpop.f32.mrf.mxu0
    %v2794 = vadd.f32 %v2781, %v2793
    %v2795 = vpop.f32.mrf.mxu0
    %2796 = vdwg.mxu0
    %2797 = vmatpush.bf16.msra.mxu0 %v2491
    %2798 = vmatpush.bf16.msra.mxu0 %v2486
    %2799 = vmatpush.bf16.msra.mxu0 %v2481
    %2800 = vmatpush.bf16.msra.mxu0 %v2476
    %2801 = vmatpush.bf16.msra.mxu0 %v2471
    %2802 = vmatpush.bf16.msra.mxu0 %v2466
    %2803 = vmatpush.bf16.msra.mxu0 %v2461
    %2804 = vmatpush.bf16.msra.mxu0 %v2456
    %2805 = vmatmul.bf16.gmra.mxu0 %v1617
    %v2806 = vpop.f32.mrf.mxu0
    %v2807 = vadd.f32 %v2794, %v2806
    %v2808 = vpop.f32.mrf.mxu0
    %2809 = vdwg.mxu0
    %2810 = vmatpush.bf16.msra.mxu0 %v2372
    %2811 = vmatpush.bf16.msra.mxu0 %v2367
    %2812 = vmatpush.bf16.msra.mxu0 %v2362
    %2813 = vmatpush.bf16.msra.mxu0 %v2357
    %2814 = vmatpush.bf16.msra.mxu0 %v2352
    %2815 = vmatpush.bf16.msra.mxu0 %v2347
    %2816 = vmatpush.bf16.msra.mxu0 %v2342
    %2817 = vmatpush.bf16.msra.mxu0 %v2337
    %2818 = vmatmul.bf16.gmra.mxu0 %v1614
    %v2819 = vpop.f32.mrf.mxu0
    %v2820 = vadd.f32 %v1815, %v2819
    %v2821 = vpop.f32.mrf.mxu0
    %2822 = vdwg.mxu0
    %2823 = vmatpush.bf16.msra.mxu0 %v2412
    %2824 = vmatpush.bf16.msra.mxu0 %v2407
    %2825 = vmatpush.bf16.msra.mxu0 %v2402
    %2826 = vmatpush.bf16.msra.mxu0 %v2397
    %2827 = vmatpush.bf16.msra.mxu0 %v2392
    %2828 = vmatpush.bf16.msra.mxu0 %v2387
    %2829 = vmatpush.bf16.msra.mxu0 %v2382
    %2830 = vmatpush.bf16.msra.mxu0 %v2377
    %2831 = vmatmul.bf16.gmra.mxu0 %v1615
    %v2832 = vpop.f32.mrf.mxu0
    %v2833 = vadd.f32 %v2820, %v2832
    %v2834 = vpop.f32.mrf.mxu0
    %2835 = vdwg.mxu0
    %2836 = vmatpush.bf16.msra.mxu0 %v2452
    %2837 = vmatpush.bf16.msra.mxu0 %v2447
    %2838 = vmatpush.bf16.msra.mxu0 %v2442
    %2839 = vmatpush.bf16.msra.mxu0 %v2437
    %2840 = vmatpush.bf16.msra.mxu0 %v2432
    %2841 = vmatpush.bf16.msra.mxu0 %v2427
    %2842 = vmatpush.bf16.msra.mxu0 %v2422
    %2843 = vmatpush.bf16.msra.mxu0 %v2417
    %2844 = vmatmul.bf16.gmra.mxu0 %v1616
    %v2845 = vpop.f32.mrf.mxu0
    %v2846 = vadd.f32 %v2833, %v2845
    %v2847 = vpop.f32.mrf.mxu0
    %2848 = vdwg.mxu0
    %2849 = vmatpush.bf16.msra.mxu0 %v2492
    %2850 = vmatpush.bf16.msra.mxu0 %v2487
    %2851 = vmatpush.bf16.msra.mxu0 %v2482
    %2852 = vmatpush.bf16.msra.mxu0 %v2477
    %2853 = vmatpush.bf16.msra.mxu0 %v2472
    %2854 = vmatpush.bf16.msra.mxu0 %v2467
    %2855 = vmatpush.bf16.msra.mxu0 %v2462
    %2856 = vmatpush.bf16.msra.mxu0 %v2457
    %2857 = vmatmul.bf16.gmra.mxu0 %v1617
    %v2858 = vpop.f32.mrf.mxu0
    %v2859 = vadd.f32 %v2846, %v2858
    %v2860 = vpop.f32.mrf.mxu0
    %2861 = vdwg.mxu0
    %2862 = vmatpush.bf16.msra.mxu0 %v2373
    %2863 = vmatpush.bf16.msra.mxu0 %v2368
    %2864 = vmatpush.bf16.msra.mxu0 %v2363
    %2865 = vmatpush.bf16.msra.mxu0 %v2358
    %2866 = vmatpush.bf16.msra.mxu0 %v2353
    %2867 = vmatpush.bf16.msra.mxu0 %v2348
    %2868 = vmatpush.bf16.msra.mxu0 %v2343
    %2869 = vmatpush.bf16.msra.mxu0 %v2338
    %2870 = vmatmul.bf16.gmra.mxu0 %v1614
    %v2871 = vpop.f32.mrf.mxu0
    %v2872 = vadd.f32 %v1816, %v2871
    %v2873 = vpop.f32.mrf.mxu0
    %2874 = vdwg.mxu0
    %2875 = vmatpush.bf16.msra.mxu0 %v2413
    %2876 = vmatpush.bf16.msra.mxu0 %v2408
    %2877 = vmatpush.bf16.msra.mxu0 %v2403
    %2878 = vmatpush.bf16.msra.mxu0 %v2398
    %2879 = vmatpush.bf16.msra.mxu0 %v2393
    %2880 = vmatpush.bf16.msra.mxu0 %v2388
    %2881 = vmatpush.bf16.msra.mxu0 %v2383
    %2882 = vmatpush.bf16.msra.mxu0 %v2378
    %2883 = vmatmul.bf16.gmra.mxu0 %v1615
    %v2884 = vpop.f32.mrf.mxu0
    %v2885 = vadd.f32 %v2872, %v2884
    %v2886 = vpop.f32.mrf.mxu0
    %2887 = vdwg.mxu0
    %2888 = vmatpush.bf16.msra.mxu0 %v2453
    %2889 = vmatpush.bf16.msra.mxu0 %v2448
    %2890 = vmatpush.bf16.msra.mxu0 %v2443
    %2891 = vmatpush.bf16.msra.mxu0 %v2438
    %2892 = vmatpush.bf16.msra.mxu0 %v2433
    %2893 = vmatpush.bf16.msra.mxu0 %v2428
    %2894 = vmatpush.bf16.msra.mxu0 %v2423
    %2895 = vmatpush.bf16.msra.mxu0 %v2418
    %2896 = vmatmul.bf16.gmra.mxu0 %v1616
    %v2897 = vpop.f32.mrf.mxu0
    %v2898 = vadd.f32 %v2885, %v2897
    %v2899 = vpop.f32.mrf.mxu0
    %2900 = vdwg.mxu0
    %2901 = vmatpush.bf16.msra.mxu0 %v2493
    %2902 = vmatpush.bf16.msra.mxu0 %v2488
    %2903 = vmatpush.bf16.msra.mxu0 %v2483
    %2904 = vmatpush.bf16.msra.mxu0 %v2478
    %2905 = vmatpush.bf16.msra.mxu0 %v2473
    %2906 = vmatpush.bf16.msra.mxu0 %v2468
    %2907 = vmatpush.bf16.msra.mxu0 %v2463
    %2908 = vmatpush.bf16.msra.mxu0 %v2458
    %2909 = vmatmul.bf16.gmra.mxu0 %v1617
    %v2910 = vpop.f32.mrf.mxu0
    %v2911 = vadd.f32 %v2898, %v2910
    %v2912 = vpop.f32.mrf.mxu0
    %2913 = vdwg.mxu0
    %v2914 = vmax.f32 %v2859, 0.0
    %v2915 = vand.u32 2147483647, %v2859
    %v2916 = vsub.f32 0.0, %v2915
    %v2917 = vmul.f32 %v2916, 1.442695
    %v2918 = vpow.pop %v2917
    %v2919 = vadd.f32 %v2918, 1.0
    %v2920 = vlog2.pop %v2919
    %v2921 = vmul.f32 %v2920, 0.6931472
    %v2922 = vmul.f32 -0.5, %v2918
    %v2923 = vadd.f32 %v2922, 1.0
    %v2924 = vmul.f32 %v2923, %v2918
    %v2925 = vand.u32 2147483647, %v2918
    %vm2926 = vcmp.lt.f32.partialorder %v2925, 0.0004427343
    %v2927 = vsel %vm2926, %v2924, %v2921
    %v2928 = vadd.f32 %v2914, %v2927
    %v2929 = vadd.f32 %v2928, 0.01
    %v2930 = vmax.f32 %v2911, 0.0
    %v2931 = vand.u32 2147483647, %v2911
    %v2932 = vsub.f32 0.0, %v2931
    %v2933 = vmul.f32 %v2932, 1.442695
    %v2934 = vpow.pop %v2933
    %v2935 = vadd.f32 %v2934, 1.0
    %v2936 = vlog2.pop %v2935
    %v2937 = vmul.f32 %v2936, 0.6931472
    %v2938 = vmul.f32 -0.5, %v2934
    %v2939 = vadd.f32 %v2938, 1.0
    %v2940 = vmul.f32 %v2939, %v2934
    %v2941 = vand.u32 2147483647, %v2934
    %vm2942 = vcmp.lt.f32.partialorder %v2941, 0.0004427343
    %v2943 = vsel %vm2942, %v2940, %v2937
    %v2944 = vadd.f32 %v2930, %v2943
    %v2945 = vadd.f32 %v2944, 0.01
    %v2946 = vmul.f32 %v2807, 0.5
    %v2947 = vtanh.pop %v2946
    %v2948 = vadd.f32 %v2947, 1.0
    %v2949 = vmul.f32 %v2948, 0.5
    %v2950 = vld [vmem:[%s2] sm:$0xff]
    %vm2951 = vcmp.lt.f32.partialorder %v2950, %v2949
    %v2952 = vsel %vm2951, 1, 0
    %v2953 = vcvt.s32.f32 %v2952
    %v2954 = vld [vmem:[%s1] sm:$0xff]
    %v2955 = vmul.f32 %v2755, 0.5
    %v2956 = vmul.f32 %v2955, 1.442695
    %v2957 = vpow.pop %v2956
    %v2958 = vmul.f32 %v2954, %v2957
    %v2959 = vadd.f32 %v2958, %v2703
    %v2960 = vmul.f32 %v2953, %v2959
    %v2961 = vpack.c.bf16 %v2960, %v2960
    %v2962 = vld [vmem:[%s7] sm:$0xff]
    %v2963 = vld [vmem:[%s7 + $0x8] sm:$0xff]
    %v2964 = vld [vmem:[%s7 + $0x10] sm:$0xff]
    %v2965 = vld [vmem:[%s7 + $0x18] sm:$0xff]
    %v2966 = vld [vmem:[%s7 + $0x20] sm:$0xff]
    %v2967 = vld [vmem:[%s7 + $0x28] sm:$0xff]
    %v2968 = vld [vmem:[%s7 + $0x30] sm:$0xff]
    %v2969 = vld [vmem:[%s7 + $0x38] sm:$0xff]
    %v2970 = vld [vmem:[%s7 + $0x40] sm:$0xff]
    %v2971 = vld [vmem:[%s7 + $0x48] sm:$0xff]
    %v2972 = vld [vmem:[%s7 + $0x50] sm:$0xff]
    %v2973 = vld [vmem:[%s7 + $0x58] sm:$0xff]
    %v2974 = vld [vmem:[%s7 + $0x60] sm:$0xff]
    %v2975 = vld [vmem:[%s7 + $0x68] sm:$0xff]
    %v2976 = vld [vmem:[%s7 + $0x70] sm:$0xff]
    %v2977 = vld [vmem:[%s7 + $0x78] sm:$0xff]
    %v2978 = vld [vmem:[%s7 + $0x80] sm:$0xff]
    %v2979 = vld [vmem:[%s7 + $0x88] sm:$0xff]
    %v2980 = vld [vmem:[%s7 + $0x90] sm:$0xff]
    %v2981 = vld [vmem:[%s7 + $0x98] sm:$0xff]
    %v2982 = vld [vmem:[%s7 + $0xa0] sm:$0xff]
    %v2983 = vld [vmem:[%s7 + $0xa8] sm:$0xff]
    %v2984 = vld [vmem:[%s7 + $0xb0] sm:$0xff]
    %v2985 = vld [vmem:[%s7 + $0xb8] sm:$0xff]
    %v2986 = vld [vmem:[%s7 + $0xc0] sm:$0xff]
    %v2987 = vld [vmem:[%s7 + $0xc8] sm:$0xff]
    %v2988 = vld [vmem:[%s7 + $0xd0] sm:$0xff]
    %v2989 = vld [vmem:[%s7 + $0xd8] sm:$0xff]
    %v2990 = vld [vmem:[%s7 + $0xe0] sm:$0xff]
    %v2991 = vld [vmem:[%s7 + $0xe8] sm:$0xff]
    %v2992 = vld [vmem:[%s7 + $0xf0] sm:$0xff]
    %v2993 = vld [vmem:[%s7 + $0xf8] sm:$0xff]
    %v2994 = vld [vmem:[%s8] sm:$0xf]
    %v2996 = vperm.slane %v2994, 0
    %v2997 = vperm.slane %v2994, 1
    %v2998 = vperm.slane %v2994, 2
    %v2999 = vperm.slane %v2994, 3
    %v3036 = vunpack.c.l.b16 %v2962
    %v3037 = vunpack.c.h.b16 %v2962
    %v3038 = vunpack.c.l.b16 %v2963
    %v3039 = vunpack.c.h.b16 %v2963
    %v3040 = vunpack.c.l.b16 %v2964
    %v3041 = vunpack.c.h.b16 %v2964
    %v3042 = vunpack.c.l.b16 %v2965
    %v3043 = vunpack.c.h.b16 %v2965
    %v3044 = vunpack.c.l.b16 %v2966
    %v3045 = vunpack.c.h.b16 %v2966
    %v3046 = vunpack.c.l.b16 %v2967
    %v3047 = vunpack.c.h.b16 %v2967
    %v3048 = vunpack.c.l.b16 %v2968
    %v3049 = vunpack.c.h.b16 %v2968
    %v3050 = vunpack.c.l.b16 %v2969
    %v3051 = vunpack.c.h.b16 %v2969
    %v3052 = vunpack.c.l.b16 %v2970
    %v3053 = vunpack.c.h.b16 %v2970
    %v3054 = vunpack.c.l.b16 %v2971
    %v3055 = vunpack.c.h.b16 %v2971
    %v3056 = vunpack.c.l.b16 %v2972
    %v3057 = vunpack.c.h.b16 %v2972
    %v3058 = vunpack.c.l.b16 %v2973
    %v3059 = vunpack.c.h.b16 %v2973
    %v3060 = vunpack.c.l.b16 %v2974
    %v3061 = vunpack.c.h.b16 %v2974
    %v3062 = vunpack.c.l.b16 %v2975
    %v3063 = vunpack.c.h.b16 %v2975
    %v3064 = vunpack.c.l.b16 %v2976
    %v3065 = vunpack.c.h.b16 %v2976
    %v3066 = vunpack.c.l.b16 %v2977
    %v3067 = vunpack.c.h.b16 %v2977
    %v3068 = vunpack.c.l.b16 %v2978
    %v3069 = vunpack.c.h.b16 %v2978
    %v3070 = vunpack.c.l.b16 %v2979
    %v3071 = vunpack.c.h.b16 %v2979
    %v3072 = vunpack.c.l.b16 %v2980
    %v3073 = vunpack.c.h.b16 %v2980
    %v3074 = vunpack.c.l.b16 %v2981
    %v3075 = vunpack.c.h.b16 %v2981
    %v3076 = vunpack.c.l.b16 %v2982
    %v3077 = vunpack.c.h.b16 %v2982
    %v3078 = vunpack.c.l.b16 %v2983
    %v3079 = vunpack.c.h.b16 %v2983
    %v3080 = vunpack.c.l.b16 %v2984
    %v3081 = vunpack.c.h.b16 %v2984
    %v3082 = vunpack.c.l.b16 %v2985
    %v3083 = vunpack.c.h.b16 %v2985
    %v3084 = vunpack.c.l.b16 %v2986
    %v3085 = vunpack.c.h.b16 %v2986
    %v3086 = vunpack.c.l.b16 %v2987
    %v3087 = vunpack.c.h.b16 %v2987
    %v3088 = vunpack.c.l.b16 %v2988
    %v3089 = vunpack.c.h.b16 %v2988
    %v3090 = vunpack.c.l.b16 %v2989
    %v3091 = vunpack.c.h.b16 %v2989
    %v3092 = vunpack.c.l.b16 %v2990
    %v3093 = vunpack.c.h.b16 %v2990
    %v3094 = vunpack.c.l.b16 %v2991
    %v3095 = vunpack.c.h.b16 %v2991
    %v3096 = vunpack.c.l.b16 %v2992
    %v3097 = vunpack.c.h.b16 %v2992
    %v3098 = vunpack.c.l.b16 %v2993
    %v3099 = vunpack.c.h.b16 %v2993
    %v3100 = vpack.c.b16 %v3040, %v3036
    %v3101 = vpack.c.b16 %v3041, %v3037
    %v3102 = vpack.c.b16 %v3042, %v3038
    %v3103 = vpack.c.b16 %v3043, %v3039
    %v3104 = vpack.c.b16 %v3048, %v3044
    %v3105 = vpack.c.b16 %v3049, %v3045
    %v3106 = vpack.c.b16 %v3050, %v3046
    %v3107 = vpack.c.b16 %v3051, %v3047
    %v3108 = vpack.c.b16 %v3056, %v3052
    %v3109 = vpack.c.b16 %v3057, %v3053
    %v3110 = vpack.c.b16 %v3058, %v3054
    %v3111 = vpack.c.b16 %v3059, %v3055
    %v3112 = vpack.c.b16 %v3064, %v3060
    %v3113 = vpack.c.b16 %v3065, %v3061
    %v3114 = vpack.c.b16 %v3066, %v3062
    %v3115 = vpack.c.b16 %v3067, %v3063
    %v3116 = vpack.c.b16 %v3072, %v3068
    %v3117 = vpack.c.b16 %v3073, %v3069
    %v3118 = vpack.c.b16 %v3074, %v3070
    %v3119 = vpack.c.b16 %v3075, %v3071
    %v3120 = vpack.c.b16 %v3080, %v3076
    %v3121 = vpack.c.b16 %v3081, %v3077
    %v3122 = vpack.c.b16 %v3082, %v3078
    %v3123 = vpack.c.b16 %v3083, %v3079
    %v3124 = vpack.c.b16 %v3088, %v3084
    %v3125 = vpack.c.b16 %v3089, %v3085
    %v3126 = vpack.c.b16 %v3090, %v3086
    %v3127 = vpack.c.b16 %v3091, %v3087
    %v3128 = vpack.c.b16 %v3096, %v3092
    %v3129 = vpack.c.b16 %v3097, %v3093
    %v3130 = vpack.c.b16 %v3098, %v3094
    %v3131 = vpack.c.b16 %v3099, %v3095
    %3164 = vmatpush.bf16.msra.mxu0 %v3128
    %3165 = vmatpush.bf16.msra.mxu0 %v3124
    %3166 = vmatpush.bf16.msra.mxu0 %v3120
    %3167 = vmatpush.bf16.msra.mxu0 %v3116
    %3168 = vmatpush.bf16.msra.mxu0 %v3112
    %3169 = vmatpush.bf16.msra.mxu0 %v3108
    %3170 = vmatpush.bf16.msra.mxu0 %v3104
    %3171 = vmatpush.bf16.msra.mxu0 %v3100
    %3172 = vmatmul.bf16.gmra.mxu0 %v2961
    %v3173 = vpop.f32.mrf.mxu0
    %v3174 = vadd.f32 %v2996, %v3173
    %v3175 = vpop.f32.mrf.mxu0
    %3176 = vdwg.mxu0
    %3177 = vmatpush.bf16.msra.mxu0 %v3129
    %3178 = vmatpush.bf16.msra.mxu0 %v3125
    %3179 = vmatpush.bf16.msra.mxu0 %v3121
    %3180 = vmatpush.bf16.msra.mxu0 %v3117
    %3181 = vmatpush.bf16.msra.mxu0 %v3113
    %3182 = vmatpush.bf16.msra.mxu0 %v3109
    %3183 = vmatpush.bf16.msra.mxu0 %v3105
    %3184 = vmatpush.bf16.msra.mxu0 %v3101
    %3185 = vmatmul.bf16.gmra.mxu0 %v2961
    %v3186 = vpop.f32.mrf.mxu0
    %v3187 = vadd.f32 %v2997, %v3186
    %v3188 = vpop.f32.mrf.mxu0
    %3189 = vdwg.mxu0
    %3190 = vmatpush.bf16.msra.mxu0 %v3130
    %3191 = vmatpush.bf16.msra.mxu0 %v3126
    %3192 = vmatpush.bf16.msra.mxu0 %v3122
    %3193 = vmatpush.bf16.msra.mxu0 %v3118
    %3194 = vmatpush.bf16.msra.mxu0 %v3114
    %3195 = vmatpush.bf16.msra.mxu0 %v3110
    %3196 = vmatpush.bf16.msra.mxu0 %v3106
    %3197 = vmatpush.bf16.msra.mxu0 %v3102
    %3198 = vmatmul.bf16.gmra.mxu0 %v2961
    %v3199 = vpop.f32.mrf.mxu0
    %v3200 = vadd.f32 %v2998, %v3199
    %v3201 = vpop.f32.mrf.mxu0
    %3202 = vdwg.mxu0
    %3203 = vmatpush.bf16.msra.mxu0 %v3131
    %3204 = vmatpush.bf16.msra.mxu0 %v3127
    %3205 = vmatpush.bf16.msra.mxu0 %v3123
    %3206 = vmatpush.bf16.msra.mxu0 %v3119
    %3207 = vmatpush.bf16.msra.mxu0 %v3115
    %3208 = vmatpush.bf16.msra.mxu0 %v3111
    %3209 = vmatpush.bf16.msra.mxu0 %v3107
    %3210 = vmatpush.bf16.msra.mxu0 %v3103
    %3211 = vmatmul.bf16.gmra.mxu0 %v2961
    %v3212 = vpop.f32.mrf.mxu0
    %v3213 = vadd.f32 %v2999, %v3212
    %v3214 = vpop.f32.mrf.mxu0
    %3215 = vdwg.mxu0
    %v3216 = vmax.f32 %v3174, 0.0
    %v3217 = vmax.f32 %v3187, 0.0
    %v3218 = vmax.f32 %v3200, 0.0
    %v3219 = vmax.f32 %v3213, 0.0
    %v3220 = vpack.c.bf16 %v3216, %v3216
    %v3221 = vpack.c.bf16 %v3217, %v3217
    %v3222 = vpack.c.bf16 %v3218, %v3218
    %v3223 = vpack.c.bf16 %v3219, %v3219
    %v3224 = vld [vmem:[%s9] sm:$0xff]
    %v3225 = vld [vmem:[%s9 + $0x8] sm:$0xff]
    %v3226 = vld [vmem:[%s9 + $0x10] sm:$0xff]
    %v3227 = vld [vmem:[%s9 + $0x18] sm:$0xf]
    %v3228 = vld [vmem:[%s9 + $0x1c] sm:$0xff]
    %v3229 = vld [vmem:[%s9 + $0x24] sm:$0xff]
    %v3230 = vld [vmem:[%s9 + $0x2c] sm:$0xff]
    %v3231 = vld [vmem:[%s9 + $0x34] sm:$0xf]
    %v3232 = vld [vmem:[%s9 + $0x38] sm:$0xff]
    %v3233 = vld [vmem:[%s9 + $0x40] sm:$0xff]
    %v3234 = vld [vmem:[%s9 + $0x48] sm:$0xff]
    %v3235 = vld [vmem:[%s9 + $0x50] sm:$0xf]
    %v3236 = vld [vmem:[%s9 + $0x54] sm:$0xff]
    %v3237 = vld [vmem:[%s9 + $0x5c] sm:$0xff]
    %v3238 = vld [vmem:[%s9 + $0x64] sm:$0xff]
    %v3239 = vld [vmem:[%s9 + $0x6c] sm:$0xf]
    %v3240 = vld [vmem:[%s9 + $0x70] sm:$0xff]
    %v3241 = vld [vmem:[%s9 + $0x78] sm:$0xff]
    %v3242 = vld [vmem:[%s9 + $0x80] sm:$0xff]
    %v3243 = vld [vmem:[%s9 + $0x88] sm:$0xf]
    %v3244 = vld [vmem:[%s9 + $0x8c] sm:$0xff]
    %v3245 = vld [vmem:[%s9 + $0x94] sm:$0xff]
    %v3246 = vld [vmem:[%s9 + $0x9c] sm:$0xff]
    %v3247 = vld [vmem:[%s9 + $0xa4] sm:$0xf]
    %v3248 = vld [vmem:[%s9 + $0xa8] sm:$0xff]
    %v3249 = vld [vmem:[%s9 + $0xb0] sm:$0xff]
    %v3250 = vld [vmem:[%s9 + $0xb8] sm:$0xff]
    %v3251 = vld [vmem:[%s9 + $0xc0] sm:$0xf]
    %v3252 = vld [vmem:[%s9 + $0xc4] sm:$0xff]
    %v3253 = vld [vmem:[%s9 + $0xcc] sm:$0xff]
    %v3254 = vld [vmem:[%s9 + $0xd4] sm:$0xff]
    %v3255 = vld [vmem:[%s9 + $0xdc] sm:$0xf]
    %v3256 = vld [vmem:[%s9 + $0xe0] sm:$0xff]
    %v3257 = vld [vmem:[%s9 + $0xe8] sm:$0xff]
    %v3258 = vld [vmem:[%s9 + $0xf0] sm:$0xff]
    %v3259 = vld [vmem:[%s9 + $0xf8] sm:$0xf]
    %v3260 = vld [vmem:[%s9 + $0xfc] sm:$0xff]
    %v3261 = vld [vmem:[%s9 + $0x104] sm:$0xff]
    %v3262 = vld [vmem:[%s9 + $0x10c] sm:$0xff]
    %v3263 = vld [vmem:[%s9 + $0x114] sm:$0xf]
    %v3264 = vld [vmem:[%s9 + $0x118] sm:$0xff]
    %v3265 = vld [vmem:[%s9 + $0x120] sm:$0xff]
    %v3266 = vld [vmem:[%s9 + $0x128] sm:$0xff]
    %v3267 = vld [vmem:[%s9 + $0x130] sm:$0xf]
    %v3268 = vld [vmem:[%s9 + $0x134] sm:$0xff]
    %v3269 = vld [vmem:[%s9 + $0x13c] sm:$0xff]
    %v3270 = vld [vmem:[%s9 + $0x144] sm:$0xff]
    %v3271 = vld [vmem:[%s9 + $0x14c] sm:$0xf]
    %v3272 = vld [vmem:[%s9 + $0x150] sm:$0xff]
    %v3273 = vld [vmem:[%s9 + $0x158] sm:$0xff]
    %v3274 = vld [vmem:[%s9 + $0x160] sm:$0xff]
    %v3275 = vld [vmem:[%s9 + $0x168] sm:$0xf]
    %v3276 = vld [vmem:[%s9 + $0x16c] sm:$0xff]
    %v3277 = vld [vmem:[%s9 + $0x174] sm:$0xff]
    %v3278 = vld [vmem:[%s9 + $0x17c] sm:$0xff]
    %v3279 = vld [vmem:[%s9 + $0x184] sm:$0xf]
    %v3280 = vld [vmem:[%s9 + $0x188] sm:$0xff]
    %v3281 = vld [vmem:[%s9 + $0x190] sm:$0xff]
    %v3282 = vld [vmem:[%s9 + $0x198] sm:$0xff]
    %v3283 = vld [vmem:[%s9 + $0x1a0] sm:$0xf]
    %v3284 = vld [vmem:[%s9 + $0x1a4] sm:$0xff]
    %v3285 = vld [vmem:[%s9 + $0x1ac] sm:$0xff]
    %v3286 = vld [vmem:[%s9 + $0x1b4] sm:$0xff]
    %v3287 = vld [vmem:[%s9 + $0x1bc] sm:$0xf]
    %v3288 = vld [vmem:[%s9 + $0x1c0] sm:$0xff]
    %v3289 = vld [vmem:[%s9 + $0x1c8] sm:$0xff]
    %v3290 = vld [vmem:[%s9 + $0x1d0] sm:$0xff]
    %v3291 = vld [vmem:[%s9 + $0x1d8] sm:$0xf]
    %v3292 = vld [vmem:[%s9 + $0x1dc] sm:$0xff]
    %v3293 = vld [vmem:[%s9 + $0x1e4] sm:$0xff]
    %v3294 = vld [vmem:[%s9 + $0x1ec] sm:$0xff]
    %v3295 = vld [vmem:[%s9 + $0x1f4] sm:$0xf]
    %v3296 = vld [vmem:[%s9 + $0x1f8] sm:$0xff]
    %v3297 = vld [vmem:[%s9 + $0x200] sm:$0xff]
    %v3298 = vld [vmem:[%s9 + $0x208] sm:$0xff]
    %v3299 = vld [vmem:[%s9 + $0x210] sm:$0xf]
    %v3300 = vld [vmem:[%s9 + $0x214] sm:$0xff]
    %v3301 = vld [vmem:[%s9 + $0x21c] sm:$0xff]
    %v3302 = vld [vmem:[%s9 + $0x224] sm:$0xff]
    %v3303 = vld [vmem:[%s9 + $0x22c] sm:$0xf]
    %v3304 = vld [vmem:[%s9 + $0x230] sm:$0xff]
    %v3305 = vld [vmem:[%s9 + $0x238] sm:$0xff]
    %v3306 = vld [vmem:[%s9 + $0x240] sm:$0xff]
    %v3307 = vld [vmem:[%s9 + $0x248] sm:$0xf]
    %v3308 = vld [vmem:[%s9 + $0x24c] sm:$0xff]
    %v3309 = vld [vmem:[%s9 + $0x254] sm:$0xff]
    %v3310 = vld [vmem:[%s9 + $0x25c] sm:$0xff]
    %v3311 = vld [vmem:[%s9 + $0x264] sm:$0xf]
    %v3312 = vld [vmem:[%s9 + $0x268] sm:$0xff]
    %v3313 = vld [vmem:[%s9 + $0x270] sm:$0xff]
    %v3314 = vld [vmem:[%s9 + $0x278] sm:$0xff]
    %v3315 = vld [vmem:[%s9 + $0x280] sm:$0xf]
    %v3316 = vld [vmem:[%s9 + $0x284] sm:$0xff]
    %v3317 = vld [vmem:[%s9 + $0x28c] sm:$0xff]
    %v3318 = vld [vmem:[%s9 + $0x294] sm:$0xff]
    %v3319 = vld [vmem:[%s9 + $0x29c] sm:$0xf]
    %v3320 = vld [vmem:[%s9 + $0x2a0] sm:$0xff]
    %v3321 = vld [vmem:[%s9 + $0x2a8] sm:$0xff]
    %v3322 = vld [vmem:[%s9 + $0x2b0] sm:$0xff]
    %v3323 = vld [vmem:[%s9 + $0x2b8] sm:$0xf]
    %v3324 = vld [vmem:[%s9 + $0x2bc] sm:$0xff]
    %v3325 = vld [vmem:[%s9 + $0x2c4] sm:$0xff]
    %v3326 = vld [vmem:[%s9 + $0x2cc] sm:$0xff]
    %v3327 = vld [vmem:[%s9 + $0x2d4] sm:$0xf]
    %v3328 = vld [vmem:[%s9 + $0x2d8] sm:$0xff]
    %v3329 = vld [vmem:[%s9 + $0x2e0] sm:$0xff]
    %v3330 = vld [vmem:[%s9 + $0x2e8] sm:$0xff]
    %v3331 = vld [vmem:[%s9 + $0x2f0] sm:$0xf]
    %v3332 = vld [vmem:[%s9 + $0x2f4] sm:$0xff]
    %v3333 = vld [vmem:[%s9 + $0x2fc] sm:$0xff]
    %v3334 = vld [vmem:[%s9 + $0x304] sm:$0xff]
    %v3335 = vld [vmem:[%s9 + $0x30c] sm:$0xf]
    %v3336 = vld [vmem:[%s9 + $0x310] sm:$0xff]
    %v3337 = vld [vmem:[%s9 + $0x318] sm:$0xff]
    %v3338 = vld [vmem:[%s9 + $0x320] sm:$0xff]
    %v3339 = vld [vmem:[%s9 + $0x328] sm:$0xf]
    %v3340 = vld [vmem:[%s9 + $0x32c] sm:$0xff]
    %v3341 = vld [vmem:[%s9 + $0x334] sm:$0xff]
    %v3342 = vld [vmem:[%s9 + $0x33c] sm:$0xff]
    %v3343 = vld [vmem:[%s9 + $0x344] sm:$0xf]
    %v3344 = vld [vmem:[%s9 + $0x348] sm:$0xff]
    %v3345 = vld [vmem:[%s9 + $0x350] sm:$0xff]
    %v3346 = vld [vmem:[%s9 + $0x358] sm:$0xff]
    %v3347 = vld [vmem:[%s9 + $0x360] sm:$0xf]
    %v3348 = vld [vmem:[%s9 + $0x364] sm:$0xff]
    %v3349 = vld [vmem:[%s9 + $0x36c] sm:$0xff]
    %v3350 = vld [vmem:[%s9 + $0x374] sm:$0xff]
    %v3351 = vld [vmem:[%s9 + $0x37c] sm:$0xf]
    %v3352 = vld [vmem:[%s9 + $0x380] sm:$0xff]
    %v3353 = vld [vmem:[%s9 + $0x388] sm:$0xff]
    %v3354 = vld [vmem:[%s9 + $0x390] sm:$0xff]
    %v3355 = vld [vmem:[%s9 + $0x398] sm:$0xf]
    %v3356 = vld [vmem:[%s9 + $0x39c] sm:$0xff]
    %v3357 = vld [vmem:[%s9 + $0x3a4] sm:$0xff]
    %v3358 = vld [vmem:[%s9 + $0x3ac] sm:$0xff]
    %v3359 = vld [vmem:[%s9 + $0x3b4] sm:$0xf]
    %v3360 = vld [vmem:[%s9 + $0x3b8] sm:$0xff]
    %v3361 = vld [vmem:[%s9 + $0x3c0] sm:$0xff]
    %v3362 = vld [vmem:[%s9 + $0x3c8] sm:$0xff]
    %v3363 = vld [vmem:[%s9 + $0x3d0] sm:$0xf]
    %v3364 = vld [vmem:[%s9 + $0x3d4] sm:$0xff]
    %v3365 = vld [vmem:[%s9 + $0x3dc] sm:$0xff]
    %v3366 = vld [vmem:[%s9 + $0x3e4] sm:$0xff]
    %v3367 = vld [vmem:[%s9 + $0x3ec] sm:$0xf]
    %v3368 = vld [vmem:[%s9 + $0x3f0] sm:$0xff]
    %v3369 = vld [vmem:[%s9 + $0x3f8] sm:$0xff]
    %v3370 = vld [vmem:[%s9 + $0x400] sm:$0xff]
    %v3371 = vld [vmem:[%s9 + $0x408] sm:$0xf]
    %v3372 = vld [vmem:[%s9 + $0x40c] sm:$0xff]
    %v3373 = vld [vmem:[%s9 + $0x414] sm:$0xff]
    %v3374 = vld [vmem:[%s9 + $0x41c] sm:$0xff]
    %v3375 = vld [vmem:[%s9 + $0x424] sm:$0xf]
    %v3376 = vld [vmem:[%s9 + $0x428] sm:$0xff]
    %v3377 = vld [vmem:[%s9 + $0x430] sm:$0xff]
    %v3378 = vld [vmem:[%s9 + $0x438] sm:$0xff]
    %v3379 = vld [vmem:[%s9 + $0x440] sm:$0xf]
    %v3380 = vld [vmem:[%s9 + $0x444] sm:$0xff]
    %v3381 = vld [vmem:[%s9 + $0x44c] sm:$0xff]
    %v3382 = vld [vmem:[%s9 + $0x454] sm:$0xff]
    %v3383 = vld [vmem:[%s9 + $0x45c] sm:$0xf]
    %v3384 = vld [vmem:[%s9 + $0x460] sm:$0xff]
    %v3385 = vld [vmem:[%s9 + $0x468] sm:$0xff]
    %v3386 = vld [vmem:[%s9 + $0x470] sm:$0xff]
    %v3387 = vld [vmem:[%s9 + $0x478] sm:$0xf]
    %v3388 = vld [vmem:[%s9 + $0x47c] sm:$0xff]
    %v3389 = vld [vmem:[%s9 + $0x484] sm:$0xff]
    %v3390 = vld [vmem:[%s9 + $0x48c] sm:$0xff]
    %v3391 = vld [vmem:[%s9 + $0x494] sm:$0xf]
    %v3392 = vld [vmem:[%s9 + $0x498] sm:$0xff]
    %v3393 = vld [vmem:[%s9 + $0x4a0] sm:$0xff]
    %v3394 = vld [vmem:[%s9 + $0x4a8] sm:$0xff]
    %v3395 = vld [vmem:[%s9 + $0x4b0] sm:$0xf]
    %v3396 = vld [vmem:[%s9 + $0x4b4] sm:$0xff]
    %v3397 = vld [vmem:[%s9 + $0x4bc] sm:$0xff]
    %v3398 = vld [vmem:[%s9 + $0x4c4] sm:$0xff]
    %v3399 = vld [vmem:[%s9 + $0x4cc] sm:$0xf]
    %v3400 = vld [vmem:[%s9 + $0x4d0] sm:$0xff]
    %v3401 = vld [vmem:[%s9 + $0x4d8] sm:$0xff]
    %v3402 = vld [vmem:[%s9 + $0x4e0] sm:$0xff]
    %v3403 = vld [vmem:[%s9 + $0x4e8] sm:$0xf]
    %v3404 = vld [vmem:[%s9 + $0x4ec] sm:$0xff]
    %v3405 = vld [vmem:[%s9 + $0x4f4] sm:$0xff]
    %v3406 = vld [vmem:[%s9 + $0x4fc] sm:$0xff]
    %v3407 = vld [vmem:[%s9 + $0x504] sm:$0xf]
    %v3408 = vld [vmem:[%s9 + $0x508] sm:$0xff]
    %v3409 = vld [vmem:[%s9 + $0x510] sm:$0xff]
    %v3410 = vld [vmem:[%s9 + $0x518] sm:$0xff]
    %v3411 = vld [vmem:[%s9 + $0x520] sm:$0xf]
    %v3412 = vld [vmem:[%s9 + $0x524] sm:$0xff]
    %v3413 = vld [vmem:[%s9 + $0x52c] sm:$0xff]
    %v3414 = vld [vmem:[%s9 + $0x534] sm:$0xff]
    %v3415 = vld [vmem:[%s9 + $0x53c] sm:$0xf]
    %v3416 = vld [vmem:[%s9 + $0x540] sm:$0xff]
    %v3417 = vld [vmem:[%s9 + $0x548] sm:$0xff]
    %v3418 = vld [vmem:[%s9 + $0x550] sm:$0xff]
    %v3419 = vld [vmem:[%s9 + $0x558] sm:$0xf]
    %v3420 = vld [vmem:[%s9 + $0x55c] sm:$0xff]
    %v3421 = vld [vmem:[%s9 + $0x564] sm:$0xff]
    %v3422 = vld [vmem:[%s9 + $0x56c] sm:$0xff]
    %v3423 = vld [vmem:[%s9 + $0x574] sm:$0xf]
    %v3424 = vld [vmem:[%s9 + $0x578] sm:$0xff]
    %v3425 = vld [vmem:[%s9 + $0x580] sm:$0xff]
    %v3426 = vld [vmem:[%s9 + $0x588] sm:$0xff]
    %v3427 = vld [vmem:[%s9 + $0x590] sm:$0xf]
    %v3428 = vld [vmem:[%s9 + $0x594] sm:$0xff]
    %v3429 = vld [vmem:[%s9 + $0x59c] sm:$0xff]
    %v3430 = vld [vmem:[%s9 + $0x5a4] sm:$0xff]
    %v3431 = vld [vmem:[%s9 + $0x5ac] sm:$0xf]
    %v3432 = vld [vmem:[%s9 + $0x5b0] sm:$0xff]
    %v3433 = vld [vmem:[%s9 + $0x5b8] sm:$0xff]
    %v3434 = vld [vmem:[%s9 + $0x5c0] sm:$0xff]
    %v3435 = vld [vmem:[%s9 + $0x5c8] sm:$0xf]
    %v3436 = vld [vmem:[%s9 + $0x5cc] sm:$0xff]
    %v3437 = vld [vmem:[%s9 + $0x5d4] sm:$0xff]
    %v3438 = vld [vmem:[%s9 + $0x5dc] sm:$0xff]
    %v3439 = vld [vmem:[%s9 + $0x5e4] sm:$0xf]
    %v3440 = vld [vmem:[%s9 + $0x5e8] sm:$0xff]
    %v3441 = vld [vmem:[%s9 + $0x5f0] sm:$0xff]
    %v3442 = vld [vmem:[%s9 + $0x5f8] sm:$0xff]
    %v3443 = vld [vmem:[%s9 + $0x600] sm:$0xf]
    %v3444 = vld [vmem:[%s9 + $0x604] sm:$0xff]
    %v3445 = vld [vmem:[%s9 + $0x60c] sm:$0xff]
    %v3446 = vld [vmem:[%s9 + $0x614] sm:$0xff]
    %v3447 = vld [vmem:[%s9 + $0x61c] sm:$0xf]
    %v3448 = vld [vmem:[%s9 + $0x620] sm:$0xff]
    %v3449 = vld [vmem:[%s9 + $0x628] sm:$0xff]
    %v3450 = vld [vmem:[%s9 + $0x630] sm:$0xff]
    %v3451 = vld [vmem:[%s9 + $0x638] sm:$0xf]
    %v3452 = vld [vmem:[%s9 + $0x63c] sm:$0xff]
    %v3453 = vld [vmem:[%s9 + $0x644] sm:$0xff]
    %v3454 = vld [vmem:[%s9 + $0x64c] sm:$0xff]
    %v3455 = vld [vmem:[%s9 + $0x654] sm:$0xf]
    %v3456 = vld [vmem:[%s9 + $0x658] sm:$0xff]
    %v3457 = vld [vmem:[%s9 + $0x660] sm:$0xff]
    %v3458 = vld [vmem:[%s9 + $0x668] sm:$0xff]
    %v3459 = vld [vmem:[%s9 + $0x670] sm:$0xf]
    %v3460 = vld [vmem:[%s9 + $0x674] sm:$0xff]
    %v3461 = vld [vmem:[%s9 + $0x67c] sm:$0xff]
    %v3462 = vld [vmem:[%s9 + $0x684] sm:$0xff]
    %v3463 = vld [vmem:[%s9 + $0x68c] sm:$0xf]
    %v3464 = vld [vmem:[%s9 + $0x690] sm:$0xff]
    %v3465 = vld [vmem:[%s9 + $0x698] sm:$0xff]
    %v3466 = vld [vmem:[%s9 + $0x6a0] sm:$0xff]
    %v3467 = vld [vmem:[%s9 + $0x6a8] sm:$0xf]
    %v3468 = vld [vmem:[%s9 + $0x6ac] sm:$0xff]
    %v3469 = vld [vmem:[%s9 + $0x6b4] sm:$0xff]
    %v3470 = vld [vmem:[%s9 + $0x6bc] sm:$0xff]
    %v3471 = vld [vmem:[%s9 + $0x6c4] sm:$0xf]
    %v3472 = vld [vmem:[%s9 + $0x6c8] sm:$0xff]
    %v3473 = vld [vmem:[%s9 + $0x6d0] sm:$0xff]
    %v3474 = vld [vmem:[%s9 + $0x6d8] sm:$0xff]
    %v3475 = vld [vmem:[%s9 + $0x6e0] sm:$0xf]
    %v3476 = vld [vmem:[%s9 + $0x6e4] sm:$0xff]
    %v3477 = vld [vmem:[%s9 + $0x6ec] sm:$0xff]
    %v3478 = vld [vmem:[%s9 + $0x6f4] sm:$0xff]
    %v3479 = vld [vmem:[%s9 + $0x6fc] sm:$0xf]
    %v3480 = vld [vmem:[%s10] sm:$0x7f]
    %v3482 = vperm.slane %v3480, 0
    %v3483 = vperm.slane %v3480, 1
    %v3484 = vperm.slane %v3480, 2
    %v3485 = vperm.slane %v3480, 3
    %v3486 = vperm.slane %v3480, 4
    %v3487 = vperm.slane %v3480, 5
    %v3488 = vperm.slane %v3480, 6
    %v3752 = vunpack.c.l.b16 %v3224
    %v3753 = vunpack.c.h.b16 %v3224
    %v3754 = vunpack.c.l.b16 %v3225
    %v3755 = vunpack.c.h.b16 %v3225
    %v3756 = vunpack.c.l.b16 %v3226
    %v3757 = vunpack.c.h.b16 %v3226
    %v3758 = vunpack.c.l.b16 %v3227
    %v3759 = vunpack.c.l.b16 %v3228
    %v3760 = vunpack.c.h.b16 %v3228
    %v3761 = vunpack.c.l.b16 %v3229
    %v3762 = vunpack.c.h.b16 %v3229
    %v3763 = vunpack.c.l.b16 %v3230
    %v3764 = vunpack.c.h.b16 %v3230
    %v3765 = vunpack.c.l.b16 %v3231
    %v3766 = vunpack.c.l.b16 %v3232
    %v3767 = vunpack.c.h.b16 %v3232
    %v3768 = vunpack.c.l.b16 %v3233
    %v3769 = vunpack.c.h.b16 %v3233
    %v3770 = vunpack.c.l.b16 %v3234
    %v3771 = vunpack.c.h.b16 %v3234
    %v3772 = vunpack.c.l.b16 %v3235
    %v3773 = vunpack.c.l.b16 %v3236
    %v3774 = vunpack.c.h.b16 %v3236
    %v3775 = vunpack.c.l.b16 %v3237
    %v3776 = vunpack.c.h.b16 %v3237
    %v3777 = vunpack.c.l.b16 %v3238
    %v3778 = vunpack.c.h.b16 %v3238
    %v3779 = vunpack.c.l.b16 %v3239
    %v3780 = vunpack.c.l.b16 %v3240
    %v3781 = vunpack.c.h.b16 %v3240
    %v3782 = vunpack.c.l.b16 %v3241
    %v3783 = vunpack.c.h.b16 %v3241
    %v3784 = vunpack.c.l.b16 %v3242
    %v3785 = vunpack.c.h.b16 %v3242
    %v3786 = vunpack.c.l.b16 %v3243
    %v3787 = vunpack.c.l.b16 %v3244
    %v3788 = vunpack.c.h.b16 %v3244
    %v3789 = vunpack.c.l.b16 %v3245
    %v3790 = vunpack.c.h.b16 %v3245
    %v3791 = vunpack.c.l.b16 %v3246
    %v3792 = vunpack.c.h.b16 %v3246
    %v3793 = vunpack.c.l.b16 %v3247
    %v3794 = vunpack.c.l.b16 %v3248
    %v3795 = vunpack.c.h.b16 %v3248
    %v3796 = vunpack.c.l.b16 %v3249
    %v3797 = vunpack.c.h.b16 %v3249
    %v3798 = vunpack.c.l.b16 %v3250
    %v3799 = vunpack.c.h.b16 %v3250
    %v3800 = vunpack.c.l.b16 %v3251
    %v3801 = vunpack.c.l.b16 %v3252
    %v3802 = vunpack.c.h.b16 %v3252
    %v3803 = vunpack.c.l.b16 %v3253
    %v3804 = vunpack.c.h.b16 %v3253
    %v3805 = vunpack.c.l.b16 %v3254
    %v3806 = vunpack.c.h.b16 %v3254
    %v3807 = vunpack.c.l.b16 %v3255
    %v3808 = vunpack.c.l.b16 %v3256
    %v3809 = vunpack.c.h.b16 %v3256
    %v3810 = vunpack.c.l.b16 %v3257
    %v3811 = vunpack.c.h.b16 %v3257
    %v3812 = vunpack.c.l.b16 %v3258
    %v3813 = vunpack.c.h.b16 %v3258
    %v3814 = vunpack.c.l.b16 %v3259
    %v3815 = vunpack.c.l.b16 %v3260
    %v3816 = vunpack.c.h.b16 %v3260
    %v3817 = vunpack.c.l.b16 %v3261
    %v3818 = vunpack.c.h.b16 %v3261
    %v3819 = vunpack.c.l.b16 %v3262
    %v3820 = vunpack.c.h.b16 %v3262
    %v3821 = vunpack.c.l.b16 %v3263
    %v3822 = vunpack.c.l.b16 %v3264
    %v3823 = vunpack.c.h.b16 %v3264
    %v3824 = vunpack.c.l.b16 %v3265
    %v3825 = vunpack.c.h.b16 %v3265
    %v3826 = vunpack.c.l.b16 %v3266
    %v3827 = vunpack.c.h.b16 %v3266
    %v3828 = vunpack.c.l.b16 %v3267
    %v3829 = vunpack.c.l.b16 %v3268
    %v3830 = vunpack.c.h.b16 %v3268
    %v3831 = vunpack.c.l.b16 %v3269
    %v3832 = vunpack.c.h.b16 %v3269
    %v3833 = vunpack.c.l.b16 %v3270
    %v3834 = vunpack.c.h.b16 %v3270
    %v3835 = vunpack.c.l.b16 %v3271
    %v3836 = vunpack.c.l.b16 %v3272
    %v3837 = vunpack.c.h.b16 %v3272
    %v3838 = vunpack.c.l.b16 %v3273
    %v3839 = vunpack.c.h.b16 %v3273
    %v3840 = vunpack.c.l.b16 %v3274
    %v3841 = vunpack.c.h.b16 %v3274
    %v3842 = vunpack.c.l.b16 %v3275
    %v3843 = vunpack.c.l.b16 %v3276
    %v3844 = vunpack.c.h.b16 %v3276
    %v3845 = vunpack.c.l.b16 %v3277
    %v3846 = vunpack.c.h.b16 %v3277
    %v3847 = vunpack.c.l.b16 %v3278
    %v3848 = vunpack.c.h.b16 %v3278
    %v3849 = vunpack.c.l.b16 %v3279
    %v3850 = vunpack.c.l.b16 %v3280
    %v3851 = vunpack.c.h.b16 %v3280
    %v3852 = vunpack.c.l.b16 %v3281
    %v3853 = vunpack.c.h.b16 %v3281
    %v3854 = vunpack.c.l.b16 %v3282
    %v3855 = vunpack.c.h.b16 %v3282
    %v3856 = vunpack.c.l.b16 %v3283
    %v3857 = vunpack.c.l.b16 %v3284
    %v3858 = vunpack.c.h.b16 %v3284
    %v3859 = vunpack.c.l.b16 %v3285
    %v3860 = vunpack.c.h.b16 %v3285
    %v3861 = vunpack.c.l.b16 %v3286
    %v3862 = vunpack.c.h.b16 %v3286
    %v3863 = vunpack.c.l.b16 %v3287
    %v3864 = vunpack.c.l.b16 %v3288
    %v3865 = vunpack.c.h.b16 %v3288
    %v3866 = vunpack.c.l.b16 %v3289
    %v3867 = vunpack.c.h.b16 %v3289
    %v3868 = vunpack.c.l.b16 %v3290
    %v3869 = vunpack.c.h.b16 %v3290
    %v3870 = vunpack.c.l.b16 %v3291
    %v3871 = vunpack.c.l.b16 %v3292
    %v3872 = vunpack.c.h.b16 %v3292
    %v3873 = vunpack.c.l.b16 %v3293
    %v3874 = vunpack.c.h.b16 %v3293
    %v3875 = vunpack.c.l.b16 %v3294
    %v3876 = vunpack.c.h.b16 %v3294
    %v3877 = vunpack.c.l.b16 %v3295
    %v3878 = vunpack.c.l.b16 %v3296
    %v3879 = vunpack.c.h.b16 %v3296
    %v3880 = vunpack.c.l.b16 %v3297
    %v3881 = vunpack.c.h.b16 %v3297
    %v3882 = vunpack.c.l.b16 %v3298
    %v3883 = vunpack.c.h.b16 %v3298
    %v3884 = vunpack.c.l.b16 %v3299
    %v3885 = vunpack.c.l.b16 %v3300
    %v3886 = vunpack.c.h.b16 %v3300
    %v3887 = vunpack.c.l.b16 %v3301
    %v3888 = vunpack.c.h.b16 %v3301
    %v3889 = vunpack.c.l.b16 %v3302
    %v3890 = vunpack.c.h.b16 %v3302
    %v3891 = vunpack.c.l.b16 %v3303
    %v3892 = vunpack.c.l.b16 %v3304
    %v3893 = vunpack.c.h.b16 %v3304
    %v3894 = vunpack.c.l.b16 %v3305
    %v3895 = vunpack.c.h.b16 %v3305
    %v3896 = vunpack.c.l.b16 %v3306
    %v3897 = vunpack.c.h.b16 %v3306
    %v3898 = vunpack.c.l.b16 %v3307
    %v3899 = vunpack.c.l.b16 %v3308
    %v3900 = vunpack.c.h.b16 %v3308
    %v3901 = vunpack.c.l.b16 %v3309
    %v3902 = vunpack.c.h.b16 %v3309
    %v3903 = vunpack.c.l.b16 %v3310
    %v3904 = vunpack.c.h.b16 %v3310
    %v3905 = vunpack.c.l.b16 %v3311
    %v3906 = vunpack.c.l.b16 %v3312
    %v3907 = vunpack.c.h.b16 %v3312
    %v3908 = vunpack.c.l.b16 %v3313
    %v3909 = vunpack.c.h.b16 %v3313
    %v3910 = vunpack.c.l.b16 %v3314
    %v3911 = vunpack.c.h.b16 %v3314
    %v3912 = vunpack.c.l.b16 %v3315
    %v3913 = vunpack.c.l.b16 %v3316
    %v3914 = vunpack.c.h.b16 %v3316
    %v3915 = vunpack.c.l.b16 %v3317
    %v3916 = vunpack.c.h.b16 %v3317
    %v3917 = vunpack.c.l.b16 %v3318
    %v3918 = vunpack.c.h.b16 %v3318
    %v3919 = vunpack.c.l.b16 %v3319
    %v3920 = vunpack.c.l.b16 %v3320
    %v3921 = vunpack.c.h.b16 %v3320
    %v3922 = vunpack.c.l.b16 %v3321
    %v3923 = vunpack.c.h.b16 %v3321
    %v3924 = vunpack.c.l.b16 %v3322
    %v3925 = vunpack.c.h.b16 %v3322
    %v3926 = vunpack.c.l.b16 %v3323
    %v3927 = vunpack.c.l.b16 %v3324
    %v3928 = vunpack.c.h.b16 %v3324
    %v3929 = vunpack.c.l.b16 %v3325
    %v3930 = vunpack.c.h.b16 %v3325
    %v3931 = vunpack.c.l.b16 %v3326
    %v3932 = vunpack.c.h.b16 %v3326
    %v3933 = vunpack.c.l.b16 %v3327
    %v3934 = vunpack.c.l.b16 %v3328
    %v3935 = vunpack.c.h.b16 %v3328
    %v3936 = vunpack.c.l.b16 %v3329
    %v3937 = vunpack.c.h.b16 %v3329
    %v3938 = vunpack.c.l.b16 %v3330
    %v3939 = vunpack.c.h.b16 %v3330
    %v3940 = vunpack.c.l.b16 %v3331
    %v3941 = vunpack.c.l.b16 %v3332
    %v3942 = vunpack.c.h.b16 %v3332
    %v3943 = vunpack.c.l.b16 %v3333
    %v3944 = vunpack.c.h.b16 %v3333
    %v3945 = vunpack.c.l.b16 %v3334
    %v3946 = vunpack.c.h.b16 %v3334
    %v3947 = vunpack.c.l.b16 %v3335
    %v3948 = vunpack.c.l.b16 %v3336
    %v3949 = vunpack.c.h.b16 %v3336
    %v3950 = vunpack.c.l.b16 %v3337
    %v3951 = vunpack.c.h.b16 %v3337
    %v3952 = vunpack.c.l.b16 %v3338
    %v3953 = vunpack.c.h.b16 %v3338
    %v3954 = vunpack.c.l.b16 %v3339
    %v3955 = vunpack.c.l.b16 %v3340
    %v3956 = vunpack.c.h.b16 %v3340
    %v3957 = vunpack.c.l.b16 %v3341
    %v3958 = vunpack.c.h.b16 %v3341
    %v3959 = vunpack.c.l.b16 %v3342
    %v3960 = vunpack.c.h.b16 %v3342
    %v3961 = vunpack.c.l.b16 %v3343
    %v3962 = vunpack.c.l.b16 %v3344
    %v3963 = vunpack.c.h.b16 %v3344
    %v3964 = vunpack.c.l.b16 %v3345
    %v3965 = vunpack.c.h.b16 %v3345
    %v3966 = vunpack.c.l.b16 %v3346
    %v3967 = vunpack.c.h.b16 %v3346
    %v3968 = vunpack.c.l.b16 %v3347
    %v3969 = vunpack.c.l.b16 %v3348
    %v3970 = vunpack.c.h.b16 %v3348
    %v3971 = vunpack.c.l.b16 %v3349
    %v3972 = vunpack.c.h.b16 %v3349
    %v3973 = vunpack.c.l.b16 %v3350
    %v3974 = vunpack.c.h.b16 %v3350
    %v3975 = vunpack.c.l.b16 %v3351
    %v3976 = vunpack.c.l.b16 %v3352
    %v3977 = vunpack.c.h.b16 %v3352
    %v3978 = vunpack.c.l.b16 %v3353
    %v3979 = vunpack.c.h.b16 %v3353
    %v3980 = vunpack.c.l.b16 %v3354
    %v3981 = vunpack.c.h.b16 %v3354
    %v3982 = vunpack.c.l.b16 %v3355
    %v3983 = vunpack.c.l.b16 %v3356
    %v3984 = vunpack.c.h.b16 %v3356
    %v3985 = vunpack.c.l.b16 %v3357
    %v3986 = vunpack.c.h.b16 %v3357
    %v3987 = vunpack.c.l.b16 %v3358
    %v3988 = vunpack.c.h.b16 %v3358
    %v3989 = vunpack.c.l.b16 %v3359
    %v3990 = vunpack.c.l.b16 %v3360
    %v3991 = vunpack.c.h.b16 %v3360
    %v3992 = vunpack.c.l.b16 %v3361
    %v3993 = vunpack.c.h.b16 %v3361
    %v3994 = vunpack.c.l.b16 %v3362
    %v3995 = vunpack.c.h.b16 %v3362
    %v3996 = vunpack.c.l.b16 %v3363
    %v3997 = vunpack.c.l.b16 %v3364
    %v3998 = vunpack.c.h.b16 %v3364
    %v3999 = vunpack.c.l.b16 %v3365
    %v4000 = vunpack.c.h.b16 %v3365
    %v4001 = vunpack.c.l.b16 %v3366
    %v4002 = vunpack.c.h.b16 %v3366
    %v4003 = vunpack.c.l.b16 %v3367
    %v4004 = vunpack.c.l.b16 %v3368
    %v4005 = vunpack.c.h.b16 %v3368
    %v4006 = vunpack.c.l.b16 %v3369
    %v4007 = vunpack.c.h.b16 %v3369
    %v4008 = vunpack.c.l.b16 %v3370
    %v4009 = vunpack.c.h.b16 %v3370
    %v4010 = vunpack.c.l.b16 %v3371
    %v4011 = vunpack.c.l.b16 %v3372
    %v4012 = vunpack.c.h.b16 %v3372
    %v4013 = vunpack.c.l.b16 %v3373
    %v4014 = vunpack.c.h.b16 %v3373
    %v4015 = vunpack.c.l.b16 %v3374
    %v4016 = vunpack.c.h.b16 %v3374
    %v4017 = vunpack.c.l.b16 %v3375
    %v4018 = vunpack.c.l.b16 %v3376
    %v4019 = vunpack.c.h.b16 %v3376
    %v4020 = vunpack.c.l.b16 %v3377
    %v4021 = vunpack.c.h.b16 %v3377
    %v4022 = vunpack.c.l.b16 %v3378
    %v4023 = vunpack.c.h.b16 %v3378
    %v4024 = vunpack.c.l.b16 %v3379
    %v4025 = vunpack.c.l.b16 %v3380
    %v4026 = vunpack.c.h.b16 %v3380
    %v4027 = vunpack.c.l.b16 %v3381
    %v4028 = vunpack.c.h.b16 %v3381
    %v4029 = vunpack.c.l.b16 %v3382
    %v4030 = vunpack.c.h.b16 %v3382
    %v4031 = vunpack.c.l.b16 %v3383
    %v4032 = vunpack.c.l.b16 %v3384
    %v4033 = vunpack.c.h.b16 %v3384
    %v4034 = vunpack.c.l.b16 %v3385
    %v4035 = vunpack.c.h.b16 %v3385
    %v4036 = vunpack.c.l.b16 %v3386
    %v4037 = vunpack.c.h.b16 %v3386
    %v4038 = vunpack.c.l.b16 %v3387
    %v4039 = vunpack.c.l.b16 %v3388
    %v4040 = vunpack.c.h.b16 %v3388
    %v4041 = vunpack.c.l.b16 %v3389
    %v4042 = vunpack.c.h.b16 %v3389
    %v4043 = vunpack.c.l.b16 %v3390
    %v4044 = vunpack.c.h.b16 %v3390
    %v4045 = vunpack.c.l.b16 %v3391
    %v4046 = vunpack.c.l.b16 %v3392
    %v4047 = vunpack.c.h.b16 %v3392
    %v4048 = vunpack.c.l.b16 %v3393
    %v4049 = vunpack.c.h.b16 %v3393
    %v4050 = vunpack.c.l.b16 %v3394
    %v4051 = vunpack.c.h.b16 %v3394
    %v4052 = vunpack.c.l.b16 %v3395
    %v4053 = vunpack.c.l.b16 %v3396
    %v4054 = vunpack.c.h.b16 %v3396
    %v4055 = vunpack.c.l.b16 %v3397
    %v4056 = vunpack.c.h.b16 %v3397
    %v4057 = vunpack.c.l.b16 %v3398
    %v4058 = vunpack.c.h.b16 %v3398
    %v4059 = vunpack.c.l.b16 %v3399
    %v4060 = vunpack.c.l.b16 %v3400
    %v4061 = vunpack.c.h.b16 %v3400
    %v4062 = vunpack.c.l.b16 %v3401
    %v4063 = vunpack.c.h.b16 %v3401
    %v4064 = vunpack.c.l.b16 %v3402
    %v4065 = vunpack.c.h.b16 %v3402
    %v4066 = vunpack.c.l.b16 %v3403
    %v4067 = vunpack.c.l.b16 %v3404
    %v4068 = vunpack.c.h.b16 %v3404
    %v4069 = vunpack.c.l.b16 %v3405
    %v4070 = vunpack.c.h.b16 %v3405
    %v4071 = vunpack.c.l.b16 %v3406
    %v4072 = vunpack.c.h.b16 %v3406
    %v4073 = vunpack.c.l.b16 %v3407
    %v4074 = vunpack.c.l.b16 %v3408
    %v4075 = vunpack.c.h.b16 %v3408
    %v4076 = vunpack.c.l.b16 %v3409
    %v4077 = vunpack.c.h.b16 %v3409
    %v4078 = vunpack.c.l.b16 %v3410
    %v4079 = vunpack.c.h.b16 %v3410
    %v4080 = vunpack.c.l.b16 %v3411
    %v4081 = vunpack.c.l.b16 %v3412
    %v4082 = vunpack.c.h.b16 %v3412
    %v4083 = vunpack.c.l.b16 %v3413
    %v4084 = vunpack.c.h.b16 %v3413
    %v4085 = vunpack.c.l.b16 %v3414
    %v4086 = vunpack.c.h.b16 %v3414
    %v4087 = vunpack.c.l.b16 %v3415
    %v4088 = vunpack.c.l.b16 %v3416
    %v4089 = vunpack.c.h.b16 %v3416
    %v4090 = vunpack.c.l.b16 %v3417
    %v4091 = vunpack.c.h.b16 %v3417
    %v4092 = vunpack.c.l.b16 %v3418
    %v4093 = vunpack.c.h.b16 %v3418
    %v4094 = vunpack.c.l.b16 %v3419
    %v4095 = vunpack.c.l.b16 %v3420
    %v4096 = vunpack.c.h.b16 %v3420
    %v4097 = vunpack.c.l.b16 %v3421
    %v4098 = vunpack.c.h.b16 %v3421
    %v4099 = vunpack.c.l.b16 %v3422
    %v4100 = vunpack.c.h.b16 %v3422
    %v4101 = vunpack.c.l.b16 %v3423
    %v4102 = vunpack.c.l.b16 %v3424
    %v4103 = vunpack.c.h.b16 %v3424
    %v4104 = vunpack.c.l.b16 %v3425
    %v4105 = vunpack.c.h.b16 %v3425
    %v4106 = vunpack.c.l.b16 %v3426
    %v4107 = vunpack.c.h.b16 %v3426
    %v4108 = vunpack.c.l.b16 %v3427
    %v4109 = vunpack.c.l.b16 %v3428
    %v4110 = vunpack.c.h.b16 %v3428
    %v4111 = vunpack.c.l.b16 %v3429
    %v4112 = vunpack.c.h.b16 %v3429
    %v4113 = vunpack.c.l.b16 %v3430
    %v4114 = vunpack.c.h.b16 %v3430
    %v4115 = vunpack.c.l.b16 %v3431
    %v4116 = vunpack.c.l.b16 %v3432
    %v4117 = vunpack.c.h.b16 %v3432
    %v4118 = vunpack.c.l.b16 %v3433
    %v4119 = vunpack.c.h.b16 %v3433
    %v4120 = vunpack.c.l.b16 %v3434
    %v4121 = vunpack.c.h.b16 %v3434
    %v4122 = vunpack.c.l.b16 %v3435
    %v4123 = vunpack.c.l.b16 %v3436
    %v4124 = vunpack.c.h.b16 %v3436
    %v4125 = vunpack.c.l.b16 %v3437
    %v4126 = vunpack.c.h.b16 %v3437
    %v4127 = vunpack.c.l.b16 %v3438
    %v4128 = vunpack.c.h.b16 %v3438
    %v4129 = vunpack.c.l.b16 %v3439
    %v4130 = vunpack.c.l.b16 %v3440
    %v4131 = vunpack.c.h.b16 %v3440
    %v4132 = vunpack.c.l.b16 %v3441
    %v4133 = vunpack.c.h.b16 %v3441
    %v4134 = vunpack.c.l.b16 %v3442
    %v4135 = vunpack.c.h.b16 %v3442
    %v4136 = vunpack.c.l.b16 %v3443
    %v4137 = vunpack.c.l.b16 %v3444
    %v4138 = vunpack.c.h.b16 %v3444
    %v4139 = vunpack.c.l.b16 %v3445
    %v4140 = vunpack.c.h.b16 %v3445
    %v4141 = vunpack.c.l.b16 %v3446
    %v4142 = vunpack.c.h.b16 %v3446
    %v4143 = vunpack.c.l.b16 %v3447
    %v4144 = vunpack.c.l.b16 %v3448
    %v4145 = vunpack.c.h.b16 %v3448
    %v4146 = vunpack.c.l.b16 %v3449
    %v4147 = vunpack.c.h.b16 %v3449
    %v4148 = vunpack.c.l.b16 %v3450
    %v4149 = vunpack.c.h.b16 %v3450
    %v4150 = vunpack.c.l.b16 %v3451
    %v4151 = vunpack.c.l.b16 %v3452
    %v4152 = vunpack.c.h.b16 %v3452
    %v4153 = vunpack.c.l.b16 %v3453
    %v4154 = vunpack.c.h.b16 %v3453
    %v4155 = vunpack.c.l.b16 %v3454
    %v4156 = vunpack.c.h.b16 %v3454
    %v4157 = vunpack.c.l.b16 %v3455
    %v4158 = vunpack.c.l.b16 %v3456
    %v4159 = vunpack.c.h.b16 %v3456
    %v4160 = vunpack.c.l.b16 %v3457
    %v4161 = vunpack.c.h.b16 %v3457
    %v4162 = vunpack.c.l.b16 %v3458
    %v4163 = vunpack.c.h.b16 %v3458
    %v4164 = vunpack.c.l.b16 %v3459
    %v4165 = vunpack.c.l.b16 %v3460
    %v4166 = vunpack.c.h.b16 %v3460
    %v4167 = vunpack.c.l.b16 %v3461
    %v4168 = vunpack.c.h.b16 %v3461
    %v4169 = vunpack.c.l.b16 %v3462
    %v4170 = vunpack.c.h.b16 %v3462
    %v4171 = vunpack.c.l.b16 %v3463
    %v4172 = vunpack.c.l.b16 %v3464
    %v4173 = vunpack.c.h.b16 %v3464
    %v4174 = vunpack.c.l.b16 %v3465
    %v4175 = vunpack.c.h.b16 %v3465
    %v4176 = vunpack.c.l.b16 %v3466
    %v4177 = vunpack.c.h.b16 %v3466
    %v4178 = vunpack.c.l.b16 %v3467
    %v4179 = vunpack.c.l.b16 %v3468
    %v4180 = vunpack.c.h.b16 %v3468
    %v4181 = vunpack.c.l.b16 %v3469
    %v4182 = vunpack.c.h.b16 %v3469
    %v4183 = vunpack.c.l.b16 %v3470
    %v4184 = vunpack.c.h.b16 %v3470
    %v4185 = vunpack.c.l.b16 %v3471
    %v4186 = vunpack.c.l.b16 %v3472
    %v4187 = vunpack.c.h.b16 %v3472
    %v4188 = vunpack.c.l.b16 %v3473
    %v4189 = vunpack.c.h.b16 %v3473
    %v4190 = vunpack.c.l.b16 %v3474
    %v4191 = vunpack.c.h.b16 %v3474
    %v4192 = vunpack.c.l.b16 %v3475
    %v4193 = vunpack.c.l.b16 %v3476
    %v4194 = vunpack.c.h.b16 %v3476
    %v4195 = vunpack.c.l.b16 %v3477
    %v4196 = vunpack.c.h.b16 %v3477
    %v4197 = vunpack.c.l.b16 %v3478
    %v4198 = vunpack.c.h.b16 %v3478
    %v4199 = vunpack.c.l.b16 %v3479
    %v4200 = vpack.c.b16 %v3759, %v3752
    %v4201 = vpack.c.b16 %v3760, %v3753
    %v4202 = vpack.c.b16 %v3761, %v3754
    %v4203 = vpack.c.b16 %v3762, %v3755
    %v4204 = vpack.c.b16 %v3763, %v3756
    %v4205 = vpack.c.b16 %v3764, %v3757
    %v4206 = vpack.c.b16 %v3765, %v3758
    %v4207 = vpack.c.b16 %v3773, %v3766
    %v4208 = vpack.c.b16 %v3774, %v3767
    %v4209 = vpack.c.b16 %v3775, %v3768
    %v4210 = vpack.c.b16 %v3776, %v3769
    %v4211 = vpack.c.b16 %v3777, %v3770
    %v4212 = vpack.c.b16 %v3778, %v3771
    %v4213 = vpack.c.b16 %v3779, %v3772
    %v4214 = vpack.c.b16 %v3787, %v3780
    %v4215 = vpack.c.b16 %v3788, %v3781
    %v4216 = vpack.c.b16 %v3789, %v3782
    %v4217 = vpack.c.b16 %v3790, %v3783
    %v4218 = vpack.c.b16 %v3791, %v3784
    %v4219 = vpack.c.b16 %v3792, %v3785
    %v4220 = vpack.c.b16 %v3793, %v3786
    %v4221 = vpack.c.b16 %v3801, %v3794
    %v4222 = vpack.c.b16 %v3802, %v3795
    %v4223 = vpack.c.b16 %v3803, %v3796
    %v4224 = vpack.c.b16 %v3804, %v3797
    %v4225 = vpack.c.b16 %v3805, %v3798
    %v4226 = vpack.c.b16 %v3806, %v3799
    %v4227 = vpack.c.b16 %v3807, %v3800
    %v4228 = vpack.c.b16 %v3815, %v3808
    %v4229 = vpack.c.b16 %v3816, %v3809
    %v4230 = vpack.c.b16 %v3817, %v3810
    %v4231 = vpack.c.b16 %v3818, %v3811
    %v4232 = vpack.c.b16 %v3819, %v3812
    %v4233 = vpack.c.b16 %v3820, %v3813
    %v4234 = vpack.c.b16 %v3821, %v3814
    %v4235 = vpack.c.b16 %v3829, %v3822
    %v4236 = vpack.c.b16 %v3830, %v3823
    %v4237 = vpack.c.b16 %v3831, %v3824
    %v4238 = vpack.c.b16 %v3832, %v3825
    %v4239 = vpack.c.b16 %v3833, %v3826
    %v4240 = vpack.c.b16 %v3834, %v3827
    %v4241 = vpack.c.b16 %v3835, %v3828
    %v4242 = vpack.c.b16 %v3843, %v3836
    %v4243 = vpack.c.b16 %v3844, %v3837
    %v4244 = vpack.c.b16 %v3845, %v3838
    %v4245 = vpack.c.b16 %v3846, %v3839
    %v4246 = vpack.c.b16 %v3847, %v3840
    %v4247 = vpack.c.b16 %v3848, %v3841
    %v4248 = vpack.c.b16 %v3849, %v3842
    %v4249 = vpack.c.b16 %v3857, %v3850
    %v4250 = vpack.c.b16 %v3858, %v3851
    %v4251 = vpack.c.b16 %v3859, %v3852
    %v4252 = vpack.c.b16 %v3860, %v3853
    %v4253 = vpack.c.b16 %v3861, %v3854
    %v4254 = vpack.c.b16 %v3862, %v3855
    %v4255 = vpack.c.b16 %v3863, %v3856
    %v4256 = vpack.c.b16 %v3871, %v3864
    %v4257 = vpack.c.b16 %v3872, %v3865
    %v4258 = vpack.c.b16 %v3873, %v3866
    %v4259 = vpack.c.b16 %v3874, %v3867
    %v4260 = vpack.c.b16 %v3875, %v3868
    %v4261 = vpack.c.b16 %v3876, %v3869
    %v4262 = vpack.c.b16 %v3877, %v3870
    %v4263 = vpack.c.b16 %v3885, %v3878
    %v4264 = vpack.c.b16 %v3886, %v3879
    %v4265 = vpack.c.b16 %v3887, %v3880
    %v4266 = vpack.c.b16 %v3888, %v3881
    %v4267 = vpack.c.b16 %v3889, %v3882
    %v4268 = vpack.c.b16 %v3890, %v3883
    %v4269 = vpack.c.b16 %v3891, %v3884
    %v4270 = vpack.c.b16 %v3899, %v3892
    %v4271 = vpack.c.b16 %v3900, %v3893
    %v4272 = vpack.c.b16 %v3901, %v3894
    %v4273 = vpack.c.b16 %v3902, %v3895
    %v4274 = vpack.c.b16 %v3903, %v3896
    %v4275 = vpack.c.b16 %v3904, %v3897
    %v4276 = vpack.c.b16 %v3905, %v3898
    %v4277 = vpack.c.b16 %v3913, %v3906
    %v4278 = vpack.c.b16 %v3914, %v3907
    %v4279 = vpack.c.b16 %v3915, %v3908
    %v4280 = vpack.c.b16 %v3916, %v3909
    %v4281 = vpack.c.b16 %v3917, %v3910
    %v4282 = vpack.c.b16 %v3918, %v3911
    %v4283 = vpack.c.b16 %v3919, %v3912
    %v4284 = vpack.c.b16 %v3927, %v3920
    %v4285 = vpack.c.b16 %v3928, %v3921
    %v4286 = vpack.c.b16 %v3929, %v3922
    %v4287 = vpack.c.b16 %v3930, %v3923
    %v4288 = vpack.c.b16 %v3931, %v3924
    %v4289 = vpack.c.b16 %v3932, %v3925
    %v4290 = vpack.c.b16 %v3933, %v3926
    %v4291 = vpack.c.b16 %v3941, %v3934
    %v4292 = vpack.c.b16 %v3942, %v3935
    %v4293 = vpack.c.b16 %v3943, %v3936
    %v4294 = vpack.c.b16 %v3944, %v3937
    %v4295 = vpack.c.b16 %v3945, %v3938
    %v4296 = vpack.c.b16 %v3946, %v3939
    %v4297 = vpack.c.b16 %v3947, %v3940
    %v4298 = vpack.c.b16 %v3955, %v3948
    %v4299 = vpack.c.b16 %v3956, %v3949
    %v4300 = vpack.c.b16 %v3957, %v3950
    %v4301 = vpack.c.b16 %v3958, %v3951
    %v4302 = vpack.c.b16 %v3959, %v3952
    %v4303 = vpack.c.b16 %v3960, %v3953
    %v4304 = vpack.c.b16 %v3961, %v3954
    %v4305 = vpack.c.b16 %v3969, %v3962
    %v4306 = vpack.c.b16 %v3970, %v3963
    %v4307 = vpack.c.b16 %v3971, %v3964
    %v4308 = vpack.c.b16 %v3972, %v3965
    %v4309 = vpack.c.b16 %v3973, %v3966
    %v4310 = vpack.c.b16 %v3974, %v3967
    %v4311 = vpack.c.b16 %v3975, %v3968
    %v4312 = vpack.c.b16 %v3983, %v3976
    %v4313 = vpack.c.b16 %v3984, %v3977
    %v4314 = vpack.c.b16 %v3985, %v3978
    %v4315 = vpack.c.b16 %v3986, %v3979
    %v4316 = vpack.c.b16 %v3987, %v3980
    %v4317 = vpack.c.b16 %v3988, %v3981
    %v4318 = vpack.c.b16 %v3989, %v3982
    %v4319 = vpack.c.b16 %v3997, %v3990
    %v4320 = vpack.c.b16 %v3998, %v3991
    %v4321 = vpack.c.b16 %v3999, %v3992
    %v4322 = vpack.c.b16 %v4000, %v3993
    %v4323 = vpack.c.b16 %v4001, %v3994
    %v4324 = vpack.c.b16 %v4002, %v3995
    %v4325 = vpack.c.b16 %v4003, %v3996
    %v4326 = vpack.c.b16 %v4011, %v4004
    %v4327 = vpack.c.b16 %v4012, %v4005
    %v4328 = vpack.c.b16 %v4013, %v4006
    %v4329 = vpack.c.b16 %v4014, %v4007
    %v4330 = vpack.c.b16 %v4015, %v4008
    %v4331 = vpack.c.b16 %v4016, %v4009
    %v4332 = vpack.c.b16 %v4017, %v4010
    %v4333 = vpack.c.b16 %v4025, %v4018
    %v4334 = vpack.c.b16 %v4026, %v4019
    %v4335 = vpack.c.b16 %v4027, %v4020
    %v4336 = vpack.c.b16 %v4028, %v4021
    %v4337 = vpack.c.b16 %v4029, %v4022
    %v4338 = vpack.c.b16 %v4030, %v4023
    %v4339 = vpack.c.b16 %v4031, %v4024
    %v4340 = vpack.c.b16 %v4039, %v4032
    %v4341 = vpack.c.b16 %v4040, %v4033
    %v4342 = vpack.c.b16 %v4041, %v4034
    %v4343 = vpack.c.b16 %v4042, %v4035
    %v4344 = vpack.c.b16 %v4043, %v4036
    %v4345 = vpack.c.b16 %v4044, %v4037
    %v4346 = vpack.c.b16 %v4045, %v4038
    %v4347 = vpack.c.b16 %v4053, %v4046
    %v4348 = vpack.c.b16 %v4054, %v4047
    %v4349 = vpack.c.b16 %v4055, %v4048
    %v4350 = vpack.c.b16 %v4056, %v4049
    %v4351 = vpack.c.b16 %v4057, %v4050
    %v4352 = vpack.c.b16 %v4058, %v4051
    %v4353 = vpack.c.b16 %v4059, %v4052
    %v4354 = vpack.c.b16 %v4067, %v4060
    %v4355 = vpack.c.b16 %v4068, %v4061
    %v4356 = vpack.c.b16 %v4069, %v4062
    %v4357 = vpack.c.b16 %v4070, %v4063
    %v4358 = vpack.c.b16 %v4071, %v4064
    %v4359 = vpack.c.b16 %v4072, %v4065
    %v4360 = vpack.c.b16 %v4073, %v4066
    %v4361 = vpack.c.b16 %v4081, %v4074
    %v4362 = vpack.c.b16 %v4082, %v4075
    %v4363 = vpack.c.b16 %v4083, %v4076
    %v4364 = vpack.c.b16 %v4084, %v4077
    %v4365 = vpack.c.b16 %v4085, %v4078
    %v4366 = vpack.c.b16 %v4086, %v4079
    %v4367 = vpack.c.b16 %v4087, %v4080
    %v4368 = vpack.c.b16 %v4095, %v4088
    %v4369 = vpack.c.b16 %v4096, %v4089
    %v4370 = vpack.c.b16 %v4097, %v4090
    %v4371 = vpack.c.b16 %v4098, %v4091
    %v4372 = vpack.c.b16 %v4099, %v4092
    %v4373 = vpack.c.b16 %v4100, %v4093
    %v4374 = vpack.c.b16 %v4101, %v4094
    %v4375 = vpack.c.b16 %v4109, %v4102
    %v4376 = vpack.c.b16 %v4110, %v4103
    %v4377 = vpack.c.b16 %v4111, %v4104
    %v4378 = vpack.c.b16 %v4112, %v4105
    %v4379 = vpack.c.b16 %v4113, %v4106
    %v4380 = vpack.c.b16 %v4114, %v4107
    %v4381 = vpack.c.b16 %v4115, %v4108
    %v4382 = vpack.c.b16 %v4123, %v4116
    %v4383 = vpack.c.b16 %v4124, %v4117
    %v4384 = vpack.c.b16 %v4125, %v4118
    %v4385 = vpack.c.b16 %v4126, %v4119
    %v4386 = vpack.c.b16 %v4127, %v4120
    %v4387 = vpack.c.b16 %v4128, %v4121
    %v4388 = vpack.c.b16 %v4129, %v4122
    %v4389 = vpack.c.b16 %v4137, %v4130
    %v4390 = vpack.c.b16 %v4138, %v4131
    %v4391 = vpack.c.b16 %v4139, %v4132
    %v4392 = vpack.c.b16 %v4140, %v4133
    %v4393 = vpack.c.b16 %v4141, %v4134
    %v4394 = vpack.c.b16 %v4142, %v4135
    %v4395 = vpack.c.b16 %v4143, %v4136
    %v4396 = vpack.c.b16 %v4151, %v4144
    %v4397 = vpack.c.b16 %v4152, %v4145
    %v4398 = vpack.c.b16 %v4153, %v4146
    %v4399 = vpack.c.b16 %v4154, %v4147
    %v4400 = vpack.c.b16 %v4155, %v4148
    %v4401 = vpack.c.b16 %v4156, %v4149
    %v4402 = vpack.c.b16 %v4157, %v4150
    %v4403 = vpack.c.b16 %v4165, %v4158
    %v4404 = vpack.c.b16 %v4166, %v4159
    %v4405 = vpack.c.b16 %v4167, %v4160
    %v4406 = vpack.c.b16 %v4168, %v4161
    %v4407 = vpack.c.b16 %v4169, %v4162
    %v4408 = vpack.c.b16 %v4170, %v4163
    %v4409 = vpack.c.b16 %v4171, %v4164
    %v4410 = vpack.c.b16 %v4179, %v4172
    %v4411 = vpack.c.b16 %v4180, %v4173
    %v4412 = vpack.c.b16 %v4181, %v4174
    %v4413 = vpack.c.b16 %v4182, %v4175
    %v4414 = vpack.c.b16 %v4183, %v4176
    %v4415 = vpack.c.b16 %v4184, %v4177
    %v4416 = vpack.c.b16 %v4185, %v4178
    %v4417 = vpack.c.b16 %v4193, %v4186
    %v4418 = vpack.c.b16 %v4194, %v4187
    %v4419 = vpack.c.b16 %v4195, %v4188
    %v4420 = vpack.c.b16 %v4196, %v4189
    %v4421 = vpack.c.b16 %v4197, %v4190
    %v4422 = vpack.c.b16 %v4198, %v4191
    %v4423 = vpack.c.b16 %v4199, %v4192
    %4648 = vmatpush.bf16.msra.mxu0 %v4249
    %4649 = vmatpush.bf16.msra.mxu0 %v4242
    %4650 = vmatpush.bf16.msra.mxu0 %v4235
    %4651 = vmatpush.bf16.msra.mxu0 %v4228
    %4652 = vmatpush.bf16.msra.mxu0 %v4221
    %4653 = vmatpush.bf16.msra.mxu0 %v4214
    %4654 = vmatpush.bf16.msra.mxu0 %v4207
    %4655 = vmatpush.bf16.msra.mxu0 %v4200
    %4656 = vmatmul.bf16.gmra.mxu0 %v3220
    %v4657 = vpop.f32.mrf.mxu0
    %v4658 = vadd.f32 %v3482, %v4657
    %v4659 = vpop.f32.mrf.mxu0
    %4660 = vdwg.mxu0
    %4661 = vmatpush.bf16.msra.mxu0 %v4305
    %4662 = vmatpush.bf16.msra.mxu0 %v4298
    %4663 = vmatpush.bf16.msra.mxu0 %v4291
    %4664 = vmatpush.bf16.msra.mxu0 %v4284
    %4665 = vmatpush.bf16.msra.mxu0 %v4277
    %4666 = vmatpush.bf16.msra.mxu0 %v4270
    %4667 = vmatpush.bf16.msra.mxu0 %v4263
    %4668 = vmatpush.bf16.msra.mxu0 %v4256
    %4669 = vmatmul.bf16.gmra.mxu0 %v3221
    %v4670 = vpop.f32.mrf.mxu0
    %v4671 = vadd.f32 %v4658, %v4670
    %v4672 = vpop.f32.mrf.mxu0
    %4673 = vdwg.mxu0
    %4674 = vmatpush.bf16.msra.mxu0 %v4361
    %4675 = vmatpush.bf16.msra.mxu0 %v4354
    %4676 = vmatpush.bf16.msra.mxu0 %v4347
    %4677 = vmatpush.bf16.msra.mxu0 %v4340
    %4678 = vmatpush.bf16.msra.mxu0 %v4333
    %4679 = vmatpush.bf16.msra.mxu0 %v4326
    %4680 = vmatpush.bf16.msra.mxu0 %v4319
    %4681 = vmatpush.bf16.msra.mxu0 %v4312
    %4682 = vmatmul.bf16.gmra.mxu0 %v3222
    %v4683 = vpop.f32.mrf.mxu0
    %v4684 = vadd.f32 %v4671, %v4683
    %v4685 = vpop.f32.mrf.mxu0
    %4686 = vdwg.mxu0
    %4687 = vmatpush.bf16.msra.mxu0 %v4417
    %4688 = vmatpush.bf16.msra.mxu0 %v4410
    %4689 = vmatpush.bf16.msra.mxu0 %v4403
    %4690 = vmatpush.bf16.msra.mxu0 %v4396
    %4691 = vmatpush.bf16.msra.mxu0 %v4389
    %4692 = vmatpush.bf16.msra.mxu0 %v4382
    %4693 = vmatpush.bf16.msra.mxu0 %v4375
    %4694 = vmatpush.bf16.msra.mxu0 %v4368
    %4695 = vmatmul.bf16.gmra.mxu0 %v3223
    %v4696 = vpop.f32.mrf.mxu0
    %v4697 = vadd.f32 %v4684, %v4696
    %v4698 = vpop.f32.mrf.mxu0
    %4699 = vdwg.mxu0
    %4700 = vmatpush.bf16.msra.mxu0 %v4250
    %4701 = vmatpush.bf16.msra.mxu0 %v4243
    %4702 = vmatpush.bf16.msra.mxu0 %v4236
    %4703 = vmatpush.bf16.msra.mxu0 %v4229
    %4704 = vmatpush.bf16.msra.mxu0 %v4222
    %4705 = vmatpush.bf16.msra.mxu0 %v4215
    %4706 = vmatpush.bf16.msra.mxu0 %v4208
    %4707 = vmatpush.bf16.msra.mxu0 %v4201
    %4708 = vmatmul.bf16.gmra.mxu0 %v3220
    %v4709 = vpop.f32.mrf.mxu0
    %v4710 = vadd.f32 %v3483, %v4709
    %v4711 = vpop.f32.mrf.mxu0
    %4712 = vdwg.mxu0
    %4713 = vmatpush.bf16.msra.mxu0 %v4306
    %4714 = vmatpush.bf16.msra.mxu0 %v4299
    %4715 = vmatpush.bf16.msra.mxu0 %v4292
    %4716 = vmatpush.bf16.msra.mxu0 %v4285
    %4717 = vmatpush.bf16.msra.mxu0 %v4278
    %4718 = vmatpush.bf16.msra.mxu0 %v4271
    %4719 = vmatpush.bf16.msra.mxu0 %v4264
    %4720 = vmatpush.bf16.msra.mxu0 %v4257
    %4721 = vmatmul.bf16.gmra.mxu0 %v3221
    %v4722 = vpop.f32.mrf.mxu0
    %v4723 = vadd.f32 %v4710, %v4722
    %v4724 = vpop.f32.mrf.mxu0
    %4725 = vdwg.mxu0
    %4726 = vmatpush.bf16.msra.mxu0 %v4362
    %4727 = vmatpush.bf16.msra.mxu0 %v4355
    %4728 = vmatpush.bf16.msra.mxu0 %v4348
    %4729 = vmatpush.bf16.msra.mxu0 %v4341
    %4730 = vmatpush.bf16.msra.mxu0 %v4334
    %4731 = vmatpush.bf16.msra.mxu0 %v4327
    %4732 = vmatpush.bf16.msra.mxu0 %v4320
    %4733 = vmatpush.bf16.msra.mxu0 %v4313
    %4734 = vmatmul.bf16.gmra.mxu0 %v3222
    %v4735 = vpop.f32.mrf.mxu0
    %v4736 = vadd.f32 %v4723, %v4735
    %v4737 = vpop.f32.mrf.mxu0
    %4738 = vdwg.mxu0
    %4739 = vmatpush.bf16.msra.mxu0 %v4418
    %4740 = vmatpush.bf16.msra.mxu0 %v4411
    %4741 = vmatpush.bf16.msra.mxu0 %v4404
    %4742 = vmatpush.bf16.msra.mxu0 %v4397
    %4743 = vmatpush.bf16.msra.mxu0 %v4390
    %4744 = vmatpush.bf16.msra.mxu0 %v4383
    %4745 = vmatpush.bf16.msra.mxu0 %v4376
    %4746 = vmatpush.bf16.msra.mxu0 %v4369
    %4747 = vmatmul.bf16.gmra.mxu0 %v3223
    %v4748 = vpop.f32.mrf.mxu0
    %v4749 = vadd.f32 %v4736, %v4748
    %v4750 = vpop.f32.mrf.mxu0
    %4751 = vdwg.mxu0
    %4752 = vmatpush.bf16.msra.mxu0 %v4251
    %4753 = vmatpush.bf16.msra.mxu0 %v4244
    %4754 = vmatpush.bf16.msra.mxu0 %v4237
    %4755 = vmatpush.bf16.msra.mxu0 %v4230
    %4756 = vmatpush.bf16.msra.mxu0 %v4223
    %4757 = vmatpush.bf16.msra.mxu0 %v4216
    %4758 = vmatpush.bf16.msra.mxu0 %v4209
    %4759 = vmatpush.bf16.msra.mxu0 %v4202
    %4760 = vmatmul.bf16.gmra.mxu0 %v3220
    %v4761 = vpop.f32.mrf.mxu0
    %v4762 = vadd.f32 %v3484, %v4761
    %v4763 = vpop.f32.mrf.mxu0
    %4764 = vdwg.mxu0
    %4765 = vmatpush.bf16.msra.mxu0 %v4307
    %4766 = vmatpush.bf16.msra.mxu0 %v4300
    %4767 = vmatpush.bf16.msra.mxu0 %v4293
    %4768 = vmatpush.bf16.msra.mxu0 %v4286
    %4769 = vmatpush.bf16.msra.mxu0 %v4279
    %4770 = vmatpush.bf16.msra.mxu0 %v4272
    %4771 = vmatpush.bf16.msra.mxu0 %v4265
    %4772 = vmatpush.bf16.msra.mxu0 %v4258
    %4773 = vmatmul.bf16.gmra.mxu0 %v3221
    %v4774 = vpop.f32.mrf.mxu0
    %v4775 = vadd.f32 %v4762, %v4774
    %v4776 = vpop.f32.mrf.mxu0
    %4777 = vdwg.mxu0
    %4778 = vmatpush.bf16.msra.mxu0 %v4363
    %4779 = vmatpush.bf16.msra.mxu0 %v4356
    %4780 = vmatpush.bf16.msra.mxu0 %v4349
    %4781 = vmatpush.bf16.msra.mxu0 %v4342
    %4782 = vmatpush.bf16.msra.mxu0 %v4335
    %4783 = vmatpush.bf16.msra.mxu0 %v4328
    %4784 = vmatpush.bf16.msra.mxu0 %v4321
    %4785 = vmatpush.bf16.msra.mxu0 %v4314
    %4786 = vmatmul.bf16.gmra.mxu0 %v3222
    %v4787 = vpop.f32.mrf.mxu0
    %v4788 = vadd.f32 %v4775, %v4787
    %v4789 = vpop.f32.mrf.mxu0
    %4790 = vdwg.mxu0
    %4791 = vmatpush.bf16.msra.mxu0 %v4419
    %4792 = vmatpush.bf16.msra.mxu0 %v4412
    %4793 = vmatpush.bf16.msra.mxu0 %v4405
    %4794 = vmatpush.bf16.msra.mxu0 %v4398
    %4795 = vmatpush.bf16.msra.mxu0 %v4391
    %4796 = vmatpush.bf16.msra.mxu0 %v4384
    %4797 = vmatpush.bf16.msra.mxu0 %v4377
    %4798 = vmatpush.bf16.msra.mxu0 %v4370
    %4799 = vmatmul.bf16.gmra.mxu0 %v3223
    %v4800 = vpop.f32.mrf.mxu0
    %v4801 = vadd.f32 %v4788, %v4800
    %v4802 = vpop.f32.mrf.mxu0
    %4803 = vdwg.mxu0
    %4804 = vmatpush.bf16.msra.mxu0 %v4252
    %4805 = vmatpush.bf16.msra.mxu0 %v4245
    %4806 = vmatpush.bf16.msra.mxu0 %v4238
    %4807 = vmatpush.bf16.msra.mxu0 %v4231
    %4808 = vmatpush.bf16.msra.mxu0 %v4224
    %4809 = vmatpush.bf16.msra.mxu0 %v4217
    %4810 = vmatpush.bf16.msra.mxu0 %v4210
    %4811 = vmatpush.bf16.msra.mxu0 %v4203
    %4812 = vmatmul.bf16.gmra.mxu0 %v3220
    %v4813 = vpop.f32.mrf.mxu0
    %v4814 = vadd.f32 %v3485, %v4813
    %v4815 = vpop.f32.mrf.mxu0
    %4816 = vdwg.mxu0
    %4817 = vmatpush.bf16.msra.mxu0 %v4308
    %4818 = vmatpush.bf16.msra.mxu0 %v4301
    %4819 = vmatpush.bf16.msra.mxu0 %v4294
    %4820 = vmatpush.bf16.msra.mxu0 %v4287
    %4821 = vmatpush.bf16.msra.mxu0 %v4280
    %4822 = vmatpush.bf16.msra.mxu0 %v4273
    %4823 = vmatpush.bf16.msra.mxu0 %v4266
    %4824 = vmatpush.bf16.msra.mxu0 %v4259
    %4825 = vmatmul.bf16.gmra.mxu0 %v3221
    %v4826 = vpop.f32.mrf.mxu0
    %v4827 = vadd.f32 %v4814, %v4826
    %v4828 = vpop.f32.mrf.mxu0
    %4829 = vdwg.mxu0
    %4830 = vmatpush.bf16.msra.mxu0 %v4364
    %4831 = vmatpush.bf16.msra.mxu0 %v4357
    %4832 = vmatpush.bf16.msra.mxu0 %v4350
    %4833 = vmatpush.bf16.msra.mxu0 %v4343
    %4834 = vmatpush.bf16.msra.mxu0 %v4336
    %4835 = vmatpush.bf16.msra.mxu0 %v4329
    %4836 = vmatpush.bf16.msra.mxu0 %v4322
    %4837 = vmatpush.bf16.msra.mxu0 %v4315
    %4838 = vmatmul.bf16.gmra.mxu0 %v3222
    %v4839 = vpop.f32.mrf.mxu0
    %v4840 = vadd.f32 %v4827, %v4839
    %v4841 = vpop.f32.mrf.mxu0
    %4842 = vdwg.mxu0
    %4843 = vmatpush.bf16.msra.mxu0 %v4420
    %4844 = vmatpush.bf16.msra.mxu0 %v4413
    %4845 = vmatpush.bf16.msra.mxu0 %v4406
    %4846 = vmatpush.bf16.msra.mxu0 %v4399
    %4847 = vmatpush.bf16.msra.mxu0 %v4392
    %4848 = vmatpush.bf16.msra.mxu0 %v4385
    %4849 = vmatpush.bf16.msra.mxu0 %v4378
    %4850 = vmatpush.bf16.msra.mxu0 %v4371
    %4851 = vmatmul.bf16.gmra.mxu0 %v3223
    %v4852 = vpop.f32.mrf.mxu0
    %v4853 = vadd.f32 %v4840, %v4852
    %v4854 = vpop.f32.mrf.mxu0
    %4855 = vdwg.mxu0
    %4856 = vmatpush.bf16.msra.mxu0 %v4253
    %4857 = vmatpush.bf16.msra.mxu0 %v4246
    %4858 = vmatpush.bf16.msra.mxu0 %v4239
    %4859 = vmatpush.bf16.msra.mxu0 %v4232
    %4860 = vmatpush.bf16.msra.mxu0 %v4225
    %4861 = vmatpush.bf16.msra.mxu0 %v4218
    %4862 = vmatpush.bf16.msra.mxu0 %v4211
    %4863 = vmatpush.bf16.msra.mxu0 %v4204
    %4864 = vmatmul.bf16.gmra.mxu0 %v3220
    %v4865 = vpop.f32.mrf.mxu0
    %v4866 = vadd.f32 %v3486, %v4865
    %v4867 = vpop.f32.mrf.mxu0
    %4868 = vdwg.mxu0
    %4869 = vmatpush.bf16.msra.mxu0 %v4309
    %4870 = vmatpush.bf16.msra.mxu0 %v4302
    %4871 = vmatpush.bf16.msra.mxu0 %v4295
    %4872 = vmatpush.bf16.msra.mxu0 %v4288
    %4873 = vmatpush.bf16.msra.mxu0 %v4281
    %4874 = vmatpush.bf16.msra.mxu0 %v4274
    %4875 = vmatpush.bf16.msra.mxu0 %v4267
    %4876 = vmatpush.bf16.msra.mxu0 %v4260
    %4877 = vmatmul.bf16.gmra.mxu0 %v3221
    %v4878 = vpop.f32.mrf.mxu0
    %v4879 = vadd.f32 %v4866, %v4878
    %v4880 = vpop.f32.mrf.mxu0
    %4881 = vdwg.mxu0
    %4882 = vmatpush.bf16.msra.mxu0 %v4365
    %4883 = vmatpush.bf16.msra.mxu0 %v4358
    %4884 = vmatpush.bf16.msra.mxu0 %v4351
    %4885 = vmatpush.bf16.msra.mxu0 %v4344
    %4886 = vmatpush.bf16.msra.mxu0 %v4337
    %4887 = vmatpush.bf16.msra.mxu0 %v4330
    %4888 = vmatpush.bf16.msra.mxu0 %v4323
    %4889 = vmatpush.bf16.msra.mxu0 %v4316
    %4890 = vmatmul.bf16.gmra.mxu0 %v3222
    %v4891 = vpop.f32.mrf.mxu0
    %v4892 = vadd.f32 %v4879, %v4891
    %v4893 = vpop.f32.mrf.mxu0
    %4894 = vdwg.mxu0
    %4895 = vmatpush.bf16.msra.mxu0 %v4421
    %4896 = vmatpush.bf16.msra.mxu0 %v4414
    %4897 = vmatpush.bf16.msra.mxu0 %v4407
    %4898 = vmatpush.bf16.msra.mxu0 %v4400
    %4899 = vmatpush.bf16.msra.mxu0 %v4393
    %4900 = vmatpush.bf16.msra.mxu0 %v4386
    %4901 = vmatpush.bf16.msra.mxu0 %v4379
    %4902 = vmatpush.bf16.msra.mxu0 %v4372
    %4903 = vmatmul.bf16.gmra.mxu0 %v3223
    %v4904 = vpop.f32.mrf.mxu0
    %v4905 = vadd.f32 %v4892, %v4904
    %v4906 = vpop.f32.mrf.mxu0
    %4907 = vdwg.mxu0
    %4908 = vmatpush.bf16.msra.mxu0 %v4254
    %4909 = vmatpush.bf16.msra.mxu0 %v4247
    %4910 = vmatpush.bf16.msra.mxu0 %v4240
    %4911 = vmatpush.bf16.msra.mxu0 %v4233
    %4912 = vmatpush.bf16.msra.mxu0 %v4226
    %4913 = vmatpush.bf16.msra.mxu0 %v4219
    %4914 = vmatpush.bf16.msra.mxu0 %v4212
    %4915 = vmatpush.bf16.msra.mxu0 %v4205
    %4916 = vmatmul.bf16.gmra.mxu0 %v3220
    %v4917 = vpop.f32.mrf.mxu0
    %v4918 = vadd.f32 %v3487, %v4917
    %v4919 = vpop.f32.mrf.mxu0
    %4920 = vdwg.mxu0
    %4921 = vmatpush.bf16.msra.mxu0 %v4310
    %4922 = vmatpush.bf16.msra.mxu0 %v4303
    %4923 = vmatpush.bf16.msra.mxu0 %v4296
    %4924 = vmatpush.bf16.msra.mxu0 %v4289
    %4925 = vmatpush.bf16.msra.mxu0 %v4282
    %4926 = vmatpush.bf16.msra.mxu0 %v4275
    %4927 = vmatpush.bf16.msra.mxu0 %v4268
    %4928 = vmatpush.bf16.msra.mxu0 %v4261
    %4929 = vmatmul.bf16.gmra.mxu0 %v3221
    %v4930 = vpop.f32.mrf.mxu0
    %v4931 = vadd.f32 %v4918, %v4930
    %v4932 = vpop.f32.mrf.mxu0
    %4933 = vdwg.mxu0
    %4934 = vmatpush.bf16.msra.mxu0 %v4366
    %4935 = vmatpush.bf16.msra.mxu0 %v4359
    %4936 = vmatpush.bf16.msra.mxu0 %v4352
    %4937 = vmatpush.bf16.msra.mxu0 %v4345
    %4938 = vmatpush.bf16.msra.mxu0 %v4338
    %4939 = vmatpush.bf16.msra.mxu0 %v4331
    %4940 = vmatpush.bf16.msra.mxu0 %v4324
    %4941 = vmatpush.bf16.msra.mxu0 %v4317
    %4942 = vmatmul.bf16.gmra.mxu0 %v3222
    %v4943 = vpop.f32.mrf.mxu0
    %v4944 = vadd.f32 %v4931, %v4943
    %v4945 = vpop.f32.mrf.mxu0
    %4946 = vdwg.mxu0
    %4947 = vmatpush.bf16.msra.mxu0 %v4422
    %4948 = vmatpush.bf16.msra.mxu0 %v4415
    %4949 = vmatpush.bf16.msra.mxu0 %v4408
    %4950 = vmatpush.bf16.msra.mxu0 %v4401
    %4951 = vmatpush.bf16.msra.mxu0 %v4394
    %4952 = vmatpush.bf16.msra.mxu0 %v4387
    %4953 = vmatpush.bf16.msra.mxu0 %v4380
    %4954 = vmatpush.bf16.msra.mxu0 %v4373
    %4955 = vmatmul.bf16.gmra.mxu0 %v3223
    %v4956 = vpop.f32.mrf.mxu0
    %v4957 = vadd.f32 %v4944, %v4956
    %v4958 = vpop.f32.mrf.mxu0
    %4959 = vdwg.mxu0
    %4960 = vmatpush.bf16.msra.mxu0 %v4255
    %4961 = vmatpush.bf16.msra.mxu0 %v4248
    %4962 = vmatpush.bf16.msra.mxu0 %v4241
    %4963 = vmatpush.bf16.msra.mxu0 %v4234
    %4964 = vmatpush.bf16.msra.mxu0 %v4227
    %4965 = vmatpush.bf16.msra.mxu0 %v4220
    %4966 = vmatpush.bf16.msra.mxu0 %v4213
    %4967 = vmatpush.bf16.msra.mxu0 %v4206
    %4968 = vmatmul.bf16.gmra.mxu0 %v3220
    %v4969 = vpop.f32.mrf.mxu0
    %v4970 = vadd.f32 %v3488, %v4969
    %v4971 = vpop.f32.mrf.mxu0
    %4972 = vdwg.mxu0
    %4973 = vmatpush.bf16.msra.mxu0 %v4311
    %4974 = vmatpush.bf16.msra.mxu0 %v4304
    %4975 = vmatpush.bf16.msra.mxu0 %v4297
    %4976 = vmatpush.bf16.msra.mxu0 %v4290
    %4977 = vmatpush.bf16.msra.mxu0 %v4283
    %4978 = vmatpush.bf16.msra.mxu0 %v4276
    %4979 = vmatpush.bf16.msra.mxu0 %v4269
    %4980 = vmatpush.bf16.msra.mxu0 %v4262
    %4981 = vmatmul.bf16.gmra.mxu0 %v3221
    %v4982 = vpop.f32.mrf.mxu0
    %v4983 = vadd.f32 %v4970, %v4982
    %v4984 = vpop.f32.mrf.mxu0
    %4985 = vdwg.mxu0
    %4986 = vmatpush.bf16.msra.mxu0 %v4367
    %4987 = vmatpush.bf16.msra.mxu0 %v4360
    %4988 = vmatpush.bf16.msra.mxu0 %v4353
    %4989 = vmatpush.bf16.msra.mxu0 %v4346
    %4990 = vmatpush.bf16.msra.mxu0 %v4339
    %4991 = vmatpush.bf16.msra.mxu0 %v4332
    %4992 = vmatpush.bf16.msra.mxu0 %v4325
    %4993 = vmatpush.bf16.msra.mxu0 %v4318
    %4994 = vmatmul.bf16.gmra.mxu0 %v3222
    %v4995 = vpop.f32.mrf.mxu0
    %v4996 = vadd.f32 %v4983, %v4995
    %v4997 = vpop.f32.mrf.mxu0
    %4998 = vdwg.mxu0
    %4999 = vmatpush.bf16.msra.mxu0 %v4423
    %5000 = vmatpush.bf16.msra.mxu0 %v4416
    %5001 = vmatpush.bf16.msra.mxu0 %v4409
    %5002 = vmatpush.bf16.msra.mxu0 %v4402
    %5003 = vmatpush.bf16.msra.mxu0 %v4395
    %5004 = vmatpush.bf16.msra.mxu0 %v4388
    %5005 = vmatpush.bf16.msra.mxu0 %v4381
    %5006 = vmatpush.bf16.msra.mxu0 %v4374
    %5007 = vmatmul.bf16.gmra.mxu0 %v3223
    %v5008 = vpop.f32.mrf.mxu0
    %v5009 = vadd.f32 %v4996, %v5008
    %v5010 = vpop.f32.mrf.mxu0
    %5011 = vdwg.mxu0
    %v5012 = vmul.f32 %v4697, 0.5
    %v5013 = vmul.f32 %v4749, 0.5
    %v5014 = vmul.f32 %v4801, 0.5
    %v5015 = vmul.f32 %v4853, 0.5
    %v5016 = vmul.f32 %v4905, 0.5
    %v5017 = vmul.f32 %v4957, 0.5
    %v5018 = vmul.f32 %v5009, 0.5
    %v5019 = vtanh.pop %v5012
    %v5020 = vtanh.pop %v5013
    %v5021 = vtanh.pop %v5014
    %v5022 = vtanh.pop %v5015
    %v5023 = vtanh.pop %v5016
    %v5024 = vtanh.pop %v5017
    %v5025 = vtanh.pop %v5018
    %v5026 = vadd.f32 %v5019, 1.0
    %v5027 = vadd.f32 %v5020, 1.0
    %v5028 = vadd.f32 %v5021, 1.0
    %v5029 = vadd.f32 %v5022, 1.0
    %v5030 = vadd.f32 %v5023, 1.0
    %v5031 = vadd.f32 %v5024, 1.0
    %v5032 = vadd.f32 %v5025, 1.0
    %v5033 = vmul.f32 %v5026, 0.5
    %v5034 = vmul.f32 %v5027, 0.5
    %v5035 = vmul.f32 %v5028, 0.5
    %v5036 = vmul.f32 %v5029, 0.5
    %v5037 = vmul.f32 %v5030, 0.5
    %v5038 = vmul.f32 %v5031, 0.5
    %v5039 = vmul.f32 %v5032, 0.5
    %5040 = vst [vmem:[#allocation2] sm:$0xff] %v5033
    %5041 = vst [vmem:[#allocation2 + $0x8] sm:$0xff] %v5034
    %5042 = vst [vmem:[#allocation2 + $0x10] sm:$0xff] %v5035
    %5043 = vst [vmem:[#allocation2 + $0x18] sm:$0xff] %v5036
    %5044 = vst [vmem:[#allocation2 + $0x20] sm:$0xff] %v5037
    %5045 = vst [vmem:[#allocation2 + $0x28] sm:$0xff] %v5038
    %5046 = vst.msk [vmem:[#allocation2 + $0x30] sm:$0xff] %vm1242, %v5039
    %5047 = vst [vmem:[%s12] sm:$0xff] %v2953
    %5048 = vst [vmem:[%s12 + $0x8] sm:$0xff] %v2959
    %5049 = vst [vmem:[%s12 + $0x10] sm:$0xff] %v2703
    %5050 = vst [vmem:[%s12 + $0x18] sm:$0xff] %v2755
    %5051 = vst [vmem:[%s12 + $0x20] sm:$0xff] %v2807
    %5052 = vst [vmem:[%s12 + $0x28] sm:$0xff] %v2929
    %5053 = vst [vmem:[%s12 + $0x30] sm:$0xff] %v2945
    // Predicated region
    $region46: #{mfbbvi_forward.5} parent=1 // pred_check
      _
    $region47: #{mfbbvi_forward.5} parent=1 // pred_check_branch
      %5055 = sbr.rel (0) target = $region49
    $region48: #{mfbbvi_forward.5} parent=1 // pred_region
      %5057 = vsyncadd [#allocation3], 0
      %s5059 = sshll.u32 [#allocation2], 4
      %s5060 = int_to_ptr.vmem [resolvable:$true] %s5059
      %s5061 = sshll.u32 %s11, 4
      %s5062 = int_to_ptr.hbm [resolvable:$true] %s5061
      %5064 = dma.vmem_to_hbm [thread:$0]  %s5060, 896, %s5062, [#allocation3]
    $region49: #{mfbbvi_forward.5} parent=1 // pred_fallthru
      _
    // Predicated region
    $region50: #{mfbbvi_forward.5} parent=1 // pred_check
      _
    $region51: #{mfbbvi_forward.5} parent=1 // pred_check_branch
      %5066 = sbr.rel (0) target = $region53
    $region52: #{mfbbvi_forward.5} parent=1 // pred_region
      _
    $region53: #{mfbbvi_forward.5} parent=1 // pred_fallthru
      _
    // Predicated region
    $region54: #{mfbbvi_forward.5} parent=1 // pred_check
      _
    $region55: #{mfbbvi_forward.5} parent=1 // pred_check_branch
      %5068 = sbr.rel (0) target = $region57
    $region56: #{mfbbvi_forward.5} parent=1 // pred_region
      %5070 = dma.done [#allocation3], 896
    $region57: #{mfbbvi_forward.5} parent=1 // pred_fallthru
      _
    // Predicated region
    $region58: #{mfbbvi_forward.5} parent=1 // pred_check
      _
    $region59: #{mfbbvi_forward.5} parent=1 // pred_check_branch
      %5072 = sbr.rel (0) target = $region61
    $region60: #{mfbbvi_forward.5} parent=1 // pred_region
      _
    $region61: #{mfbbvi_forward.5} parent=1 // pred_fallthru
      _
    %5073 = vsyncpa [#allocation3], 1

</llo_original>
